<compile_context>
chip_gen: v5e
topology: v5e:2x2
jax: 0.10.0
libtpu: 0.0.40
codegen_flags: <defaults>
</compile_context>

<pallas_src>
import math
import jax
import jax.numpy as jnp
from jax import lax
from jax.experimental import pallas as pl
from jax.experimental.pallas import tpu as pltpu

PAD = 0
BOS = 2

# Small, module-consistent hyper-parameters.
VOCAB_SIZE = 64
DEC_HSZ    = 32
RNN_LAYERS = 2
BSZ        = 8          # >= 8 fills the vreg sublanes
MAX_LEN    = 6
ENC_DIM    = 1000       # nn.Linear(1000, dec_hsz) in the reference


def _full_spec(shape):
    # whole-array block, single grid point
    return pl.BlockSpec(shape, lambda i, _n=len(shape): (0,) * _n)


def actor_kernel(enc_ref, encw_ref, encb_ref,
                 e0bos_ref, e0tab_ref, whh0_ref,
                 wih1_ref, whh1_ref, bias1_ref, wlog_ref,
                 props_ref, x_ref):
    B = e0bos_ref.shape[0]
    H = whh0_ref.shape[0]
    L = 1 + wih1_ref.shape[0]
    V = e0tab_ref.shape[0]
    f32 = jnp.float32

    # ---- feed_enc fused in-kernel: h[l] = enc_out(enc) for every layer, c[l] = 0 ----
    h_enc = (jnp.dot(enc_ref[...], encw_ref[...], preferred_element_type=f32)
             + encb_ref[...])                                    # (B, H)
    h = [h_enc for _ in range(L)]
    c = [jnp.zeros((B, H), f32) for _ in range(L)]

    e0tab = e0tab_ref[...]                       # (V, 4H) emb@wihT0 + bias0 (g-cols x2)
    whh0  = whh0_ref[...]                        # (H, 4H) layer-0 hidden weights
    wih1s = [wih1_ref[i] for i in range(L - 1)]  # (H, 4H) layer>=1 input-from-below weights
    whh1s = [whh1_ref[i] for i in range(L - 1)]  # (H, 4H) layer>=1 hidden weights
    bias1 = [bias1_ref[i] for i in range(L - 1)] # (B, 4H) pre-broadcast biases
    wlog  = wlog_ref[...]                        # (H, V)  out_w.T @ emb.T (tied logits)

    iota_v = lax.broadcasted_iota(jnp.int32, (B, V), 1)

    def cell(gates, c_prev):
        # g-gate columns were pre-scaled by 2 in the wrapper, so a single sigmoid over
        # the whole (B,4H) vreg yields all four gates; tanh(g) = 2*sigmoid(2g) - 1.
        s = jax.nn.sigmoid(gates)
        i_g = s[:, 0:H]
        f_g = s[:, H:2 * H]
        g_g = 2.0 * s[:, 2 * H:3 * H] - 1.0
        o_g = s[:, 3 * H:4 * H]
        c_new = f_g * c_prev + i_g * g_g
        h_new = o_g * jnp.tanh(c_new)
        return h_new, c_new

    toks = [jnp.full((B, 1), BOS, dtype=jnp.int32)]   # x grows by one token per step
    e0s  = [e0bos_ref[...]]                           # cached layer-0 input (+bias0) per token
    props_rows = []

    for t in range(MAX_LEN):
        # nn.LSTM(batch_first=True) is re-run over the *entire* current sequence x,
        # continuing from the carried hidden state (matches the reference exactly).
        # TODO(synk): inter-layer LSTM dropout is a no-op in eval mode and is omitted.
        for s_idx in range(t + 1):
            # hh contributions (and biases) for layers >= 1 depend only on the
            # *previous* h[l]; they are computed off the layer-0 critical path so the
            # MXU/VPU can overlap them with the layer-0 cell update.
            g_hh = [jnp.dot(h[l], whh1s[l - 1], preferred_element_type=f32)
                    + bias1[l - 1] for l in range(1, L)]
            # layer 0: cached (t-invariant) embedded-input + bias contribution
            gates0 = e0s[s_idx] + jnp.dot(h[0], whh0, preferred_element_type=f32)
            h[0], c[0] = cell(gates0, c[0])
            for l in range(1, L):
                gates = g_hh[l - 1] + jnp.dot(h[l - 1], wih1s[l - 1],
                                              preferred_element_type=f32)
                h[l], c[l] = cell(gates, c[l])

        # props = F.linear(self.out(hidden[0][-1]), lookup_table.weight)  -> (B, V)
        props = jnp.dot(h[L - 1], wlog, preferred_element_type=f32)

        mx = jnp.max(props, axis=-1, keepdims=True)                    # (B, 1)
        # torch.max(props, -1, keepdim=True): index of the (first) max
        next_idx = jnp.min(jnp.where(props == mx, iota_v, V),
                           axis=-1, keepdims=True).astype(jnp.int32)   # (B, 1)
        toks.append(next_idx)

        if t + 1 < MAX_LEN:
            # cache this token's layer-0 input contribution (bias0 already folded into
            # e0tab rows) for all later re-runs
            onehot = (next_idx == iota_v).astype(f32)                  # (B, V)
            e0s.append(jnp.dot(onehot, e0tab, preferred_element_type=f32))

        # F.log_softmax(..., dim=-1) (buffered; stored once, lane-dense)
        lse = jnp.log(jnp.sum(jnp.exp(props - mx), axis=-1, keepdims=True))
        props_rows.append(props - mx - lse)

    props_ref[...] = jnp.concatenate(props_rows, axis=-1)              # (B, MAX_LEN*V)
    x_ref[...] = jnp.concatenate(toks, axis=-1)                        # (B, MAX_LEN+1)


def init_params(key):
    # _reset_parameters: U(-1/sqrt(vocab), 1/sqrt(vocab)) for enc_out / embedding / out
    stdv = 1.0 / math.sqrt(VOCAB_SIZE)
    lstm_std = 1.0 / math.sqrt(DEC_HSZ)   # PyTorch default LSTM init

    def u(k, shape, s):
        return jax.random.uniform(k, shape, jnp.float32, -s, s)

    ks = jax.random.split(key, 5)
    params = {
        "enc_out_w": u(ks[0], (DEC_HSZ, ENC_DIM), stdv),
        "enc_out_b": u(ks[1], (DEC_HSZ,), stdv),
        "emb":       u(ks[2], (VOCAB_SIZE, DEC_HSZ), stdv),
        "out_w":     u(ks[3], (DEC_HSZ, DEC_HSZ), stdv),   # nn.Linear(H, H, bias=False)
    }
    kl = jax.random.split(ks[4], 4 * RNN_LAYERS)
    w_ih, w_hh, bias = [], [], []
    for l in range(RNN_LAYERS):
        w_ih.append(u(kl[4 * l + 0], (4 * DEC_HSZ, DEC_HSZ), lstm_std))
        w_hh.append(u(kl[4 * l + 1], (4 * DEC_HSZ, DEC_HSZ), lstm_std))
        b_ih = u(kl[4 * l + 2], (4 * DEC_HSZ,), lstm_std)
        b_hh = u(kl[4 * l + 3], (4 * DEC_HSZ,), lstm_std)
        bias.append(b_ih + b_hh)
    params["w_ih"] = jnp.stack(w_ih)     # (L, 4H, H)
    params["w_hh"] = jnp.stack(w_hh)     # (L, 4H, H)
    params["bias"] = jnp.stack(bias)     # (L, 4H)  (b_ih + b_hh)
    return params


def prepare_actor_weights(params):
    """One-time wrapper-side weight fusion (chain-shortening for the kernel)."""
    H = DEC_HSZ
    wihT = jnp.transpose(params["w_ih"], (0, 2, 1))     # (L, H, 4H)
    whhT = jnp.transpose(params["w_hh"], (0, 2, 1))     # (L, H, 4H)
    bias = params["bias"]                               # (L, 4H)

    # tanh-via-sigmoid: pre-scale the g-gate (cell candidate) columns by 2
    def scale_g(w):
        return w.at[..., 2 * H:3 * H].multiply(2.0)

    wihT, whhT, bias = scale_g(wihT), scale_g(whhT), scale_g(bias)

    emb = params["emb"]                                 # (V, H)
    # embedding AND layer-0 bias folded into the layer-0 gate table
    e0_tab = emb @ wihT[0] + bias[0][None, :]           # (V, 4H)
    e0_bos = jnp.broadcast_to(e0_tab[BOS], (BSZ, 4 * H))
    # layer>=1 biases pre-broadcast once (no broadcast_in_dim inside the unrolled loop)
    bias1 = jnp.broadcast_to(bias[1:, None, :], (RNN_LAYERS - 1, BSZ, 4 * H))
    w_log = params["out_w"].T @ emb.T                   # (H, V): out proj folded into tied emb

    return {
        "enc_w":  params["enc_out_w"].T.astype(jnp.float32),        # (1000, H)
        "enc_b":  params["enc_out_b"][None, :].astype(jnp.float32), # (1, H)
        "e0_bos": e0_bos.astype(jnp.float32),
        "e0_tab": e0_tab.astype(jnp.float32),
        "whh0":   whhT[0].astype(jnp.float32),
        "w_ih1":  wihT[1:].astype(jnp.float32),          # (L-1, H, 4H)
        "w_hh1":  whhT[1:].astype(jnp.float32),          # (L-1, H, 4H)
        "bias1":  bias1.astype(jnp.float32),             # (L-1, B, 4H)
        "w_log":  w_log.astype(jnp.float32),
    }


@jax.jit
def actor_forward(prepped, enc):
    inputs = (enc.astype(jnp.float32), prepped["enc_w"], prepped["enc_b"],
              prepped["e0_bos"], prepped["e0_tab"], prepped["whh0"],
              prepped["w_ih1"], prepped["w_hh1"], prepped["bias1"], prepped["w_log"])
    out_shape = (
        jax.ShapeDtypeStruct((BSZ, MAX_LEN * VOCAB_SIZE), jnp.float32),  # lane-dense slab
        jax.ShapeDtypeStruct((BSZ, MAX_LEN + 1), jnp.int32),
    )
    props_flat, x = pl.pallas_call(
        actor_kernel,
        out_shape=out_shape,
        grid_spec=pltpu.PrefetchScalarGridSpec(
            num_scalar_prefetch=0,
            grid=(1,),
            in_specs=[_full_spec(a.shape) for a in inputs],
            out_specs=[_full_spec((BSZ, MAX_LEN * VOCAB_SIZE)),
                       _full_spec((BSZ, MAX_LEN + 1))],
        ),
        compiler_params=pltpu.CompilerParams(
            # With grid=(1,) semantics don't matter.  Only once BSZ >= 16 should the
            # batch get a leading "parallel" grid axis so v7x's two TensorCores split it.
            dimension_semantics=("arbitrary",)),
    )(*inputs)
    return props_flat.reshape(BSZ, MAX_LEN, VOCAB_SIZE), x


if __name__ == "__main__":
    key = jax.random.PRNGKey(0)
    pkey, ekey = jax.random.split(key)
    params = init_params(pkey)
    prepped = prepare_actor_weights(params)

    enc = jax.random.normal(ekey, (BSZ, ENC_DIM), jnp.float32)

    log_props, tokens = actor_forward(prepped, enc)
    jax.block_until_ready((log_props, tokens))

    assert log_props.shape == (BSZ, MAX_LEN, VOCAB_SIZE)
    assert tokens.shape == (BSZ, MAX_LEN + 1)
    assert log_props.dtype == jnp.float32 and tokens.dtype == jnp.int32
    assert bool(jnp.all(jnp.isfinite(log_props)))
    # log_softmax rows must sum to 1 in probability space
    assert bool(jnp.allclose(jnp.exp(log_props).sum(-1), 1.0, atol=1e-4))
    # greedy tokens must match argmax of the returned distributions, first token is BOS
    assert bool(jnp.all(tokens[:, 1:] == jnp.argmax(log_props, axis=-1).astype(jnp.int32)))
    assert bool(jnp.all(tokens[:, 0] == BOS))

    print("KERNEL_OK")
</pallas_src>

<mosaic_0001>
module attributes {stable_mosaic.version = 11 : i64} {
  func.func @actor_kernel(%arg0: i32, %arg1: memref<8x1000xf32, #tpu.memory_space<vmem>>, %arg2: memref<1000x32xf32, #tpu.memory_space<vmem>>, %arg3: memref<1x32xf32, #tpu.memory_space<vmem>>, %arg4: memref<8x128xf32, #tpu.memory_space<vmem>>, %arg5: memref<64x128xf32, #tpu.memory_space<vmem>>, %arg6: memref<32x128xf32, #tpu.memory_space<vmem>>, %arg7: memref<1x32x128xf32, #tpu.memory_space<vmem>>, %arg8: memref<1x32x128xf32, #tpu.memory_space<vmem>>, %arg9: memref<1x8x128xf32, #tpu.memory_space<vmem>>, %arg10: memref<32x64xf32, #tpu.memory_space<vmem>>, %arg11: memref<8x384xf32, #tpu.memory_space<vmem>>, %arg12: memref<8x7xi32, #tpu.memory_space<vmem>>) attributes {dimension_semantics = [#tpu.dimension_semantics<arbitrary>], iteration_bounds = array<i64: 1>, scalar_prefetch = 0 : i64, scratch_operands = 0 : i64, tpu.core_type = #tpu.core_type<tc>, window_params = [{pipeline_mode = #tpu.pipeline_mode<synchronous>, transform_indices = @transform_0, window_bounds = array<i64: 8, 1000>}, {pipeline_mode = #tpu.pipeline_mode<synchronous>, transform_indices = @transform_1, window_bounds = array<i64: 1000, 32>}, {pipeline_mode = #tpu.pipeline_mode<synchronous>, transform_indices = @transform_2, window_bounds = array<i64: 1, 32>}, {pipeline_mode = #tpu.pipeline_mode<synchronous>, transform_indices = @transform_3, window_bounds = array<i64: 8, 128>}, {pipeline_mode = #tpu.pipeline_mode<synchronous>, transform_indices = @transform_4, window_bounds = array<i64: 64, 128>}, {pipeline_mode = #tpu.pipeline_mode<synchronous>, transform_indices = @transform_5, window_bounds = array<i64: 32, 128>}, {pipeline_mode = #tpu.pipeline_mode<synchronous>, transform_indices = @transform_6, window_bounds = array<i64: 1, 32, 128>}, {pipeline_mode = #tpu.pipeline_mode<synchronous>, transform_indices = @transform_7, window_bounds = array<i64: 1, 32, 128>}, {pipeline_mode = #tpu.pipeline_mode<synchronous>, transform_indices = @transform_8, window_bounds = array<i64: 1, 8, 128>}, {pipeline_mode = #tpu.pipeline_mode<synchronous>, transform_indices = @transform_9, window_bounds = array<i64: 32, 64>}, {pipeline_mode = #tpu.pipeline_mode<synchronous>, transform_indices = @transform_10, window_bounds = array<i64: 8, 384>}, {pipeline_mode = #tpu.pipeline_mode<synchronous>, transform_indices = @transform_11, window_bounds = array<i64: 8, 7>}]} {
    %c0 = arith.constant 0 : index
    %c0_0 = arith.constant 0 : index
    %0 = vector.load %arg1[%c0, %c0_0] : memref<8x1000xf32, #tpu.memory_space<vmem>>, vector<8x1000xf32>
    %c0_1 = arith.constant 0 : index
    %c0_2 = arith.constant 0 : index
    %1 = vector.load %arg2[%c0_1, %c0_2] : memref<1000x32xf32, #tpu.memory_space<vmem>>, vector<1000x32xf32>
    %cst = arith.constant dense<0.000000e+00> : vector<8x32xf32>
    %2 = tpu.matmul %0, %1, %cst {dimension_numbers = #tpu.dot_dimension_numbers<[1], [0], [0], [1], [0, 0, 1, 1], [], []>} : vector<8x1000xf32>, vector<1000x32xf32>, vector<8x32xf32> -> vector<8x32xf32>
    %c0_3 = arith.constant 0 : index
    %c0_4 = arith.constant 0 : index
    %3 = vector.load %arg3[%c0_3, %c0_4] : memref<1x32xf32, #tpu.memory_space<vmem>>, vector<1x32xf32>
    %4 = vector.broadcast %3 : vector<1x32xf32> to vector<8x32xf32>
    %5 = arith.addf %2, %4 : vector<8x32xf32>
    %cst_5 = arith.constant 0.000000e+00 : f32
    %6 = vector.broadcast %cst_5 : f32 to vector<8x32xf32>
    %cst_6 = arith.constant 0.000000e+00 : f32
    %7 = vector.broadcast %cst_6 : f32 to vector<8x32xf32>
    %c0_7 = arith.constant 0 : index
    %c0_8 = arith.constant 0 : index
    %8 = vector.load %arg5[%c0_7, %c0_8] : memref<64x128xf32, #tpu.memory_space<vmem>>, vector<64x128xf32>
    %c0_9 = arith.constant 0 : index
    %c0_10 = arith.constant 0 : index
    %9 = vector.load %arg6[%c0_9, %c0_10] : memref<32x128xf32, #tpu.memory_space<vmem>>, vector<32x128xf32>
    %c0_11 = arith.constant 0 : index
    %c0_12 = arith.constant 0 : index
    %c0_13 = arith.constant 0 : index
    %10 = vector.load %arg7[%c0_11, %c0_12, %c0_13] : memref<1x32x128xf32, #tpu.memory_space<vmem>>, vector<1x32x128xf32>
    %11 = vector.shape_cast %10 : vector<1x32x128xf32> to vector<32x128xf32>
    %c0_14 = arith.constant 0 : index
    %c0_15 = arith.constant 0 : index
    %c0_16 = arith.constant 0 : index
    %12 = vector.load %arg8[%c0_14, %c0_15, %c0_16] : memref<1x32x128xf32, #tpu.memory_space<vmem>>, vector<1x32x128xf32>
    %13 = vector.shape_cast %12 : vector<1x32x128xf32> to vector<32x128xf32>
    %c0_17 = arith.constant 0 : index
    %c0_18 = arith.constant 0 : index
    %c0_19 = arith.constant 0 : index
    %14 = vector.load %arg9[%c0_17, %c0_18, %c0_19] : memref<1x8x128xf32, #tpu.memory_space<vmem>>, vector<1x8x128xf32>
    %15 = vector.shape_cast %14 : vector<1x8x128xf32> to vector<8x128xf32>
    %c0_20 = arith.constant 0 : index
    %c0_21 = arith.constant 0 : index
    %16 = vector.load %arg10[%c0_20, %c0_21] : memref<32x64xf32, #tpu.memory_space<vmem>>, vector<32x64xf32>
    %17 = tpu.iota {dimensions = array<i32: 1>} : vector<8x64xi32>
    %c2_i32 = arith.constant 2 : i32
    %18 = vector.broadcast %c2_i32 : i32 to vector<8x1xi32>
    %c0_22 = arith.constant 0 : index
    %c0_23 = arith.constant 0 : index
    %19 = vector.load %arg4[%c0_22, %c0_23] : memref<8x128xf32, #tpu.memory_space<vmem>>, vector<8x128xf32>
    %cst_24 = arith.constant dense<0.000000e+00> : vector<8x128xf32>
    %20 = tpu.matmul %5, %13, %cst_24 {dimension_numbers = #tpu.dot_dimension_numbers<[1], [0], [0], [1], [0, 0, 1, 1], [], []>} : vector<8x32xf32>, vector<32x128xf32>, vector<8x128xf32> -> vector<8x128xf32>
    %21 = arith.addf %20, %15 : vector<8x128xf32>
    %cst_25 = arith.constant dense<0.000000e+00> : vector<8x128xf32>
    %22 = tpu.matmul %5, %9, %cst_25 {dimension_numbers = #tpu.dot_dimension_numbers<[1], [0], [0], [1], [0, 0, 1, 1], [], []>} : vector<8x32xf32>, vector<32x128xf32>, vector<8x128xf32> -> vector<8x128xf32>
    %23 = arith.addf %19, %22 : vector<8x128xf32>
    %24 = arith.negf %23 : vector<8x128xf32>
    %25 = math.exp %24 : vector<8x128xf32>
    %cst_26 = arith.constant 1.000000e+00 : f32
    %26 = vector.broadcast %cst_26 : f32 to vector<8x128xf32>
    %27 = arith.addf %26, %25 : vector<8x128xf32>
    %28 = arith.divf %26, %27 : vector<8x128xf32>
    %29 = vector.extract_strided_slice %28 {offsets = [0, 0], sizes = [8, 32], strides = [1, 1]} : vector<8x128xf32> to vector<8x32xf32>
    %30 = vector.extract_strided_slice %28 {offsets = [0, 32], sizes = [8, 32], strides = [1, 1]} : vector<8x128xf32> to vector<8x32xf32>
    %31 = vector.extract_strided_slice %28 {offsets = [0, 64], sizes = [8, 32], strides = [1, 1]} : vector<8x128xf32> to vector<8x32xf32>
    %cst_27 = arith.constant 2.000000e+00 : f32
    %32 = vector.broadcast %cst_27 : f32 to vector<8x32xf32>
    %33 = arith.mulf %32, %31 : vector<8x32xf32>
    %cst_28 = arith.constant 1.000000e+00 : f32
    %34 = vector.broadcast %cst_28 : f32 to vector<8x32xf32>
    %35 = arith.subf %33, %34 : vector<8x32xf32>
    %36 = vector.extract_strided_slice %28 {offsets = [0, 96], sizes = [8, 32], strides = [1, 1]} : vector<8x128xf32> to vector<8x32xf32>
    %37 = arith.mulf %30, %6 : vector<8x32xf32>
    %38 = arith.mulf %29, %35 : vector<8x32xf32>
    %39 = arith.addf %37, %38 : vector<8x32xf32>
    %40 = math.tanh %39 : vector<8x32xf32>
    %41 = arith.mulf %36, %40 : vector<8x32xf32>
    %cst_29 = arith.constant dense<0.000000e+00> : vector<8x128xf32>
    %42 = tpu.matmul %41, %11, %cst_29 {dimension_numbers = #tpu.dot_dimension_numbers<[1], [0], [0], [1], [0, 0, 1, 1], [], []>} : vector<8x32xf32>, vector<32x128xf32>, vector<8x128xf32> -> vector<8x128xf32>
    %43 = arith.addf %21, %42 : vector<8x128xf32>
    %44 = arith.negf %43 : vector<8x128xf32>
    %45 = math.exp %44 : vector<8x128xf32>
    %cst_30 = arith.constant 1.000000e+00 : f32
    %46 = vector.broadcast %cst_30 : f32 to vector<8x128xf32>
    %47 = arith.addf %46, %45 : vector<8x128xf32>
    %48 = arith.divf %46, %47 : vector<8x128xf32>
    %49 = vector.extract_strided_slice %48 {offsets = [0, 0], sizes = [8, 32], strides = [1, 1]} : vector<8x128xf32> to vector<8x32xf32>
    %50 = vector.extract_strided_slice %48 {offsets = [0, 32], sizes = [8, 32], strides = [1, 1]} : vector<8x128xf32> to vector<8x32xf32>
    %51 = vector.extract_strided_slice %48 {offsets = [0, 64], sizes = [8, 32], strides = [1, 1]} : vector<8x128xf32> to vector<8x32xf32>
    %cst_31 = arith.constant 2.000000e+00 : f32
    %52 = vector.broadcast %cst_31 : f32 to vector<8x32xf32>
    %53 = arith.mulf %52, %51 : vector<8x32xf32>
    %cst_32 = arith.constant 1.000000e+00 : f32
    %54 = vector.broadcast %cst_32 : f32 to vector<8x32xf32>
    %55 = arith.subf %53, %54 : vector<8x32xf32>
    %56 = vector.extract_strided_slice %48 {offsets = [0, 96], sizes = [8, 32], strides = [1, 1]} : vector<8x128xf32> to vector<8x32xf32>
    %57 = arith.mulf %50, %7 : vector<8x32xf32>
    %58 = arith.mulf %49, %55 : vector<8x32xf32>
    %59 = arith.addf %57, %58 : vector<8x32xf32>
    %60 = math.tanh %59 : vector<8x32xf32>
    %61 = arith.mulf %56, %60 : vector<8x32xf32>
    %cst_33 = arith.constant dense<0.000000e+00> : vector<8x64xf32>
    %62 = tpu.matmul %61, %16, %cst_33 {dimension_numbers = #tpu.dot_dimension_numbers<[1], [0], [0], [1], [0, 0, 1, 1], [], []>} : vector<8x32xf32>, vector<32x64xf32>, vector<8x64xf32> -> vector<8x64xf32>
    %cst_34 = arith.constant dense<0xFF800000> : vector<8xf32>
    %63 = vector.multi_reduction <maximumf>, %62, %cst_34 [1] : vector<8x64xf32> to vector<8xf32>
    %64 = vector.shape_cast %63 : vector<8xf32> to vector<8x1xf32>
    %65 = vector.broadcast %64 : vector<8x1xf32> to vector<8x64xf32>
    %66 = arith.cmpf oeq, %62, %65 : vector<8x64xf32>
    %c64_i32 = arith.constant 64 : i32
    %67 = vector.broadcast %c64_i32 : i32 to vector<8x64xi32>
    %68 = arith.select %66, %17, %67 : vector<8x64xi1>, vector<8x64xi32>
    %cst_35 = arith.constant dense<2147483647> : vector<8xi32>
    %69 = vector.multi_reduction <minsi>, %68, %cst_35 [1] : vector<8x64xi32> to vector<8xi32>
    %70 = vector.shape_cast %69 : vector<8xi32> to vector<8x1xi32>
    %71 = vector.broadcast %70 : vector<8x1xi32> to vector<8x64xi32>
    %72 = arith.cmpi eq, %71, %17 : vector<8x64xi32>
    %73 = arith.extui %72 : vector<8x64xi1> to vector<8x64xi32>
    %74 = arith.sitofp %73 : vector<8x64xi32> to vector<8x64xf32>
    %cst_36 = arith.constant dense<0.000000e+00> : vector<8x128xf32>
    %75 = tpu.matmul %74, %8, %cst_36 {dimension_numbers = #tpu.dot_dimension_numbers<[1], [0], [0], [1], [0, 0, 1, 1], [], []>} : vector<8x64xf32>, vector<64x128xf32>, vector<8x128xf32> -> vector<8x128xf32>
    %76 = vector.broadcast %64 : vector<8x1xf32> to vector<8x64xf32>
    %77 = arith.subf %62, %76 : vector<8x64xf32>
    %78 = math.exp %77 : vector<8x64xf32>
    %cst_37 = arith.constant dense<0.000000e+00> : vector<8xf32>
    %79 = vector.multi_reduction <add>, %78, %cst_37 [1] : vector<8x64xf32> to vector<8xf32>
    %80 = vector.shape_cast %79 : vector<8xf32> to vector<8x1xf32>
    %81 = math.log %80 : vector<8x1xf32>
    %82 = vector.broadcast %64 : vector<8x1xf32> to vector<8x64xf32>
    %83 = arith.subf %62, %82 : vector<8x64xf32>
    %84 = vector.broadcast %81 : vector<8x1xf32> to vector<8x64xf32>
    %85 = arith.subf %83, %84 : vector<8x64xf32>
    %cst_38 = arith.constant dense<0.000000e+00> : vector<8x128xf32>
    %86 = tpu.matmul %61, %13, %cst_38 {dimension_numbers = #tpu.dot_dimension_numbers<[1], [0], [0], [1], [0, 0, 1, 1], [], []>} : vector<8x32xf32>, vector<32x128xf32>, vector<8x128xf32> -> vector<8x128xf32>
    %87 = arith.addf %86, %15 : vector<8x128xf32>
    %cst_39 = arith.constant dense<0.000000e+00> : vector<8x128xf32>
    %88 = tpu.matmul %41, %9, %cst_39 {dimension_numbers = #tpu.dot_dimension_numbers<[1], [0], [0], [1], [0, 0, 1, 1], [], []>} : vector<8x32xf32>, vector<32x128xf32>, vector<8x128xf32> -> vector<8x128xf32>
    %89 = arith.addf %19, %88 : vector<8x128xf32>
    %90 = arith.negf %89 : vector<8x128xf32>
    %91 = math.exp %90 : vector<8x128xf32>
    %cst_40 = arith.constant 1.000000e+00 : f32
    %92 = vector.broadcast %cst_40 : f32 to vector<8x128xf32>
    %93 = arith.addf %92, %91 : vector<8x128xf32>
    %94 = arith.divf %92, %93 : vector<8x128xf32>
    %95 = vector.extract_strided_slice %94 {offsets = [0, 0], sizes = [8, 32], strides = [1, 1]} : vector<8x128xf32> to vector<8x32xf32>
    %96 = vector.extract_strided_slice %94 {offsets = [0, 32], sizes = [8, 32], strides = [1, 1]} : vector<8x128xf32> to vector<8x32xf32>
    %97 = vector.extract_strided_slice %94 {offsets = [0, 64], sizes = [8, 32], strides = [1, 1]} : vector<8x128xf32> to vector<8x32xf32>
    %cst_41 = arith.constant 2.000000e+00 : f32
    %98 = vector.broadcast %cst_41 : f32 to vector<8x32xf32>
    %99 = arith.mulf %98, %97 : vector<8x32xf32>
    %cst_42 = arith.constant 1.000000e+00 : f32
    %100 = vector.broadcast %cst_42 : f32 to vector<8x32xf32>
    %101 = arith.subf %99, %100 : vector<8x32xf32>
    %102 = vector.extract_strided_slice %94 {offsets = [0, 96], sizes = [8, 32], strides = [1, 1]} : vector<8x128xf32> to vector<8x32xf32>
    %103 = arith.mulf %96, %39 : vector<8x32xf32>
    %104 = arith.mulf %95, %101 : vector<8x32xf32>
    %105 = arith.addf %103, %104 : vector<8x32xf32>
    %106 = math.tanh %105 : vector<8x32xf32>
    %107 = arith.mulf %102, %106 : vector<8x32xf32>
    %cst_43 = arith.constant dense<0.000000e+00> : vector<8x128xf32>
    %108 = tpu.matmul %107, %11, %cst_43 {dimension_numbers = #tpu.dot_dimension_numbers<[1], [0], [0], [1], [0, 0, 1, 1], [], []>} : vector<8x32xf32>, vector<32x128xf32>, vector<8x128xf32> -> vector<8x128xf32>
    %109 = arith.addf %87, %108 : vector<8x128xf32>
    %110 = arith.negf %109 : vector<8x128xf32>
    %111 = math.exp %110 : vector<8x128xf32>
    %cst_44 = arith.constant 1.000000e+00 : f32
    %112 = vector.broadcast %cst_44 : f32 to vector<8x128xf32>
    %113 = arith.addf %112, %111 : vector<8x128xf32>
    %114 = arith.divf %112, %113 : vector<8x128xf32>
    %115 = vector.extract_strided_slice %114 {offsets = [0, 0], sizes = [8, 32], strides = [1, 1]} : vector<8x128xf32> to vector<8x32xf32>
    %116 = vector.extract_strided_slice %114 {offsets = [0, 32], sizes = [8, 32], strides = [1, 1]} : vector<8x128xf32> to vector<8x32xf32>
    %117 = vector.extract_strided_slice %114 {offsets = [0, 64], sizes = [8, 32], strides = [1, 1]} : vector<8x128xf32> to vector<8x32xf32>
    %cst_45 = arith.constant 2.000000e+00 : f32
    %118 = vector.broadcast %cst_45 : f32 to vector<8x32xf32>
    %119 = arith.mulf %118, %117 : vector<8x32xf32>
    %cst_46 = arith.constant 1.000000e+00 : f32
    %120 = vector.broadcast %cst_46 : f32 to vector<8x32xf32>
    %121 = arith.subf %119, %120 : vector<8x32xf32>
    %122 = vector.extract_strided_slice %114 {offsets = [0, 96], sizes = [8, 32], strides = [1, 1]} : vector<8x128xf32> to vector<8x32xf32>
    %123 = arith.mulf %116, %59 : vector<8x32xf32>
    %124 = arith.mulf %115, %121 : vector<8x32xf32>
    %125 = arith.addf %123, %124 : vector<8x32xf32>
    %126 = math.tanh %125 : vector<8x32xf32>
    %127 = arith.mulf %122, %126 : vector<8x32xf32>
    %cst_47 = arith.constant dense<0.000000e+00> : vector<8x128xf32>
    %128 = tpu.matmul %127, %13, %cst_47 {dimension_numbers = #tpu.dot_dimension_numbers<[1], [0], [0], [1], [0, 0, 1, 1], [], []>} : vector<8x32xf32>, vector<32x128xf32>, vector<8x128xf32> -> vector<8x128xf32>
    %129 = arith.addf %128, %15 : vector<8x128xf32>
    %cst_48 = arith.constant dense<0.000000e+00> : vector<8x128xf32>
    %130 = tpu.matmul %107, %9, %cst_48 {dimension_numbers = #tpu.dot_dimension_numbers<[1], [0], [0], [1], [0, 0, 1, 1], [], []>} : vector<8x32xf32>, vector<32x128xf32>, vector<8x128xf32> -> vector<8x128xf32>
    %131 = arith.addf %75, %130 : vector<8x128xf32>
    %132 = arith.negf %131 : vector<8x128xf32>
    %133 = math.exp %132 : vector<8x128xf32>
    %cst_49 = arith.constant 1.000000e+00 : f32
    %134 = vector.broadcast %cst_49 : f32 to vector<8x128xf32>
    %135 = arith.addf %134, %133 : vector<8x128xf32>
    %136 = arith.divf %134, %135 : vector<8x128xf32>
    %137 = vector.extract_strided_slice %136 {offsets = [0, 0], sizes = [8, 32], strides = [1, 1]} : vector<8x128xf32> to vector<8x32xf32>
    %138 = vector.extract_strided_slice %136 {offsets = [0, 32], sizes = [8, 32], strides = [1, 1]} : vector<8x128xf32> to vector<8x32xf32>
    %139 = vector.extract_strided_slice %136 {offsets = [0, 64], sizes = [8, 32], strides = [1, 1]} : vector<8x128xf32> to vector<8x32xf32>
    %cst_50 = arith.constant 2.000000e+00 : f32
    %140 = vector.broadcast %cst_50 : f32 to vector<8x32xf32>
    %141 = arith.mulf %140, %139 : vector<8x32xf32>
    %cst_51 = arith.constant 1.000000e+00 : f32
    %142 = vector.broadcast %cst_51 : f32 to vector<8x32xf32>
    %143 = arith.subf %141, %142 : vector<8x32xf32>
    %144 = vector.extract_strided_slice %136 {offsets = [0, 96], sizes = [8, 32], strides = [1, 1]} : vector<8x128xf32> to vector<8x32xf32>
    %145 = arith.mulf %138, %105 : vector<8x32xf32>
    %146 = arith.mulf %137, %143 : vector<8x32xf32>
    %147 = arith.addf %145, %146 : vector<8x32xf32>
    %148 = math.tanh %147 : vector<8x32xf32>
    %149 = arith.mulf %144, %148 : vector<8x32xf32>
    %cst_52 = arith.constant dense<0.000000e+00> : vector<8x128xf32>
    %150 = tpu.matmul %149, %11, %cst_52 {dimension_numbers = #tpu.dot_dimension_numbers<[1], [0], [0], [1], [0, 0, 1, 1], [], []>} : vector<8x32xf32>, vector<32x128xf32>, vector<8x128xf32> -> vector<8x128xf32>
    %151 = arith.addf %129, %150 : vector<8x128xf32>
    %152 = arith.negf %151 : vector<8x128xf32>
    %153 = math.exp %152 : vector<8x128xf32>
    %cst_53 = arith.constant 1.000000e+00 : f32
    %154 = vector.broadcast %cst_53 : f32 to vector<8x128xf32>
    %155 = arith.addf %154, %153 : vector<8x128xf32>
    %156 = arith.divf %154, %155 : vector<8x128xf32>
    %157 = vector.extract_strided_slice %156 {offsets = [0, 0], sizes = [8, 32], strides = [1, 1]} : vector<8x128xf32> to vector<8x32xf32>
    %158 = vector.extract_strided_slice %156 {offsets = [0, 32], sizes = [8, 32], strides = [1, 1]} : vector<8x128xf32> to vector<8x32xf32>
    %159 = vector.extract_strided_slice %156 {offsets = [0, 64], sizes = [8, 32], strides = [1, 1]} : vector<8x128xf32> to vector<8x32xf32>
    %cst_54 = arith.constant 2.000000e+00 : f32
    %160 = vector.broadcast %cst_54 : f32 to vector<8x32xf32>
    %161 = arith.mulf %160, %159 : vector<8x32xf32>
    %cst_55 = arith.constant 1.000000e+00 : f32
    %162 = vector.broadcast %cst_55 : f32 to vector<8x32xf32>
    %163 = arith.subf %161, %162 : vector<8x32xf32>
    %164 = vector.extract_strided_slice %156 {offsets = [0, 96], sizes = [8, 32], strides = [1, 1]} : vector<8x128xf32> to vector<8x32xf32>
    %165 = arith.mulf %158, %125 : vector<8x32xf32>
    %166 = arith.mulf %157, %163 : vector<8x32xf32>
    %167 = arith.addf %165, %166 : vector<8x32xf32>
    %168 = math.tanh %167 : vector<8x32xf32>
    %169 = arith.mulf %164, %168 : vector<8x32xf32>
    %cst_56 = arith.constant dense<0.000000e+00> : vector<8x64xf32>
    %170 = tpu.matmul %169, %16, %cst_56 {dimension_numbers = #tpu.dot_dimension_numbers<[1], [0], [0], [1], [0, 0, 1, 1], [], []>} : vector<8x32xf32>, vector<32x64xf32>, vector<8x64xf32> -> vector<8x64xf32>
    %cst_57 = arith.constant dense<0xFF800000> : vector<8xf32>
    %171 = vector.multi_reduction <maximumf>, %170, %cst_57 [1] : vector<8x64xf32> to vector<8xf32>
    %172 = vector.shape_cast %171 : vector<8xf32> to vector<8x1xf32>
    %173 = vector.broadcast %172 : vector<8x1xf32> to vector<8x64xf32>
    %174 = arith.cmpf oeq, %170, %173 : vector<8x64xf32>
    %c64_i32_58 = arith.constant 64 : i32
    %175 = vector.broadcast %c64_i32_58 : i32 to vector<8x64xi32>
    %176 = arith.select %174, %17, %175 : vector<8x64xi1>, vector<8x64xi32>
    %cst_59 = arith.constant dense<2147483647> : vector<8xi32>
    %177 = vector.multi_reduction <minsi>, %176, %cst_59 [1] : vector<8x64xi32> to vector<8xi32>
    %178 = vector.shape_cast %177 : vector<8xi32> to vector<8x1xi32>
    %179 = vector.broadcast %178 : vector<8x1xi32> to vector<8x64xi32>
    %180 = arith.cmpi eq, %179, %17 : vector<8x64xi32>
    %181 = arith.extui %180 : vector<8x64xi1> to vector<8x64xi32>
    %182 = arith.sitofp %181 : vector<8x64xi32> to vector<8x64xf32>
    %cst_60 = arith.constant dense<0.000000e+00> : vector<8x128xf32>
    %183 = tpu.matmul %182, %8, %cst_60 {dimension_numbers = #tpu.dot_dimension_numbers<[1], [0], [0], [1], [0, 0, 1, 1], [], []>} : vector<8x64xf32>, vector<64x128xf32>, vector<8x128xf32> -> vector<8x128xf32>
    %184 = vector.broadcast %172 : vector<8x1xf32> to vector<8x64xf32>
    %185 = arith.subf %170, %184 : vector<8x64xf32>
    %186 = math.exp %185 : vector<8x64xf32>
    %cst_61 = arith.constant dense<0.000000e+00> : vector<8xf32>
    %187 = vector.multi_reduction <add>, %186, %cst_61 [1] : vector<8x64xf32> to vector<8xf32>
    %188 = vector.shape_cast %187 : vector<8xf32> to vector<8x1xf32>
    %189 = math.log %188 : vector<8x1xf32>
    %190 = vector.broadcast %172 : vector<8x1xf32> to vector<8x64xf32>
    %191 = arith.subf %170, %190 : vector<8x64xf32>
    %192 = vector.broadcast %189 : vector<8x1xf32> to vector<8x64xf32>
    %193 = arith.subf %191, %192 : vector<8x64xf32>
    %cst_62 = arith.constant dense<0.000000e+00> : vector<8x128xf32>
    %194 = tpu.matmul %169, %13, %cst_62 {dimension_numbers = #tpu.dot_dimension_numbers<[1], [0], [0], [1], [0, 0, 1, 1], [], []>} : vector<8x32xf32>, vector<32x128xf32>, vector<8x128xf32> -> vector<8x128xf32>
    %195 = arith.addf %194, %15 : vector<8x128xf32>
    %cst_63 = arith.constant dense<0.000000e+00> : vector<8x128xf32>
    %196 = tpu.matmul %149, %9, %cst_63 {dimension_numbers = #tpu.dot_dimension_numbers<[1], [0], [0], [1], [0, 0, 1, 1], [], []>} : vector<8x32xf32>, vector<32x128xf32>, vector<8x128xf32> -> vector<8x128xf32>
    %197 = arith.addf %19, %196 : vector<8x128xf32>
    %198 = arith.negf %197 : vector<8x128xf32>
    %199 = math.exp %198 : vector<8x128xf32>
    %cst_64 = arith.constant 1.000000e+00 : f32
    %200 = vector.broadcast %cst_64 : f32 to vector<8x128xf32>
    %201 = arith.addf %200, %199 : vector<8x128xf32>
    %202 = arith.divf %200, %201 : vector<8x128xf32>
    %203 = vector.extract_strided_slice %202 {offsets = [0, 0], sizes = [8, 32], strides = [1, 1]} : vector<8x128xf32> to vector<8x32xf32>
    %204 = vector.extract_strided_slice %202 {offsets = [0, 32], sizes = [8, 32], strides = [1, 1]} : vector<8x128xf32> to vector<8x32xf32>
    %205 = vector.extract_strided_slice %202 {offsets = [0, 64], sizes = [8, 32], strides = [1, 1]} : vector<8x128xf32> to vector<8x32xf32>
    %cst_65 = arith.constant 2.000000e+00 : f32
    %206 = vector.broadcast %cst_65 : f32 to vector<8x32xf32>
    %207 = arith.mulf %206, %205 : vector<8x32xf32>
    %cst_66 = arith.constant 1.000000e+00 : f32
    %208 = vector.broadcast %cst_66 : f32 to vector<8x32xf32>
    %209 = arith.subf %207, %208 : vector<8x32xf32>
    %210 = vector.extract_strided_slice %202 {offsets = [0, 96], sizes = [8, 32], strides = [1, 1]} : vector<8x128xf32> to vector<8x32xf32>
    %211 = arith.mulf %204, %147 : vector<8x32xf32>
    %212 = arith.mulf %203, %209 : vector<8x32xf32>
    %213 = arith.addf %211, %212 : vector<8x32xf32>
    %214 = math.tanh %213 : vector<8x32xf32>
    %215 = arith.mulf %210, %214 : vector<8x32xf32>
    %cst_67 = arith.constant dense<0.000000e+00> : vector<8x128xf32>
    %216 = tpu.matmul %215, %11, %cst_67 {dimension_numbers = #tpu.dot_dimension_numbers<[1], [0], [0], [1], [0, 0, 1, 1], [], []>} : vector<8x32xf32>, vector<32x128xf32>, vector<8x128xf32> -> vector<8x128xf32>
    %217 = arith.addf %195, %216 : vector<8x128xf32>
    %218 = arith.negf %217 : vector<8x128xf32>
    %219 = math.exp %218 : vector<8x128xf32>
    %cst_68 = arith.constant 1.000000e+00 : f32
    %220 = vector.broadcast %cst_68 : f32 to vector<8x128xf32>
    %221 = arith.addf %220, %219 : vector<8x128xf32>
    %222 = arith.divf %220, %221 : vector<8x128xf32>
    %223 = vector.extract_strided_slice %222 {offsets = [0, 0], sizes = [8, 32], strides = [1, 1]} : vector<8x128xf32> to vector<8x32xf32>
    %224 = vector.extract_strided_slice %222 {offsets = [0, 32], sizes = [8, 32], strides = [1, 1]} : vector<8x128xf32> to vector<8x32xf32>
    %225 = vector.extract_strided_slice %222 {offsets = [0, 64], sizes = [8, 32], strides = [1, 1]} : vector<8x128xf32> to vector<8x32xf32>
    %cst_69 = arith.constant 2.000000e+00 : f32
    %226 = vector.broadcast %cst_69 : f32 to vector<8x32xf32>
    %227 = arith.mulf %226, %225 : vector<8x32xf32>
    %cst_70 = arith.constant 1.000000e+00 : f32
    %228 = vector.broadcast %cst_70 : f32 to vector<8x32xf32>
    %229 = arith.subf %227, %228 : vector<8x32xf32>
    %230 = vector.extract_strided_slice %222 {offsets = [0, 96], sizes = [8, 32], strides = [1, 1]} : vector<8x128xf32> to vector<8x32xf32>
    %231 = arith.mulf %224, %167 : vector<8x32xf32>
    %232 = arith.mulf %223, %229 : vector<8x32xf32>
    %233 = arith.addf %231, %232 : vector<8x32xf32>
    %234 = math.tanh %233 : vector<8x32xf32>
    %235 = arith.mulf %230, %234 : vector<8x32xf32>
    %cst_71 = arith.constant dense<0.000000e+00> : vector<8x128xf32>
    %236 = tpu.matmul %235, %13, %cst_71 {dimension_numbers = #tpu.dot_dimension_numbers<[1], [0], [0], [1], [0, 0, 1, 1], [], []>} : vector<8x32xf32>, vector<32x128xf32>, vector<8x128xf32> -> vector<8x128xf32>
    %237 = arith.addf %236, %15 : vector<8x128xf32>
    %cst_72 = arith.constant dense<0.000000e+00> : vector<8x128xf32>
    %238 = tpu.matmul %215, %9, %cst_72 {dimension_numbers = #tpu.dot_dimension_numbers<[1], [0], [0], [1], [0, 0, 1, 1], [], []>} : vector<8x32xf32>, vector<32x128xf32>, vector<8x128xf32> -> vector<8x128xf32>
    %239 = arith.addf %75, %238 : vector<8x128xf32>
    %240 = arith.negf %239 : vector<8x128xf32>
    %241 = math.exp %240 : vector<8x128xf32>
    %cst_73 = arith.constant 1.000000e+00 : f32
    %242 = vector.broadcast %cst_73 : f32 to vector<8x128xf32>
    %243 = arith.addf %242, %241 : vector<8x128xf32>
    %244 = arith.divf %242, %243 : vector<8x128xf32>
    %245 = vector.extract_strided_slice %244 {offsets = [0, 0], sizes = [8, 32], strides = [1, 1]} : vector<8x128xf32> to vector<8x32xf32>
    %246 = vector.extract_strided_slice %244 {offsets = [0, 32], sizes = [8, 32], strides = [1, 1]} : vector<8x128xf32> to vector<8x32xf32>
    %247 = vector.extract_strided_slice %244 {offsets = [0, 64], sizes = [8, 32], strides = [1, 1]} : vector<8x128xf32> to vector<8x32xf32>
    %cst_74 = arith.constant 2.000000e+00 : f32
    %248 = vector.broadcast %cst_74 : f32 to vector<8x32xf32>
    %249 = arith.mulf %248, %247 : vector<8x32xf32>
    %cst_75 = arith.constant 1.000000e+00 : f32
    %250 = vector.broadcast %cst_75 : f32 to vector<8x32xf32>
    %251 = arith.subf %249, %250 : vector<8x32xf32>
    %252 = vector.extract_strided_slice %244 {offsets = [0, 96], sizes = [8, 32], strides = [1, 1]} : vector<8x128xf32> to vector<8x32xf32>
    %253 = arith.mulf %246, %213 : vector<8x32xf32>
    %254 = arith.mulf %245, %251 : vector<8x32xf32>
    %255 = arith.addf %253, %254 : vector<8x32xf32>
    %256 = math.tanh %255 : vector<8x32xf32>
    %257 = arith.mulf %252, %256 : vector<8x32xf32>
    %cst_76 = arith.constant dense<0.000000e+00> : vector<8x128xf32>
    %258 = tpu.matmul %257, %11, %cst_76 {dimension_numbers = #tpu.dot_dimension_numbers<[1], [0], [0], [1], [0, 0, 1, 1], [], []>} : vector<8x32xf32>, vector<32x128xf32>, vector<8x128xf32> -> vector<8x128xf32>
    %259 = arith.addf %237, %258 : vector<8x128xf32>
    %260 = arith.negf %259 : vector<8x128xf32>
    %261 = math.exp %260 : vector<8x128xf32>
    %cst_77 = arith.constant 1.000000e+00 : f32
    %262 = vector.broadcast %cst_77 : f32 to vector<8x128xf32>
    %263 = arith.addf %262, %261 : vector<8x128xf32>
    %264 = arith.divf %262, %263 : vector<8x128xf32>
    %265 = vector.extract_strided_slice %264 {offsets = [0, 0], sizes = [8, 32], strides = [1, 1]} : vector<8x128xf32> to vector<8x32xf32>
    %266 = vector.extract_strided_slice %264 {offsets = [0, 32], sizes = [8, 32], strides = [1, 1]} : vector<8x128xf32> to vector<8x32xf32>
    %267 = vector.extract_strided_slice %264 {offsets = [0, 64], sizes = [8, 32], strides = [1, 1]} : vector<8x128xf32> to vector<8x32xf32>
    %cst_78 = arith.constant 2.000000e+00 : f32
    %268 = vector.broadcast %cst_78 : f32 to vector<8x32xf32>
    %269 = arith.mulf %268, %267 : vector<8x32xf32>
    %cst_79 = arith.constant 1.000000e+00 : f32
    %270 = vector.broadcast %cst_79 : f32 to vector<8x32xf32>
    %271 = arith.subf %269, %270 : vector<8x32xf32>
    %272 = vector.extract_strided_slice %264 {offsets = [0, 96], sizes = [8, 32], strides = [1, 1]} : vector<8x128xf32> to vector<8x32xf32>
    %273 = arith.mulf %266, %233 : vector<8x32xf32>
    %274 = arith.mulf %265, %271 : vector<8x32xf32>
    %275 = arith.addf %273, %274 : vector<8x32xf32>
    %276 = math.tanh %275 : vector<8x32xf32>
    %277 = arith.mulf %272, %276 : vector<8x32xf32>
    %cst_80 = arith.constant dense<0.000000e+00> : vector<8x128xf32>
    %278 = tpu.matmul %277, %13, %cst_80 {dimension_numbers = #tpu.dot_dimension_numbers<[1], [0], [0], [1], [0, 0, 1, 1], [], []>} : vector<8x32xf32>, vector<32x128xf32>, vector<8x128xf32> -> vector<8x128xf32>
    %279 = arith.addf %278, %15 : vector<8x128xf32>
    %cst_81 = arith.constant dense<0.000000e+00> : vector<8x128xf32>
    %280 = tpu.matmul %257, %9, %cst_81 {dimension_numbers = #tpu.dot_dimension_numbers<[1], [0], [0], [1], [0, 0, 1, 1], [], []>} : vector<8x32xf32>, vector<32x128xf32>, vector<8x128xf32> -> vector<8x128xf32>
    %281 = arith.addf %183, %280 : vector<8x128xf32>
    %282 = arith.negf %281 : vector<8x128xf32>
    %283 = math.exp %282 : vector<8x128xf32>
    %cst_82 = arith.constant 1.000000e+00 : f32
    %284 = vector.broadcast %cst_82 : f32 to vector<8x128xf32>
    %285 = arith.addf %284, %283 : vector<8x128xf32>
    %286 = arith.divf %284, %285 : vector<8x128xf32>
    %287 = vector.extract_strided_slice %286 {offsets = [0, 0], sizes = [8, 32], strides = [1, 1]} : vector<8x128xf32> to vector<8x32xf32>
    %288 = vector.extract_strided_slice %286 {offsets = [0, 32], sizes = [8, 32], strides = [1, 1]} : vector<8x128xf32> to vector<8x32xf32>
    %289 = vector.extract_strided_slice %286 {offsets = [0, 64], sizes = [8, 32], strides = [1, 1]} : vector<8x128xf32> to vector<8x32xf32>
    %cst_83 = arith.constant 2.000000e+00 : f32
    %290 = vector.broadcast %cst_83 : f32 to vector<8x32xf32>
    %291 = arith.mulf %290, %289 : vector<8x32xf32>
    %cst_84 = arith.constant 1.000000e+00 : f32
    %292 = vector.broadcast %cst_84 : f32 to vector<8x32xf32>
    %293 = arith.subf %291, %292 : vector<8x32xf32>
    %294 = vector.extract_strided_slice %286 {offsets = [0, 96], sizes = [8, 32], strides = [1, 1]} : vector<8x128xf32> to vector<8x32xf32>
    %295 = arith.mulf %288, %255 : vector<8x32xf32>
    %296 = arith.mulf %287, %293 : vector<8x32xf32>
    %297 = arith.addf %295, %296 : vector<8x32xf32>
    %298 = math.tanh %297 : vector<8x32xf32>
    %299 = arith.mulf %294, %298 : vector<8x32xf32>
    %cst_85 = arith.constant dense<0.000000e+00> : vector<8x128xf32>
    %300 = tpu.matmul %299, %11, %cst_85 {dimension_numbers = #tpu.dot_dimension_numbers<[1], [0], [0], [1], [0, 0, 1, 1], [], []>} : vector<8x32xf32>, vector<32x128xf32>, vector<8x128xf32> -> vector<8x128xf32>
    %301 = arith.addf %279, %300 : vector<8x128xf32>
    %302 = arith.negf %301 : vector<8x128xf32>
    %303 = math.exp %302 : vector<8x128xf32>
    %cst_86 = arith.constant 1.000000e+00 : f32
    %304 = vector.broadcast %cst_86 : f32 to vector<8x128xf32>
    %305 = arith.addf %304, %303 : vector<8x128xf32>
    %306 = arith.divf %304, %305 : vector<8x128xf32>
    %307 = vector.extract_strided_slice %306 {offsets = [0, 0], sizes = [8, 32], strides = [1, 1]} : vector<8x128xf32> to vector<8x32xf32>
    %308 = vector.extract_strided_slice %306 {offsets = [0, 32], sizes = [8, 32], strides = [1, 1]} : vector<8x128xf32> to vector<8x32xf32>
    %309 = vector.extract_strided_slice %306 {offsets = [0, 64], sizes = [8, 32], strides = [1, 1]} : vector<8x128xf32> to vector<8x32xf32>
    %cst_87 = arith.constant 2.000000e+00 : f32
    %310 = vector.broadcast %cst_87 : f32 to vector<8x32xf32>
    %311 = arith.mulf %310, %309 : vector<8x32xf32>
    %cst_88 = arith.constant 1.000000e+00 : f32
    %312 = vector.broadcast %cst_88 : f32 to vector<8x32xf32>
    %313 = arith.subf %311, %312 : vector<8x32xf32>
    %314 = vector.extract_strided_slice %306 {offsets = [0, 96], sizes = [8, 32], strides = [1, 1]} : vector<8x128xf32> to vector<8x32xf32>
    %315 = arith.mulf %308, %275 : vector<8x32xf32>
    %316 = arith.mulf %307, %313 : vector<8x32xf32>
    %317 = arith.addf %315, %316 : vector<8x32xf32>
    %318 = math.tanh %317 : vector<8x32xf32>
    %319 = arith.mulf %314, %318 : vector<8x32xf32>
    %cst_89 = arith.constant dense<0.000000e+00> : vector<8x64xf32>
    %320 = tpu.matmul %319, %16, %cst_89 {dimension_numbers = #tpu.dot_dimension_numbers<[1], [0], [0], [1], [0, 0, 1, 1], [], []>} : vector<8x32xf32>, vector<32x64xf32>, vector<8x64xf32> -> vector<8x64xf32>
    %cst_90 = arith.constant dense<0xFF800000> : vector<8xf32>
    %321 = vector.multi_reduction <maximumf>, %320, %cst_90 [1] : vector<8x64xf32> to vector<8xf32>
    %322 = vector.shape_cast %321 : vector<8xf32> to vector<8x1xf32>
    %323 = vector.broadcast %322 : vector<8x1xf32> to vector<8x64xf32>
    %324 = arith.cmpf oeq, %320, %323 : vector<8x64xf32>
    %c64_i32_91 = arith.constant 64 : i32
    %325 = vector.broadcast %c64_i32_91 : i32 to vector<8x64xi32>
    %326 = arith.select %324, %17, %325 : vector<8x64xi1>, vector<8x64xi32>
    %cst_92 = arith.constant dense<2147483647> : vector<8xi32>
    %327 = vector.multi_reduction <minsi>, %326, %cst_92 [1] : vector<8x64xi32> to vector<8xi32>
    %328 = vector.shape_cast %327 : vector<8xi32> to vector<8x1xi32>
    %329 = vector.broadcast %328 : vector<8x1xi32> to vector<8x64xi32>
    %330 = arith.cmpi eq, %329, %17 : vector<8x64xi32>
    %331 = arith.extui %330 : vector<8x64xi1> to vector<8x64xi32>
    %332 = arith.sitofp %331 : vector<8x64xi32> to vector<8x64xf32>
    %cst_93 = arith.constant dense<0.000000e+00> : vector<8x128xf32>
    %333 = tpu.matmul %332, %8, %cst_93 {dimension_numbers = #tpu.dot_dimension_numbers<[1], [0], [0], [1], [0, 0, 1, 1], [], []>} : vector<8x64xf32>, vector<64x128xf32>, vector<8x128xf32> -> vector<8x128xf32>
    %334 = vector.broadcast %322 : vector<8x1xf32> to vector<8x64xf32>
    %335 = arith.subf %320, %334 : vector<8x64xf32>
    %336 = math.exp %335 : vector<8x64xf32>
    %cst_94 = arith.constant dense<0.000000e+00> : vector<8xf32>
    %337 = vector.multi_reduction <add>, %336, %cst_94 [1] : vector<8x64xf32> to vector<8xf32>
    %338 = vector.shape_cast %337 : vector<8xf32> to vector<8x1xf32>
    %339 = math.log %338 : vector<8x1xf32>
    %340 = vector.broadcast %322 : vector<8x1xf32> to vector<8x64xf32>
    %341 = arith.subf %320, %340 : vector<8x64xf32>
    %342 = vector.broadcast %339 : vector<8x1xf32> to vector<8x64xf32>
    %343 = arith.subf %341, %342 : vector<8x64xf32>
    %cst_95 = arith.constant dense<0.000000e+00> : vector<8x128xf32>
    %344 = tpu.matmul %319, %13, %cst_95 {dimension_numbers = #tpu.dot_dimension_numbers<[1], [0], [0], [1], [0, 0, 1, 1], [], []>} : vector<8x32xf32>, vector<32x128xf32>, vector<8x128xf32> -> vector<8x128xf32>
    %345 = arith.addf %344, %15 : vector<8x128xf32>
    %cst_96 = arith.constant dense<0.000000e+00> : vector<8x128xf32>
    %346 = tpu.matmul %299, %9, %cst_96 {dimension_numbers = #tpu.dot_dimension_numbers<[1], [0], [0], [1], [0, 0, 1, 1], [], []>} : vector<8x32xf32>, vector<32x128xf32>, vector<8x128xf32> -> vector<8x128xf32>
    %347 = arith.addf %19, %346 : vector<8x128xf32>
    %348 = arith.negf %347 : vector<8x128xf32>
    %349 = math.exp %348 : vector<8x128xf32>
    %cst_97 = arith.constant 1.000000e+00 : f32
    %350 = vector.broadcast %cst_97 : f32 to vector<8x128xf32>
    %351 = arith.addf %350, %349 : vector<8x128xf32>
    %352 = arith.divf %350, %351 : vector<8x128xf32>
    %353 = vector.extract_strided_slice %352 {offsets = [0, 0], sizes = [8, 32], strides = [1, 1]} : vector<8x128xf32> to vector<8x32xf32>
    %354 = vector.extract_strided_slice %352 {offsets = [0, 32], sizes = [8, 32], strides = [1, 1]} : vector<8x128xf32> to vector<8x32xf32>
    %355 = vector.extract_strided_slice %352 {offsets = [0, 64], sizes = [8, 32], strides = [1, 1]} : vector<8x128xf32> to vector<8x32xf32>
    %cst_98 = arith.constant 2.000000e+00 : f32
    %356 = vector.broadcast %cst_98 : f32 to vector<8x32xf32>
    %357 = arith.mulf %356, %355 : vector<8x32xf32>
    %cst_99 = arith.constant 1.000000e+00 : f32
    %358 = vector.broadcast %cst_99 : f32 to vector<8x32xf32>
    %359 = arith.subf %357, %358 : vector<8x32xf32>
    %360 = vector.extract_strided_slice %352 {offsets = [0, 96], sizes = [8, 32], strides = [1, 1]} : vector<8x128xf32> to vector<8x32xf32>
    %361 = arith.mulf %354, %297 : vector<8x32xf32>
    %362 = arith.mulf %353, %359 : vector<8x32xf32>
    %363 = arith.addf %361, %362 : vector<8x32xf32>
    %364 = math.tanh %363 : vector<8x32xf32>
    %365 = arith.mulf %360, %364 : vector<8x32xf32>
    %cst_100 = arith.constant dense<0.000000e+00> : vector<8x128xf32>
    %366 = tpu.matmul %365, %11, %cst_100 {dimension_numbers = #tpu.dot_dimension_numbers<[1], [0], [0], [1], [0, 0, 1, 1], [], []>} : vector<8x32xf32>, vector<32x128xf32>, vector<8x128xf32> -> vector<8x128xf32>
    %367 = arith.addf %345, %366 : vector<8x128xf32>
    %368 = arith.negf %367 : vector<8x128xf32>
    %369 = math.exp %368 : vector<8x128xf32>
    %cst_101 = arith.constant 1.000000e+00 : f32
    %370 = vector.broadcast %cst_101 : f32 to vector<8x128xf32>
    %371 = arith.addf %370, %369 : vector<8x128xf32>
    %372 = arith.divf %370, %371 : vector<8x128xf32>
    %373 = vector.extract_strided_slice %372 {offsets = [0, 0], sizes = [8, 32], strides = [1, 1]} : vector<8x128xf32> to vector<8x32xf32>
    %374 = vector.extract_strided_slice %372 {offsets = [0, 32], sizes = [8, 32], strides = [1, 1]} : vector<8x128xf32> to vector<8x32xf32>
    %375 = vector.extract_strided_slice %372 {offsets = [0, 64], sizes = [8, 32], strides = [1, 1]} : vector<8x128xf32> to vector<8x32xf32>
    %cst_102 = arith.constant 2.000000e+00 : f32
    %376 = vector.broadcast %cst_102 : f32 to vector<8x32xf32>
    %377 = arith.mulf %376, %375 : vector<8x32xf32>
    %cst_103 = arith.constant 1.000000e+00 : f32
    %378 = vector.broadcast %cst_103 : f32 to vector<8x32xf32>
    %379 = arith.subf %377, %378 : vector<8x32xf32>
    %380 = vector.extract_strided_slice %372 {offsets = [0, 96], sizes = [8, 32], strides = [1, 1]} : vector<8x128xf32> to vector<8x32xf32>
    %381 = arith.mulf %374, %317 : vector<8x32xf32>
    %382 = arith.mulf %373, %379 : vector<8x32xf32>
    %383 = arith.addf %381, %382 : vector<8x32xf32>
    %384 = math.tanh %383 : vector<8x32xf32>
    %385 = arith.mulf %380, %384 : vector<8x32xf32>
    %cst_104 = arith.constant dense<0.000000e+00> : vector<8x128xf32>
    %386 = tpu.matmul %385, %13, %cst_104 {dimension_numbers = #tpu.dot_dimension_numbers<[1], [0], [0], [1], [0, 0, 1, 1], [], []>} : vector<8x32xf32>, vector<32x128xf32>, vector<8x128xf32> -> vector<8x128xf32>
    %387 = arith.addf %386, %15 : vector<8x128xf32>
    %cst_105 = arith.constant dense<0.000000e+00> : vector<8x128xf32>
    %388 = tpu.matmul %365, %9, %cst_105 {dimension_numbers = #tpu.dot_dimension_numbers<[1], [0], [0], [1], [0, 0, 1, 1], [], []>} : vector<8x32xf32>, vector<32x128xf32>, vector<8x128xf32> -> vector<8x128xf32>
    %389 = arith.addf %75, %388 : vector<8x128xf32>
    %390 = arith.negf %389 : vector<8x128xf32>
    %391 = math.exp %390 : vector<8x128xf32>
    %cst_106 = arith.constant 1.000000e+00 : f32
    %392 = vector.broadcast %cst_106 : f32 to vector<8x128xf32>
    %393 = arith.addf %392, %391 : vector<8x128xf32>
    %394 = arith.divf %392, %393 : vector<8x128xf32>
    %395 = vector.extract_strided_slice %394 {offsets = [0, 0], sizes = [8, 32], strides = [1, 1]} : vector<8x128xf32> to vector<8x32xf32>
    %396 = vector.extract_strided_slice %394 {offsets = [0, 32], sizes = [8, 32], strides = [1, 1]} : vector<8x128xf32> to vector<8x32xf32>
    %397 = vector.extract_strided_slice %394 {offsets = [0, 64], sizes = [8, 32], strides = [1, 1]} : vector<8x128xf32> to vector<8x32xf32>
    %cst_107 = arith.constant 2.000000e+00 : f32
    %398 = vector.broadcast %cst_107 : f32 to vector<8x32xf32>
    %399 = arith.mulf %398, %397 : vector<8x32xf32>
    %cst_108 = arith.constant 1.000000e+00 : f32
    %400 = vector.broadcast %cst_108 : f32 to vector<8x32xf32>
    %401 = arith.subf %399, %400 : vector<8x32xf32>
    %402 = vector.extract_strided_slice %394 {offsets = [0, 96], sizes = [8, 32], strides = [1, 1]} : vector<8x128xf32> to vector<8x32xf32>
    %403 = arith.mulf %396, %363 : vector<8x32xf32>
    %404 = arith.mulf %395, %401 : vector<8x32xf32>
    %405 = arith.addf %403, %404 : vector<8x32xf32>
    %406 = math.tanh %405 : vector<8x32xf32>
    %407 = arith.mulf %402, %406 : vector<8x32xf32>
    %cst_109 = arith.constant dense<0.000000e+00> : vector<8x128xf32>
    %408 = tpu.matmul %407, %11, %cst_109 {dimension_numbers = #tpu.dot_dimension_numbers<[1], [0], [0], [1], [0, 0, 1, 1], [], []>} : vector<8x32xf32>, vector<32x128xf32>, vector<8x128xf32> -> vector<8x128xf32>
    %409 = arith.addf %387, %408 : vector<8x128xf32>
    %410 = arith.negf %409 : vector<8x128xf32>
    %411 = math.exp %410 : vector<8x128xf32>
    %cst_110 = arith.constant 1.000000e+00 : f32
    %412 = vector.broadcast %cst_110 : f32 to vector<8x128xf32>
    %413 = arith.addf %412, %411 : vector<8x128xf32>
    %414 = arith.divf %412, %413 : vector<8x128xf32>
    %415 = vector.extract_strided_slice %414 {offsets = [0, 0], sizes = [8, 32], strides = [1, 1]} : vector<8x128xf32> to vector<8x32xf32>
    %416 = vector.extract_strided_slice %414 {offsets = [0, 32], sizes = [8, 32], strides = [1, 1]} : vector<8x128xf32> to vector<8x32xf32>
    %417 = vector.extract_strided_slice %414 {offsets = [0, 64], sizes = [8, 32], strides = [1, 1]} : vector<8x128xf32> to vector<8x32xf32>
    %cst_111 = arith.constant 2.000000e+00 : f32
    %418 = vector.broadcast %cst_111 : f32 to vector<8x32xf32>
    %419 = arith.mulf %418, %417 : vector<8x32xf32>
    %cst_112 = arith.constant 1.000000e+00 : f32
    %420 = vector.broadcast %cst_112 : f32 to vector<8x32xf32>
    %421 = arith.subf %419, %420 : vector<8x32xf32>
    %422 = vector.extract_strided_slice %414 {offsets = [0, 96], sizes = [8, 32], strides = [1, 1]} : vector<8x128xf32> to vector<8x32xf32>
    %423 = arith.mulf %416, %383 : vector<8x32xf32>
    %424 = arith.mulf %415, %421 : vector<8x32xf32>
    %425 = arith.addf %423, %424 : vector<8x32xf32>
    %426 = math.tanh %425 : vector<8x32xf32>
    %427 = arith.mulf %422, %426 : vector<8x32xf32>
    %cst_113 = arith.constant dense<0.000000e+00> : vector<8x128xf32>
    %428 = tpu.matmul %427, %13, %cst_113 {dimension_numbers = #tpu.dot_dimension_numbers<[1], [0], [0], [1], [0, 0, 1, 1], [], []>} : vector<8x32xf32>, vector<32x128xf32>, vector<8x128xf32> -> vector<8x128xf32>
    %429 = arith.addf %428, %15 : vector<8x128xf32>
    %cst_114 = arith.constant dense<0.000000e+00> : vector<8x128xf32>
    %430 = tpu.matmul %407, %9, %cst_114 {dimension_numbers = #tpu.dot_dimension_numbers<[1], [0], [0], [1], [0, 0, 1, 1], [], []>} : vector<8x32xf32>, vector<32x128xf32>, vector<8x128xf32> -> vector<8x128xf32>
    %431 = arith.addf %183, %430 : vector<8x128xf32>
    %432 = arith.negf %431 : vector<8x128xf32>
    %433 = math.exp %432 : vector<8x128xf32>
    %cst_115 = arith.constant 1.000000e+00 : f32
    %434 = vector.broadcast %cst_115 : f32 to vector<8x128xf32>
    %435 = arith.addf %434, %433 : vector<8x128xf32>
    %436 = arith.divf %434, %435 : vector<8x128xf32>
    %437 = vector.extract_strided_slice %436 {offsets = [0, 0], sizes = [8, 32], strides = [1, 1]} : vector<8x128xf32> to vector<8x32xf32>
    %438 = vector.extract_strided_slice %436 {offsets = [0, 32], sizes = [8, 32], strides = [1, 1]} : vector<8x128xf32> to vector<8x32xf32>
    %439 = vector.extract_strided_slice %436 {offsets = [0, 64], sizes = [8, 32], strides = [1, 1]} : vector<8x128xf32> to vector<8x32xf32>
    %cst_116 = arith.constant 2.000000e+00 : f32
    %440 = vector.broadcast %cst_116 : f32 to vector<8x32xf32>
    %441 = arith.mulf %440, %439 : vector<8x32xf32>
    %cst_117 = arith.constant 1.000000e+00 : f32
    %442 = vector.broadcast %cst_117 : f32 to vector<8x32xf32>
    %443 = arith.subf %441, %442 : vector<8x32xf32>
    %444 = vector.extract_strided_slice %436 {offsets = [0, 96], sizes = [8, 32], strides = [1, 1]} : vector<8x128xf32> to vector<8x32xf32>
    %445 = arith.mulf %438, %405 : vector<8x32xf32>
    %446 = arith.mulf %437, %443 : vector<8x32xf32>
    %447 = arith.addf %445, %446 : vector<8x32xf32>
    %448 = math.tanh %447 : vector<8x32xf32>
    %449 = arith.mulf %444, %448 : vector<8x32xf32>
    %cst_118 = arith.constant dense<0.000000e+00> : vector<8x128xf32>
    %450 = tpu.matmul %449, %11, %cst_118 {dimension_numbers = #tpu.dot_dimension_numbers<[1], [0], [0], [1], [0, 0, 1, 1], [], []>} : vector<8x32xf32>, vector<32x128xf32>, vector<8x128xf32> -> vector<8x128xf32>
    %451 = arith.addf %429, %450 : vector<8x128xf32>
    %452 = arith.negf %451 : vector<8x128xf32>
    %453 = math.exp %452 : vector<8x128xf32>
    %cst_119 = arith.constant 1.000000e+00 : f32
    %454 = vector.broadcast %cst_119 : f32 to vector<8x128xf32>
    %455 = arith.addf %454, %453 : vector<8x128xf32>
    %456 = arith.divf %454, %455 : vector<8x128xf32>
    %457 = vector.extract_strided_slice %456 {offsets = [0, 0], sizes = [8, 32], strides = [1, 1]} : vector<8x128xf32> to vector<8x32xf32>
    %458 = vector.extract_strided_slice %456 {offsets = [0, 32], sizes = [8, 32], strides = [1, 1]} : vector<8x128xf32> to vector<8x32xf32>
    %459 = vector.extract_strided_slice %456 {offsets = [0, 64], sizes = [8, 32], strides = [1, 1]} : vector<8x128xf32> to vector<8x32xf32>
    %cst_120 = arith.constant 2.000000e+00 : f32
    %460 = vector.broadcast %cst_120 : f32 to vector<8x32xf32>
    %461 = arith.mulf %460, %459 : vector<8x32xf32>
    %cst_121 = arith.constant 1.000000e+00 : f32
    %462 = vector.broadcast %cst_121 : f32 to vector<8x32xf32>
    %463 = arith.subf %461, %462 : vector<8x32xf32>
    %464 = vector.extract_strided_slice %456 {offsets = [0, 96], sizes = [8, 32], strides = [1, 1]} : vector<8x128xf32> to vector<8x32xf32>
    %465 = arith.mulf %458, %425 : vector<8x32xf32>
    %466 = arith.mulf %457, %463 : vector<8x32xf32>
    %467 = arith.addf %465, %466 : vector<8x32xf32>
    %468 = math.tanh %467 : vector<8x32xf32>
    %469 = arith.mulf %464, %468 : vector<8x32xf32>
    %cst_122 = arith.constant dense<0.000000e+00> : vector<8x128xf32>
    %470 = tpu.matmul %469, %13, %cst_122 {dimension_numbers = #tpu.dot_dimension_numbers<[1], [0], [0], [1], [0, 0, 1, 1], [], []>} : vector<8x32xf32>, vector<32x128xf32>, vector<8x128xf32> -> vector<8x128xf32>
    %471 = arith.addf %470, %15 : vector<8x128xf32>
    %cst_123 = arith.constant dense<0.000000e+00> : vector<8x128xf32>
    %472 = tpu.matmul %449, %9, %cst_123 {dimension_numbers = #tpu.dot_dimension_numbers<[1], [0], [0], [1], [0, 0, 1, 1], [], []>} : vector<8x32xf32>, vector<32x128xf32>, vector<8x128xf32> -> vector<8x128xf32>
    %473 = arith.addf %333, %472 : vector<8x128xf32>
    %474 = arith.negf %473 : vector<8x128xf32>
    %475 = math.exp %474 : vector<8x128xf32>
    %cst_124 = arith.constant 1.000000e+00 : f32
    %476 = vector.broadcast %cst_124 : f32 to vector<8x128xf32>
    %477 = arith.addf %476, %475 : vector<8x128xf32>
    %478 = arith.divf %476, %477 : vector<8x128xf32>
    %479 = vector.extract_strided_slice %478 {offsets = [0, 0], sizes = [8, 32], strides = [1, 1]} : vector<8x128xf32> to vector<8x32xf32>
    %480 = vector.extract_strided_slice %478 {offsets = [0, 32], sizes = [8, 32], strides = [1, 1]} : vector<8x128xf32> to vector<8x32xf32>
    %481 = vector.extract_strided_slice %478 {offsets = [0, 64], sizes = [8, 32], strides = [1, 1]} : vector<8x128xf32> to vector<8x32xf32>
    %cst_125 = arith.constant 2.000000e+00 : f32
    %482 = vector.broadcast %cst_125 : f32 to vector<8x32xf32>
    %483 = arith.mulf %482, %481 : vector<8x32xf32>
    %cst_126 = arith.constant 1.000000e+00 : f32
    %484 = vector.broadcast %cst_126 : f32 to vector<8x32xf32>
    %485 = arith.subf %483, %484 : vector<8x32xf32>
    %486 = vector.extract_strided_slice %478 {offsets = [0, 96], sizes = [8, 32], strides = [1, 1]} : vector<8x128xf32> to vector<8x32xf32>
    %487 = arith.mulf %480, %447 : vector<8x32xf32>
    %488 = arith.mulf %479, %485 : vector<8x32xf32>
    %489 = arith.addf %487, %488 : vector<8x32xf32>
    %490 = math.tanh %489 : vector<8x32xf32>
    %491 = arith.mulf %486, %490 : vector<8x32xf32>
    %cst_127 = arith.constant dense<0.000000e+00> : vector<8x128xf32>
    %492 = tpu.matmul %491, %11, %cst_127 {dimension_numbers = #tpu.dot_dimension_numbers<[1], [0], [0], [1], [0, 0, 1, 1], [], []>} : vector<8x32xf32>, vector<32x128xf32>, vector<8x128xf32> -> vector<8x128xf32>
    %493 = arith.addf %471, %492 : vector<8x128xf32>
    %494 = arith.negf %493 : vector<8x128xf32>
    %495 = math.exp %494 : vector<8x128xf32>
    %cst_128 = arith.constant 1.000000e+00 : f32
    %496 = vector.broadcast %cst_128 : f32 to vector<8x128xf32>
    %497 = arith.addf %496, %495 : vector<8x128xf32>
    %498 = arith.divf %496, %497 : vector<8x128xf32>
    %499 = vector.extract_strided_slice %498 {offsets = [0, 0], sizes = [8, 32], strides = [1, 1]} : vector<8x128xf32> to vector<8x32xf32>
    %500 = vector.extract_strided_slice %498 {offsets = [0, 32], sizes = [8, 32], strides = [1, 1]} : vector<8x128xf32> to vector<8x32xf32>
    %501 = vector.extract_strided_slice %498 {offsets = [0, 64], sizes = [8, 32], strides = [1, 1]} : vector<8x128xf32> to vector<8x32xf32>
    %cst_129 = arith.constant 2.000000e+00 : f32
    %502 = vector.broadcast %cst_129 : f32 to vector<8x32xf32>
    %503 = arith.mulf %502, %501 : vector<8x32xf32>
    %cst_130 = arith.constant 1.000000e+00 : f32
    %504 = vector.broadcast %cst_130 : f32 to vector<8x32xf32>
    %505 = arith.subf %503, %504 : vector<8x32xf32>
    %506 = vector.extract_strided_slice %498 {offsets = [0, 96], sizes = [8, 32], strides = [1, 1]} : vector<8x128xf32> to vector<8x32xf32>
    %507 = arith.mulf %500, %467 : vector<8x32xf32>
    %508 = arith.mulf %499, %505 : vector<8x32xf32>
    %509 = arith.addf %507, %508 : vector<8x32xf32>
    %510 = math.tanh %509 : vector<8x32xf32>
    %511 = arith.mulf %506, %510 : vector<8x32xf32>
    %cst_131 = arith.constant dense<0.000000e+00> : vector<8x64xf32>
    %512 = tpu.matmul %511, %16, %cst_131 {dimension_numbers = #tpu.dot_dimension_numbers<[1], [0], [0], [1], [0, 0, 1, 1], [], []>} : vector<8x32xf32>, vector<32x64xf32>, vector<8x64xf32> -> vector<8x64xf32>
    %cst_132 = arith.constant dense<0xFF800000> : vector<8xf32>
    %513 = vector.multi_reduction <maximumf>, %512, %cst_132 [1] : vector<8x64xf32> to vector<8xf32>
    %514 = vector.shape_cast %513 : vector<8xf32> to vector<8x1xf32>
    %515 = vector.broadcast %514 : vector<8x1xf32> to vector<8x64xf32>
    %516 = arith.cmpf oeq, %512, %515 : vector<8x64xf32>
    %c64_i32_133 = arith.constant 64 : i32
    %517 = vector.broadcast %c64_i32_133 : i32 to vector<8x64xi32>
    %518 = arith.select %516, %17, %517 : vector<8x64xi1>, vector<8x64xi32>
    %cst_134 = arith.constant dense<2147483647> : vector<8xi32>
    %519 = vector.multi_reduction <minsi>, %518, %cst_134 [1] : vector<8x64xi32> to vector<8xi32>
    %520 = vector.shape_cast %519 : vector<8xi32> to vector<8x1xi32>
    %521 = vector.broadcast %520 : vector<8x1xi32> to vector<8x64xi32>
    %522 = arith.cmpi eq, %521, %17 : vector<8x64xi32>
    %523 = arith.extui %522 : vector<8x64xi1> to vector<8x64xi32>
    %524 = arith.sitofp %523 : vector<8x64xi32> to vector<8x64xf32>
    %cst_135 = arith.constant dense<0.000000e+00> : vector<8x128xf32>
    %525 = tpu.matmul %524, %8, %cst_135 {dimension_numbers = #tpu.dot_dimension_numbers<[1], [0], [0], [1], [0, 0, 1, 1], [], []>} : vector<8x64xf32>, vector<64x128xf32>, vector<8x128xf32> -> vector<8x128xf32>
    %526 = vector.broadcast %514 : vector<8x1xf32> to vector<8x64xf32>
    %527 = arith.subf %512, %526 : vector<8x64xf32>
    %528 = math.exp %527 : vector<8x64xf32>
    %cst_136 = arith.constant dense<0.000000e+00> : vector<8xf32>
    %529 = vector.multi_reduction <add>, %528, %cst_136 [1] : vector<8x64xf32> to vector<8xf32>
    %530 = vector.shape_cast %529 : vector<8xf32> to vector<8x1xf32>
    %531 = math.log %530 : vector<8x1xf32>
    %532 = vector.broadcast %514 : vector<8x1xf32> to vector<8x64xf32>
    %533 = arith.subf %512, %532 : vector<8x64xf32>
    %534 = vector.broadcast %531 : vector<8x1xf32> to vector<8x64xf32>
    %535 = arith.subf %533, %534 : vector<8x64xf32>
    %cst_137 = arith.constant dense<0.000000e+00> : vector<8x128xf32>
    %536 = tpu.matmul %511, %13, %cst_137 {dimension_numbers = #tpu.dot_dimension_numbers<[1], [0], [0], [1], [0, 0, 1, 1], [], []>} : vector<8x32xf32>, vector<32x128xf32>, vector<8x128xf32> -> vector<8x128xf32>
    %537 = arith.addf %536, %15 : vector<8x128xf32>
    %cst_138 = arith.constant dense<0.000000e+00> : vector<8x128xf32>
    %538 = tpu.matmul %491, %9, %cst_138 {dimension_numbers = #tpu.dot_dimension_numbers<[1], [0], [0], [1], [0, 0, 1, 1], [], []>} : vector<8x32xf32>, vector<32x128xf32>, vector<8x128xf32> -> vector<8x128xf32>
    %539 = arith.addf %19, %538 : vector<8x128xf32>
    %540 = arith.negf %539 : vector<8x128xf32>
    %541 = math.exp %540 : vector<8x128xf32>
    %cst_139 = arith.constant 1.000000e+00 : f32
    %542 = vector.broadcast %cst_139 : f32 to vector<8x128xf32>
    %543 = arith.addf %542, %541 : vector<8x128xf32>
    %544 = arith.divf %542, %543 : vector<8x128xf32>
    %545 = vector.extract_strided_slice %544 {offsets = [0, 0], sizes = [8, 32], strides = [1, 1]} : vector<8x128xf32> to vector<8x32xf32>
    %546 = vector.extract_strided_slice %544 {offsets = [0, 32], sizes = [8, 32], strides = [1, 1]} : vector<8x128xf32> to vector<8x32xf32>
    %547 = vector.extract_strided_slice %544 {offsets = [0, 64], sizes = [8, 32], strides = [1, 1]} : vector<8x128xf32> to vector<8x32xf32>
    %cst_140 = arith.constant 2.000000e+00 : f32
    %548 = vector.broadcast %cst_140 : f32 to vector<8x32xf32>
    %549 = arith.mulf %548, %547 : vector<8x32xf32>
    %cst_141 = arith.constant 1.000000e+00 : f32
    %550 = vector.broadcast %cst_141 : f32 to vector<8x32xf32>
    %551 = arith.subf %549, %550 : vector<8x32xf32>
    %552 = vector.extract_strided_slice %544 {offsets = [0, 96], sizes = [8, 32], strides = [1, 1]} : vector<8x128xf32> to vector<8x32xf32>
    %553 = arith.mulf %546, %489 : vector<8x32xf32>
    %554 = arith.mulf %545, %551 : vector<8x32xf32>
    %555 = arith.addf %553, %554 : vector<8x32xf32>
    %556 = math.tanh %555 : vector<8x32xf32>
    %557 = arith.mulf %552, %556 : vector<8x32xf32>
    %cst_142 = arith.constant dense<0.000000e+00> : vector<8x128xf32>
    %558 = tpu.matmul %557, %11, %cst_142 {dimension_numbers = #tpu.dot_dimension_numbers<[1], [0], [0], [1], [0, 0, 1, 1], [], []>} : vector<8x32xf32>, vector<32x128xf32>, vector<8x128xf32> -> vector<8x128xf32>
    %559 = arith.addf %537, %558 : vector<8x128xf32>
    %560 = arith.negf %559 : vector<8x128xf32>
    %561 = math.exp %560 : vector<8x128xf32>
    %cst_143 = arith.constant 1.000000e+00 : f32
    %562 = vector.broadcast %cst_143 : f32 to vector<8x128xf32>
    %563 = arith.addf %562, %561 : vector<8x128xf32>
    %564 = arith.divf %562, %563 : vector<8x128xf32>
    %565 = vector.extract_strided_slice %564 {offsets = [0, 0], sizes = [8, 32], strides = [1, 1]} : vector<8x128xf32> to vector<8x32xf32>
    %566 = vector.extract_strided_slice %564 {offsets = [0, 32], sizes = [8, 32], strides = [1, 1]} : vector<8x128xf32> to vector<8x32xf32>
    %567 = vector.extract_strided_slice %564 {offsets = [0, 64], sizes = [8, 32], strides = [1, 1]} : vector<8x128xf32> to vector<8x32xf32>
    %cst_144 = arith.constant 2.000000e+00 : f32
    %568 = vector.broadcast %cst_144 : f32 to vector<8x32xf32>
    %569 = arith.mulf %568, %567 : vector<8x32xf32>
    %cst_145 = arith.constant 1.000000e+00 : f32
    %570 = vector.broadcast %cst_145 : f32 to vector<8x32xf32>
    %571 = arith.subf %569, %570 : vector<8x32xf32>
    %572 = vector.extract_strided_slice %564 {offsets = [0, 96], sizes = [8, 32], strides = [1, 1]} : vector<8x128xf32> to vector<8x32xf32>
    %573 = arith.mulf %566, %509 : vector<8x32xf32>
    %574 = arith.mulf %565, %571 : vector<8x32xf32>
    %575 = arith.addf %573, %574 : vector<8x32xf32>
    %576 = math.tanh %575 : vector<8x32xf32>
    %577 = arith.mulf %572, %576 : vector<8x32xf32>
    %cst_146 = arith.constant dense<0.000000e+00> : vector<8x128xf32>
    %578 = tpu.matmul %577, %13, %cst_146 {dimension_numbers = #tpu.dot_dimension_numbers<[1], [0], [0], [1], [0, 0, 1, 1], [], []>} : vector<8x32xf32>, vector<32x128xf32>, vector<8x128xf32> -> vector<8x128xf32>
    %579 = arith.addf %578, %15 : vector<8x128xf32>
    %cst_147 = arith.constant dense<0.000000e+00> : vector<8x128xf32>
    %580 = tpu.matmul %557, %9, %cst_147 {dimension_numbers = #tpu.dot_dimension_numbers<[1], [0], [0], [1], [0, 0, 1, 1], [], []>} : vector<8x32xf32>, vector<32x128xf32>, vector<8x128xf32> -> vector<8x128xf32>
    %581 = arith.addf %75, %580 : vector<8x128xf32>
    %582 = arith.negf %581 : vector<8x128xf32>
    %583 = math.exp %582 : vector<8x128xf32>
    %cst_148 = arith.constant 1.000000e+00 : f32
    %584 = vector.broadcast %cst_148 : f32 to vector<8x128xf32>
    %585 = arith.addf %584, %583 : vector<8x128xf32>
    %586 = arith.divf %584, %585 : vector<8x128xf32>
    %587 = vector.extract_strided_slice %586 {offsets = [0, 0], sizes = [8, 32], strides = [1, 1]} : vector<8x128xf32> to vector<8x32xf32>
    %588 = vector.extract_strided_slice %586 {offsets = [0, 32], sizes = [8, 32], strides = [1, 1]} : vector<8x128xf32> to vector<8x32xf32>
    %589 = vector.extract_strided_slice %586 {offsets = [0, 64], sizes = [8, 32], strides = [1, 1]} : vector<8x128xf32> to vector<8x32xf32>
    %cst_149 = arith.constant 2.000000e+00 : f32
    %590 = vector.broadcast %cst_149 : f32 to vector<8x32xf32>
    %591 = arith.mulf %590, %589 : vector<8x32xf32>
    %cst_150 = arith.constant 1.000000e+00 : f32
    %592 = vector.broadcast %cst_150 : f32 to vector<8x32xf32>
    %593 = arith.subf %591, %592 : vector<8x32xf32>
    %594 = vector.extract_strided_slice %586 {offsets = [0, 96], sizes = [8, 32], strides = [1, 1]} : vector<8x128xf32> to vector<8x32xf32>
    %595 = arith.mulf %588, %555 : vector<8x32xf32>
    %596 = arith.mulf %587, %593 : vector<8x32xf32>
    %597 = arith.addf %595, %596 : vector<8x32xf32>
    %598 = math.tanh %597 : vector<8x32xf32>
    %599 = arith.mulf %594, %598 : vector<8x32xf32>
    %cst_151 = arith.constant dense<0.000000e+00> : vector<8x128xf32>
    %600 = tpu.matmul %599, %11, %cst_151 {dimension_numbers = #tpu.dot_dimension_numbers<[1], [0], [0], [1], [0, 0, 1, 1], [], []>} : vector<8x32xf32>, vector<32x128xf32>, vector<8x128xf32> -> vector<8x128xf32>
    %601 = arith.addf %579, %600 : vector<8x128xf32>
    %602 = arith.negf %601 : vector<8x128xf32>
    %603 = math.exp %602 : vector<8x128xf32>
    %cst_152 = arith.constant 1.000000e+00 : f32
    %604 = vector.broadcast %cst_152 : f32 to vector<8x128xf32>
    %605 = arith.addf %604, %603 : vector<8x128xf32>
    %606 = arith.divf %604, %605 : vector<8x128xf32>
    %607 = vector.extract_strided_slice %606 {offsets = [0, 0], sizes = [8, 32], strides = [1, 1]} : vector<8x128xf32> to vector<8x32xf32>
    %608 = vector.extract_strided_slice %606 {offsets = [0, 32], sizes = [8, 32], strides = [1, 1]} : vector<8x128xf32> to vector<8x32xf32>
    %609 = vector.extract_strided_slice %606 {offsets = [0, 64], sizes = [8, 32], strides = [1, 1]} : vector<8x128xf32> to vector<8x32xf32>
    %cst_153 = arith.constant 2.000000e+00 : f32
    %610 = vector.broadcast %cst_153 : f32 to vector<8x32xf32>
    %611 = arith.mulf %610, %609 : vector<8x32xf32>
    %cst_154 = arith.constant 1.000000e+00 : f32
    %612 = vector.broadcast %cst_154 : f32 to vector<8x32xf32>
    %613 = arith.subf %611, %612 : vector<8x32xf32>
    %614 = vector.extract_strided_slice %606 {offsets = [0, 96], sizes = [8, 32], strides = [1, 1]} : vector<8x128xf32> to vector<8x32xf32>
    %615 = arith.mulf %608, %575 : vector<8x32xf32>
    %616 = arith.mulf %607, %613 : vector<8x32xf32>
    %617 = arith.addf %615, %616 : vector<8x32xf32>
    %618 = math.tanh %617 : vector<8x32xf32>
    %619 = arith.mulf %614, %618 : vector<8x32xf32>
    %cst_155 = arith.constant dense<0.000000e+00> : vector<8x128xf32>
    %620 = tpu.matmul %619, %13, %cst_155 {dimension_numbers = #tpu.dot_dimension_numbers<[1], [0], [0], [1], [0, 0, 1, 1], [], []>} : vector<8x32xf32>, vector<32x128xf32>, vector<8x128xf32> -> vector<8x128xf32>
    %621 = arith.addf %620, %15 : vector<8x128xf32>
    %cst_156 = arith.constant dense<0.000000e+00> : vector<8x128xf32>
    %622 = tpu.matmul %599, %9, %cst_156 {dimension_numbers = #tpu.dot_dimension_numbers<[1], [0], [0], [1], [0, 0, 1, 1], [], []>} : vector<8x32xf32>, vector<32x128xf32>, vector<8x128xf32> -> vector<8x128xf32>
    %623 = arith.addf %183, %622 : vector<8x128xf32>
    %624 = arith.negf %623 : vector<8x128xf32>
    %625 = math.exp %624 : vector<8x128xf32>
    %cst_157 = arith.constant 1.000000e+00 : f32
    %626 = vector.broadcast %cst_157 : f32 to vector<8x128xf32>
    %627 = arith.addf %626, %625 : vector<8x128xf32>
    %628 = arith.divf %626, %627 : vector<8x128xf32>
    %629 = vector.extract_strided_slice %628 {offsets = [0, 0], sizes = [8, 32], strides = [1, 1]} : vector<8x128xf32> to vector<8x32xf32>
    %630 = vector.extract_strided_slice %628 {offsets = [0, 32], sizes = [8, 32], strides = [1, 1]} : vector<8x128xf32> to vector<8x32xf32>
    %631 = vector.extract_strided_slice %628 {offsets = [0, 64], sizes = [8, 32], strides = [1, 1]} : vector<8x128xf32> to vector<8x32xf32>
    %cst_158 = arith.constant 2.000000e+00 : f32
    %632 = vector.broadcast %cst_158 : f32 to vector<8x32xf32>
    %633 = arith.mulf %632, %631 : vector<8x32xf32>
    %cst_159 = arith.constant 1.000000e+00 : f32
    %634 = vector.broadcast %cst_159 : f32 to vector<8x32xf32>
    %635 = arith.subf %633, %634 : vector<8x32xf32>
    %636 = vector.extract_strided_slice %628 {offsets = [0, 96], sizes = [8, 32], strides = [1, 1]} : vector<8x128xf32> to vector<8x32xf32>
    %637 = arith.mulf %630, %597 : vector<8x32xf32>
    %638 = arith.mulf %629, %635 : vector<8x32xf32>
    %639 = arith.addf %637, %638 : vector<8x32xf32>
    %640 = math.tanh %639 : vector<8x32xf32>
    %641 = arith.mulf %636, %640 : vector<8x32xf32>
    %cst_160 = arith.constant dense<0.000000e+00> : vector<8x128xf32>
    %642 = tpu.matmul %641, %11, %cst_160 {dimension_numbers = #tpu.dot_dimension_numbers<[1], [0], [0], [1], [0, 0, 1, 1], [], []>} : vector<8x32xf32>, vector<32x128xf32>, vector<8x128xf32> -> vector<8x128xf32>
    %643 = arith.addf %621, %642 : vector<8x128xf32>
    %644 = arith.negf %643 : vector<8x128xf32>
    %645 = math.exp %644 : vector<8x128xf32>
    %cst_161 = arith.constant 1.000000e+00 : f32
    %646 = vector.broadcast %cst_161 : f32 to vector<8x128xf32>
    %647 = arith.addf %646, %645 : vector<8x128xf32>
    %648 = arith.divf %646, %647 : vector<8x128xf32>
    %649 = vector.extract_strided_slice %648 {offsets = [0, 0], sizes = [8, 32], strides = [1, 1]} : vector<8x128xf32> to vector<8x32xf32>
    %650 = vector.extract_strided_slice %648 {offsets = [0, 32], sizes = [8, 32], strides = [1, 1]} : vector<8x128xf32> to vector<8x32xf32>
    %651 = vector.extract_strided_slice %648 {offsets = [0, 64], sizes = [8, 32], strides = [1, 1]} : vector<8x128xf32> to vector<8x32xf32>
    %cst_162 = arith.constant 2.000000e+00 : f32
    %652 = vector.broadcast %cst_162 : f32 to vector<8x32xf32>
    %653 = arith.mulf %652, %651 : vector<8x32xf32>
    %cst_163 = arith.constant 1.000000e+00 : f32
    %654 = vector.broadcast %cst_163 : f32 to vector<8x32xf32>
    %655 = arith.subf %653, %654 : vector<8x32xf32>
    %656 = vector.extract_strided_slice %648 {offsets = [0, 96], sizes = [8, 32], strides = [1, 1]} : vector<8x128xf32> to vector<8x32xf32>
    %657 = arith.mulf %650, %617 : vector<8x32xf32>
    %658 = arith.mulf %649, %655 : vector<8x32xf32>
    %659 = arith.addf %657, %658 : vector<8x32xf32>
    %660 = math.tanh %659 : vector<8x32xf32>
    %661 = arith.mulf %656, %660 : vector<8x32xf32>
    %cst_164 = arith.constant dense<0.000000e+00> : vector<8x128xf32>
    %662 = tpu.matmul %661, %13, %cst_164 {dimension_numbers = #tpu.dot_dimension_numbers<[1], [0], [0], [1], [0, 0, 1, 1], [], []>} : vector<8x32xf32>, vector<32x128xf32>, vector<8x128xf32> -> vector<8x128xf32>
    %663 = arith.addf %662, %15 : vector<8x128xf32>
    %cst_165 = arith.constant dense<0.000000e+00> : vector<8x128xf32>
    %664 = tpu.matmul %641, %9, %cst_165 {dimension_numbers = #tpu.dot_dimension_numbers<[1], [0], [0], [1], [0, 0, 1, 1], [], []>} : vector<8x32xf32>, vector<32x128xf32>, vector<8x128xf32> -> vector<8x128xf32>
    %665 = arith.addf %333, %664 : vector<8x128xf32>
    %666 = arith.negf %665 : vector<8x128xf32>
    %667 = math.exp %666 : vector<8x128xf32>
    %cst_166 = arith.constant 1.000000e+00 : f32
    %668 = vector.broadcast %cst_166 : f32 to vector<8x128xf32>
    %669 = arith.addf %668, %667 : vector<8x128xf32>
    %670 = arith.divf %668, %669 : vector<8x128xf32>
    %671 = vector.extract_strided_slice %670 {offsets = [0, 0], sizes = [8, 32], strides = [1, 1]} : vector<8x128xf32> to vector<8x32xf32>
    %672 = vector.extract_strided_slice %670 {offsets = [0, 32], sizes = [8, 32], strides = [1, 1]} : vector<8x128xf32> to vector<8x32xf32>
    %673 = vector.extract_strided_slice %670 {offsets = [0, 64], sizes = [8, 32], strides = [1, 1]} : vector<8x128xf32> to vector<8x32xf32>
    %cst_167 = arith.constant 2.000000e+00 : f32
    %674 = vector.broadcast %cst_167 : f32 to vector<8x32xf32>
    %675 = arith.mulf %674, %673 : vector<8x32xf32>
    %cst_168 = arith.constant 1.000000e+00 : f32
    %676 = vector.broadcast %cst_168 : f32 to vector<8x32xf32>
    %677 = arith.subf %675, %676 : vector<8x32xf32>
    %678 = vector.extract_strided_slice %670 {offsets = [0, 96], sizes = [8, 32], strides = [1, 1]} : vector<8x128xf32> to vector<8x32xf32>
    %679 = arith.mulf %672, %639 : vector<8x32xf32>
    %680 = arith.mulf %671, %677 : vector<8x32xf32>
    %681 = arith.addf %679, %680 : vector<8x32xf32>
    %682 = math.tanh %681 : vector<8x32xf32>
    %683 = arith.mulf %678, %682 : vector<8x32xf32>
    %cst_169 = arith.constant dense<0.000000e+00> : vector<8x128xf32>
    %684 = tpu.matmul %683, %11, %cst_169 {dimension_numbers = #tpu.dot_dimension_numbers<[1], [0], [0], [1], [0, 0, 1, 1], [], []>} : vector<8x32xf32>, vector<32x128xf32>, vector<8x128xf32> -> vector<8x128xf32>
    %685 = arith.addf %663, %684 : vector<8x128xf32>
    %686 = arith.negf %685 : vector<8x128xf32>
    %687 = math.exp %686 : vector<8x128xf32>
    %cst_170 = arith.constant 1.000000e+00 : f32
    %688 = vector.broadcast %cst_170 : f32 to vector<8x128xf32>
    %689 = arith.addf %688, %687 : vector<8x128xf32>
    %690 = arith.divf %688, %689 : vector<8x128xf32>
    %691 = vector.extract_strided_slice %690 {offsets = [0, 0], sizes = [8, 32], strides = [1, 1]} : vector<8x128xf32> to vector<8x32xf32>
    %692 = vector.extract_strided_slice %690 {offsets = [0, 32], sizes = [8, 32], strides = [1, 1]} : vector<8x128xf32> to vector<8x32xf32>
    %693 = vector.extract_strided_slice %690 {offsets = [0, 64], sizes = [8, 32], strides = [1, 1]} : vector<8x128xf32> to vector<8x32xf32>
    %cst_171 = arith.constant 2.000000e+00 : f32
    %694 = vector.broadcast %cst_171 : f32 to vector<8x32xf32>
    %695 = arith.mulf %694, %693 : vector<8x32xf32>
    %cst_172 = arith.constant 1.000000e+00 : f32
    %696 = vector.broadcast %cst_172 : f32 to vector<8x32xf32>
    %697 = arith.subf %695, %696 : vector<8x32xf32>
    %698 = vector.extract_strided_slice %690 {offsets = [0, 96], sizes = [8, 32], strides = [1, 1]} : vector<8x128xf32> to vector<8x32xf32>
    %699 = arith.mulf %692, %659 : vector<8x32xf32>
    %700 = arith.mulf %691, %697 : vector<8x32xf32>
    %701 = arith.addf %699, %700 : vector<8x32xf32>
    %702 = math.tanh %701 : vector<8x32xf32>
    %703 = arith.mulf %698, %702 : vector<8x32xf32>
    %cst_173 = arith.constant dense<0.000000e+00> : vector<8x128xf32>
    %704 = tpu.matmul %703, %13, %cst_173 {dimension_numbers = #tpu.dot_dimension_numbers<[1], [0], [0], [1], [0, 0, 1, 1], [], []>} : vector<8x32xf32>, vector<32x128xf32>, vector<8x128xf32> -> vector<8x128xf32>
    %705 = arith.addf %704, %15 : vector<8x128xf32>
    %cst_174 = arith.constant dense<0.000000e+00> : vector<8x128xf32>
    %706 = tpu.matmul %683, %9, %cst_174 {dimension_numbers = #tpu.dot_dimension_numbers<[1], [0], [0], [1], [0, 0, 1, 1], [], []>} : vector<8x32xf32>, vector<32x128xf32>, vector<8x128xf32> -> vector<8x128xf32>
    %707 = arith.addf %525, %706 : vector<8x128xf32>
    %708 = arith.negf %707 : vector<8x128xf32>
    %709 = math.exp %708 : vector<8x128xf32>
    %cst_175 = arith.constant 1.000000e+00 : f32
    %710 = vector.broadcast %cst_175 : f32 to vector<8x128xf32>
    %711 = arith.addf %710, %709 : vector<8x128xf32>
    %712 = arith.divf %710, %711 : vector<8x128xf32>
    %713 = vector.extract_strided_slice %712 {offsets = [0, 0], sizes = [8, 32], strides = [1, 1]} : vector<8x128xf32> to vector<8x32xf32>
    %714 = vector.extract_strided_slice %712 {offsets = [0, 32], sizes = [8, 32], strides = [1, 1]} : vector<8x128xf32> to vector<8x32xf32>
    %715 = vector.extract_strided_slice %712 {offsets = [0, 64], sizes = [8, 32], strides = [1, 1]} : vector<8x128xf32> to vector<8x32xf32>
    %cst_176 = arith.constant 2.000000e+00 : f32
    %716 = vector.broadcast %cst_176 : f32 to vector<8x32xf32>
    %717 = arith.mulf %716, %715 : vector<8x32xf32>
    %cst_177 = arith.constant 1.000000e+00 : f32
    %718 = vector.broadcast %cst_177 : f32 to vector<8x32xf32>
    %719 = arith.subf %717, %718 : vector<8x32xf32>
    %720 = vector.extract_strided_slice %712 {offsets = [0, 96], sizes = [8, 32], strides = [1, 1]} : vector<8x128xf32> to vector<8x32xf32>
    %721 = arith.mulf %714, %681 : vector<8x32xf32>
    %722 = arith.mulf %713, %719 : vector<8x32xf32>
    %723 = arith.addf %721, %722 : vector<8x32xf32>
    %724 = math.tanh %723 : vector<8x32xf32>
    %725 = arith.mulf %720, %724 : vector<8x32xf32>
    %cst_178 = arith.constant dense<0.000000e+00> : vector<8x128xf32>
    %726 = tpu.matmul %725, %11, %cst_178 {dimension_numbers = #tpu.dot_dimension_numbers<[1], [0], [0], [1], [0, 0, 1, 1], [], []>} : vector<8x32xf32>, vector<32x128xf32>, vector<8x128xf32> -> vector<8x128xf32>
    %727 = arith.addf %705, %726 : vector<8x128xf32>
    %728 = arith.negf %727 : vector<8x128xf32>
    %729 = math.exp %728 : vector<8x128xf32>
    %cst_179 = arith.constant 1.000000e+00 : f32
    %730 = vector.broadcast %cst_179 : f32 to vector<8x128xf32>
    %731 = arith.addf %730, %729 : vector<8x128xf32>
    %732 = arith.divf %730, %731 : vector<8x128xf32>
    %733 = vector.extract_strided_slice %732 {offsets = [0, 0], sizes = [8, 32], strides = [1, 1]} : vector<8x128xf32> to vector<8x32xf32>
    %734 = vector.extract_strided_slice %732 {offsets = [0, 32], sizes = [8, 32], strides = [1, 1]} : vector<8x128xf32> to vector<8x32xf32>
    %735 = vector.extract_strided_slice %732 {offsets = [0, 64], sizes = [8, 32], strides = [1, 1]} : vector<8x128xf32> to vector<8x32xf32>
    %cst_180 = arith.constant 2.000000e+00 : f32
    %736 = vector.broadcast %cst_180 : f32 to vector<8x32xf32>
    %737 = arith.mulf %736, %735 : vector<8x32xf32>
    %cst_181 = arith.constant 1.000000e+00 : f32
    %738 = vector.broadcast %cst_181 : f32 to vector<8x32xf32>
    %739 = arith.subf %737, %738 : vector<8x32xf32>
    %740 = vector.extract_strided_slice %732 {offsets = [0, 96], sizes = [8, 32], strides = [1, 1]} : vector<8x128xf32> to vector<8x32xf32>
    %741 = arith.mulf %734, %701 : vector<8x32xf32>
    %742 = arith.mulf %733, %739 : vector<8x32xf32>
    %743 = arith.addf %741, %742 : vector<8x32xf32>
    %744 = math.tanh %743 : vector<8x32xf32>
    %745 = arith.mulf %740, %744 : vector<8x32xf32>
    %cst_182 = arith.constant dense<0.000000e+00> : vector<8x64xf32>
    %746 = tpu.matmul %745, %16, %cst_182 {dimension_numbers = #tpu.dot_dimension_numbers<[1], [0], [0], [1], [0, 0, 1, 1], [], []>} : vector<8x32xf32>, vector<32x64xf32>, vector<8x64xf32> -> vector<8x64xf32>
    %cst_183 = arith.constant dense<0xFF800000> : vector<8xf32>
    %747 = vector.multi_reduction <maximumf>, %746, %cst_183 [1] : vector<8x64xf32> to vector<8xf32>
    %748 = vector.shape_cast %747 : vector<8xf32> to vector<8x1xf32>
    %749 = vector.broadcast %748 : vector<8x1xf32> to vector<8x64xf32>
    %750 = arith.cmpf oeq, %746, %749 : vector<8x64xf32>
    %c64_i32_184 = arith.constant 64 : i32
    %751 = vector.broadcast %c64_i32_184 : i32 to vector<8x64xi32>
    %752 = arith.select %750, %17, %751 : vector<8x64xi1>, vector<8x64xi32>
    %cst_185 = arith.constant dense<2147483647> : vector<8xi32>
    %753 = vector.multi_reduction <minsi>, %752, %cst_185 [1] : vector<8x64xi32> to vector<8xi32>
    %754 = vector.shape_cast %753 : vector<8xi32> to vector<8x1xi32>
    %755 = vector.broadcast %754 : vector<8x1xi32> to vector<8x64xi32>
    %756 = arith.cmpi eq, %755, %17 : vector<8x64xi32>
    %757 = arith.extui %756 : vector<8x64xi1> to vector<8x64xi32>
    %758 = arith.sitofp %757 : vector<8x64xi32> to vector<8x64xf32>
    %cst_186 = arith.constant dense<0.000000e+00> : vector<8x128xf32>
    %759 = tpu.matmul %758, %8, %cst_186 {dimension_numbers = #tpu.dot_dimension_numbers<[1], [0], [0], [1], [0, 0, 1, 1], [], []>} : vector<8x64xf32>, vector<64x128xf32>, vector<8x128xf32> -> vector<8x128xf32>
    %760 = vector.broadcast %748 : vector<8x1xf32> to vector<8x64xf32>
    %761 = arith.subf %746, %760 : vector<8x64xf32>
    %762 = math.exp %761 : vector<8x64xf32>
    %cst_187 = arith.constant dense<0.000000e+00> : vector<8xf32>
    %763 = vector.multi_reduction <add>, %762, %cst_187 [1] : vector<8x64xf32> to vector<8xf32>
    %764 = vector.shape_cast %763 : vector<8xf32> to vector<8x1xf32>
    %765 = math.log %764 : vector<8x1xf32>
    %766 = vector.broadcast %748 : vector<8x1xf32> to vector<8x64xf32>
    %767 = arith.subf %746, %766 : vector<8x64xf32>
    %768 = vector.broadcast %765 : vector<8x1xf32> to vector<8x64xf32>
    %769 = arith.subf %767, %768 : vector<8x64xf32>
    %cst_188 = arith.constant dense<0.000000e+00> : vector<8x128xf32>
    %770 = tpu.matmul %745, %13, %cst_188 {dimension_numbers = #tpu.dot_dimension_numbers<[1], [0], [0], [1], [0, 0, 1, 1], [], []>} : vector<8x32xf32>, vector<32x128xf32>, vector<8x128xf32> -> vector<8x128xf32>
    %771 = arith.addf %770, %15 : vector<8x128xf32>
    %cst_189 = arith.constant dense<0.000000e+00> : vector<8x128xf32>
    %772 = tpu.matmul %725, %9, %cst_189 {dimension_numbers = #tpu.dot_dimension_numbers<[1], [0], [0], [1], [0, 0, 1, 1], [], []>} : vector<8x32xf32>, vector<32x128xf32>, vector<8x128xf32> -> vector<8x128xf32>
    %773 = arith.addf %19, %772 : vector<8x128xf32>
    %774 = arith.negf %773 : vector<8x128xf32>
    %775 = math.exp %774 : vector<8x128xf32>
    %cst_190 = arith.constant 1.000000e+00 : f32
    %776 = vector.broadcast %cst_190 : f32 to vector<8x128xf32>
    %777 = arith.addf %776, %775 : vector<8x128xf32>
    %778 = arith.divf %776, %777 : vector<8x128xf32>
    %779 = vector.extract_strided_slice %778 {offsets = [0, 0], sizes = [8, 32], strides = [1, 1]} : vector<8x128xf32> to vector<8x32xf32>
    %780 = vector.extract_strided_slice %778 {offsets = [0, 32], sizes = [8, 32], strides = [1, 1]} : vector<8x128xf32> to vector<8x32xf32>
    %781 = vector.extract_strided_slice %778 {offsets = [0, 64], sizes = [8, 32], strides = [1, 1]} : vector<8x128xf32> to vector<8x32xf32>
    %cst_191 = arith.constant 2.000000e+00 : f32
    %782 = vector.broadcast %cst_191 : f32 to vector<8x32xf32>
    %783 = arith.mulf %782, %781 : vector<8x32xf32>
    %cst_192 = arith.constant 1.000000e+00 : f32
    %784 = vector.broadcast %cst_192 : f32 to vector<8x32xf32>
    %785 = arith.subf %783, %784 : vector<8x32xf32>
    %786 = vector.extract_strided_slice %778 {offsets = [0, 96], sizes = [8, 32], strides = [1, 1]} : vector<8x128xf32> to vector<8x32xf32>
    %787 = arith.mulf %780, %723 : vector<8x32xf32>
    %788 = arith.mulf %779, %785 : vector<8x32xf32>
    %789 = arith.addf %787, %788 : vector<8x32xf32>
    %790 = math.tanh %789 : vector<8x32xf32>
    %791 = arith.mulf %786, %790 : vector<8x32xf32>
    %cst_193 = arith.constant dense<0.000000e+00> : vector<8x128xf32>
    %792 = tpu.matmul %791, %11, %cst_193 {dimension_numbers = #tpu.dot_dimension_numbers<[1], [0], [0], [1], [0, 0, 1, 1], [], []>} : vector<8x32xf32>, vector<32x128xf32>, vector<8x128xf32> -> vector<8x128xf32>
    %793 = arith.addf %771, %792 : vector<8x128xf32>
    %794 = arith.negf %793 : vector<8x128xf32>
    %795 = math.exp %794 : vector<8x128xf32>
    %cst_194 = arith.constant 1.000000e+00 : f32
    %796 = vector.broadcast %cst_194 : f32 to vector<8x128xf32>
    %797 = arith.addf %796, %795 : vector<8x128xf32>
    %798 = arith.divf %796, %797 : vector<8x128xf32>
    %799 = vector.extract_strided_slice %798 {offsets = [0, 0], sizes = [8, 32], strides = [1, 1]} : vector<8x128xf32> to vector<8x32xf32>
    %800 = vector.extract_strided_slice %798 {offsets = [0, 32], sizes = [8, 32], strides = [1, 1]} : vector<8x128xf32> to vector<8x32xf32>
    %801 = vector.extract_strided_slice %798 {offsets = [0, 64], sizes = [8, 32], strides = [1, 1]} : vector<8x128xf32> to vector<8x32xf32>
    %cst_195 = arith.constant 2.000000e+00 : f32
    %802 = vector.broadcast %cst_195 : f32 to vector<8x32xf32>
    %803 = arith.mulf %802, %801 : vector<8x32xf32>
    %cst_196 = arith.constant 1.000000e+00 : f32
    %804 = vector.broadcast %cst_196 : f32 to vector<8x32xf32>
    %805 = arith.subf %803, %804 : vector<8x32xf32>
    %806 = vector.extract_strided_slice %798 {offsets = [0, 96], sizes = [8, 32], strides = [1, 1]} : vector<8x128xf32> to vector<8x32xf32>
    %807 = arith.mulf %800, %743 : vector<8x32xf32>
    %808 = arith.mulf %799, %805 : vector<8x32xf32>
    %809 = arith.addf %807, %808 : vector<8x32xf32>
    %810 = math.tanh %809 : vector<8x32xf32>
    %811 = arith.mulf %806, %810 : vector<8x32xf32>
    %cst_197 = arith.constant dense<0.000000e+00> : vector<8x128xf32>
    %812 = tpu.matmul %811, %13, %cst_197 {dimension_numbers = #tpu.dot_dimension_numbers<[1], [0], [0], [1], [0, 0, 1, 1], [], []>} : vector<8x32xf32>, vector<32x128xf32>, vector<8x128xf32> -> vector<8x128xf32>
    %813 = arith.addf %812, %15 : vector<8x128xf32>
    %cst_198 = arith.constant dense<0.000000e+00> : vector<8x128xf32>
    %814 = tpu.matmul %791, %9, %cst_198 {dimension_numbers = #tpu.dot_dimension_numbers<[1], [0], [0], [1], [0, 0, 1, 1], [], []>} : vector<8x32xf32>, vector<32x128xf32>, vector<8x128xf32> -> vector<8x128xf32>
    %815 = arith.addf %75, %814 : vector<8x128xf32>
    %816 = arith.negf %815 : vector<8x128xf32>
    %817 = math.exp %816 : vector<8x128xf32>
    %cst_199 = arith.constant 1.000000e+00 : f32
    %818 = vector.broadcast %cst_199 : f32 to vector<8x128xf32>
    %819 = arith.addf %818, %817 : vector<8x128xf32>
    %820 = arith.divf %818, %819 : vector<8x128xf32>
    %821 = vector.extract_strided_slice %820 {offsets = [0, 0], sizes = [8, 32], strides = [1, 1]} : vector<8x128xf32> to vector<8x32xf32>
    %822 = vector.extract_strided_slice %820 {offsets = [0, 32], sizes = [8, 32], strides = [1, 1]} : vector<8x128xf32> to vector<8x32xf32>
    %823 = vector.extract_strided_slice %820 {offsets = [0, 64], sizes = [8, 32], strides = [1, 1]} : vector<8x128xf32> to vector<8x32xf32>
    %cst_200 = arith.constant 2.000000e+00 : f32
    %824 = vector.broadcast %cst_200 : f32 to vector<8x32xf32>
    %825 = arith.mulf %824, %823 : vector<8x32xf32>
    %cst_201 = arith.constant 1.000000e+00 : f32
    %826 = vector.broadcast %cst_201 : f32 to vector<8x32xf32>
    %827 = arith.subf %825, %826 : vector<8x32xf32>
    %828 = vector.extract_strided_slice %820 {offsets = [0, 96], sizes = [8, 32], strides = [1, 1]} : vector<8x128xf32> to vector<8x32xf32>
    %829 = arith.mulf %822, %789 : vector<8x32xf32>
    %830 = arith.mulf %821, %827 : vector<8x32xf32>
    %831 = arith.addf %829, %830 : vector<8x32xf32>
    %832 = math.tanh %831 : vector<8x32xf32>
    %833 = arith.mulf %828, %832 : vector<8x32xf32>
    %cst_202 = arith.constant dense<0.000000e+00> : vector<8x128xf32>
    %834 = tpu.matmul %833, %11, %cst_202 {dimension_numbers = #tpu.dot_dimension_numbers<[1], [0], [0], [1], [0, 0, 1, 1], [], []>} : vector<8x32xf32>, vector<32x128xf32>, vector<8x128xf32> -> vector<8x128xf32>
    %835 = arith.addf %813, %834 : vector<8x128xf32>
    %836 = arith.negf %835 : vector<8x128xf32>
    %837 = math.exp %836 : vector<8x128xf32>
    %cst_203 = arith.constant 1.000000e+00 : f32
    %838 = vector.broadcast %cst_203 : f32 to vector<8x128xf32>
    %839 = arith.addf %838, %837 : vector<8x128xf32>
    %840 = arith.divf %838, %839 : vector<8x128xf32>
    %841 = vector.extract_strided_slice %840 {offsets = [0, 0], sizes = [8, 32], strides = [1, 1]} : vector<8x128xf32> to vector<8x32xf32>
    %842 = vector.extract_strided_slice %840 {offsets = [0, 32], sizes = [8, 32], strides = [1, 1]} : vector<8x128xf32> to vector<8x32xf32>
    %843 = vector.extract_strided_slice %840 {offsets = [0, 64], sizes = [8, 32], strides = [1, 1]} : vector<8x128xf32> to vector<8x32xf32>
    %cst_204 = arith.constant 2.000000e+00 : f32
    %844 = vector.broadcast %cst_204 : f32 to vector<8x32xf32>
    %845 = arith.mulf %844, %843 : vector<8x32xf32>
    %cst_205 = arith.constant 1.000000e+00 : f32
    %846 = vector.broadcast %cst_205 : f32 to vector<8x32xf32>
    %847 = arith.subf %845, %846 : vector<8x32xf32>
    %848 = vector.extract_strided_slice %840 {offsets = [0, 96], sizes = [8, 32], strides = [1, 1]} : vector<8x128xf32> to vector<8x32xf32>
    %849 = arith.mulf %842, %809 : vector<8x32xf32>
    %850 = arith.mulf %841, %847 : vector<8x32xf32>
    %851 = arith.addf %849, %850 : vector<8x32xf32>
    %852 = math.tanh %851 : vector<8x32xf32>
    %853 = arith.mulf %848, %852 : vector<8x32xf32>
    %cst_206 = arith.constant dense<0.000000e+00> : vector<8x128xf32>
    %854 = tpu.matmul %853, %13, %cst_206 {dimension_numbers = #tpu.dot_dimension_numbers<[1], [0], [0], [1], [0, 0, 1, 1], [], []>} : vector<8x32xf32>, vector<32x128xf32>, vector<8x128xf32> -> vector<8x128xf32>
    %855 = arith.addf %854, %15 : vector<8x128xf32>
    %cst_207 = arith.constant dense<0.000000e+00> : vector<8x128xf32>
    %856 = tpu.matmul %833, %9, %cst_207 {dimension_numbers = #tpu.dot_dimension_numbers<[1], [0], [0], [1], [0, 0, 1, 1], [], []>} : vector<8x32xf32>, vector<32x128xf32>, vector<8x128xf32> -> vector<8x128xf32>
    %857 = arith.addf %183, %856 : vector<8x128xf32>
    %858 = arith.negf %857 : vector<8x128xf32>
    %859 = math.exp %858 : vector<8x128xf32>
    %cst_208 = arith.constant 1.000000e+00 : f32
    %860 = vector.broadcast %cst_208 : f32 to vector<8x128xf32>
    %861 = arith.addf %860, %859 : vector<8x128xf32>
    %862 = arith.divf %860, %861 : vector<8x128xf32>
    %863 = vector.extract_strided_slice %862 {offsets = [0, 0], sizes = [8, 32], strides = [1, 1]} : vector<8x128xf32> to vector<8x32xf32>
    %864 = vector.extract_strided_slice %862 {offsets = [0, 32], sizes = [8, 32], strides = [1, 1]} : vector<8x128xf32> to vector<8x32xf32>
    %865 = vector.extract_strided_slice %862 {offsets = [0, 64], sizes = [8, 32], strides = [1, 1]} : vector<8x128xf32> to vector<8x32xf32>
    %cst_209 = arith.constant 2.000000e+00 : f32
    %866 = vector.broadcast %cst_209 : f32 to vector<8x32xf32>
    %867 = arith.mulf %866, %865 : vector<8x32xf32>
    %cst_210 = arith.constant 1.000000e+00 : f32
    %868 = vector.broadcast %cst_210 : f32 to vector<8x32xf32>
    %869 = arith.subf %867, %868 : vector<8x32xf32>
    %870 = vector.extract_strided_slice %862 {offsets = [0, 96], sizes = [8, 32], strides = [1, 1]} : vector<8x128xf32> to vector<8x32xf32>
    %871 = arith.mulf %864, %831 : vector<8x32xf32>
    %872 = arith.mulf %863, %869 : vector<8x32xf32>
    %873 = arith.addf %871, %872 : vector<8x32xf32>
    %874 = math.tanh %873 : vector<8x32xf32>
    %875 = arith.mulf %870, %874 : vector<8x32xf32>
    %cst_211 = arith.constant dense<0.000000e+00> : vector<8x128xf32>
    %876 = tpu.matmul %875, %11, %cst_211 {dimension_numbers = #tpu.dot_dimension_numbers<[1], [0], [0], [1], [0, 0, 1, 1], [], []>} : vector<8x32xf32>, vector<32x128xf32>, vector<8x128xf32> -> vector<8x128xf32>
    %877 = arith.addf %855, %876 : vector<8x128xf32>
    %878 = arith.negf %877 : vector<8x128xf32>
    %879 = math.exp %878 : vector<8x128xf32>
    %cst_212 = arith.constant 1.000000e+00 : f32
    %880 = vector.broadcast %cst_212 : f32 to vector<8x128xf32>
    %881 = arith.addf %880, %879 : vector<8x128xf32>
    %882 = arith.divf %880, %881 : vector<8x128xf32>
    %883 = vector.extract_strided_slice %882 {offsets = [0, 0], sizes = [8, 32], strides = [1, 1]} : vector<8x128xf32> to vector<8x32xf32>
    %884 = vector.extract_strided_slice %882 {offsets = [0, 32], sizes = [8, 32], strides = [1, 1]} : vector<8x128xf32> to vector<8x32xf32>
    %885 = vector.extract_strided_slice %882 {offsets = [0, 64], sizes = [8, 32], strides = [1, 1]} : vector<8x128xf32> to vector<8x32xf32>
    %cst_213 = arith.constant 2.000000e+00 : f32
    %886 = vector.broadcast %cst_213 : f32 to vector<8x32xf32>
    %887 = arith.mulf %886, %885 : vector<8x32xf32>
    %cst_214 = arith.constant 1.000000e+00 : f32
    %888 = vector.broadcast %cst_214 : f32 to vector<8x32xf32>
    %889 = arith.subf %887, %888 : vector<8x32xf32>
    %890 = vector.extract_strided_slice %882 {offsets = [0, 96], sizes = [8, 32], strides = [1, 1]} : vector<8x128xf32> to vector<8x32xf32>
    %891 = arith.mulf %884, %851 : vector<8x32xf32>
    %892 = arith.mulf %883, %889 : vector<8x32xf32>
    %893 = arith.addf %891, %892 : vector<8x32xf32>
    %894 = math.tanh %893 : vector<8x32xf32>
    %895 = arith.mulf %890, %894 : vector<8x32xf32>
    %cst_215 = arith.constant dense<0.000000e+00> : vector<8x128xf32>
    %896 = tpu.matmul %895, %13, %cst_215 {dimension_numbers = #tpu.dot_dimension_numbers<[1], [0], [0], [1], [0, 0, 1, 1], [], []>} : vector<8x32xf32>, vector<32x128xf32>, vector<8x128xf32> -> vector<8x128xf32>
    %897 = arith.addf %896, %15 : vector<8x128xf32>
    %cst_216 = arith.constant dense<0.000000e+00> : vector<8x128xf32>
    %898 = tpu.matmul %875, %9, %cst_216 {dimension_numbers = #tpu.dot_dimension_numbers<[1], [0], [0], [1], [0, 0, 1, 1], [], []>} : vector<8x32xf32>, vector<32x128xf32>, vector<8x128xf32> -> vector<8x128xf32>
    %899 = arith.addf %333, %898 : vector<8x128xf32>
    %900 = arith.negf %899 : vector<8x128xf32>
    %901 = math.exp %900 : vector<8x128xf32>
    %cst_217 = arith.constant 1.000000e+00 : f32
    %902 = vector.broadcast %cst_217 : f32 to vector<8x128xf32>
    %903 = arith.addf %902, %901 : vector<8x128xf32>
    %904 = arith.divf %902, %903 : vector<8x128xf32>
    %905 = vector.extract_strided_slice %904 {offsets = [0, 0], sizes = [8, 32], strides = [1, 1]} : vector<8x128xf32> to vector<8x32xf32>
    %906 = vector.extract_strided_slice %904 {offsets = [0, 32], sizes = [8, 32], strides = [1, 1]} : vector<8x128xf32> to vector<8x32xf32>
    %907 = vector.extract_strided_slice %904 {offsets = [0, 64], sizes = [8, 32], strides = [1, 1]} : vector<8x128xf32> to vector<8x32xf32>
    %cst_218 = arith.constant 2.000000e+00 : f32
    %908 = vector.broadcast %cst_218 : f32 to vector<8x32xf32>
    %909 = arith.mulf %908, %907 : vector<8x32xf32>
    %cst_219 = arith.constant 1.000000e+00 : f32
    %910 = vector.broadcast %cst_219 : f32 to vector<8x32xf32>
    %911 = arith.subf %909, %910 : vector<8x32xf32>
    %912 = vector.extract_strided_slice %904 {offsets = [0, 96], sizes = [8, 32], strides = [1, 1]} : vector<8x128xf32> to vector<8x32xf32>
    %913 = arith.mulf %906, %873 : vector<8x32xf32>
    %914 = arith.mulf %905, %911 : vector<8x32xf32>
    %915 = arith.addf %913, %914 : vector<8x32xf32>
    %916 = math.tanh %915 : vector<8x32xf32>
    %917 = arith.mulf %912, %916 : vector<8x32xf32>
    %cst_220 = arith.constant dense<0.000000e+00> : vector<8x128xf32>
    %918 = tpu.matmul %917, %11, %cst_220 {dimension_numbers = #tpu.dot_dimension_numbers<[1], [0], [0], [1], [0, 0, 1, 1], [], []>} : vector<8x32xf32>, vector<32x128xf32>, vector<8x128xf32> -> vector<8x128xf32>
    %919 = arith.addf %897, %918 : vector<8x128xf32>
    %920 = arith.negf %919 : vector<8x128xf32>
    %921 = math.exp %920 : vector<8x128xf32>
    %cst_221 = arith.constant 1.000000e+00 : f32
    %922 = vector.broadcast %cst_221 : f32 to vector<8x128xf32>
    %923 = arith.addf %922, %921 : vector<8x128xf32>
    %924 = arith.divf %922, %923 : vector<8x128xf32>
    %925 = vector.extract_strided_slice %924 {offsets = [0, 0], sizes = [8, 32], strides = [1, 1]} : vector<8x128xf32> to vector<8x32xf32>
    %926 = vector.extract_strided_slice %924 {offsets = [0, 32], sizes = [8, 32], strides = [1, 1]} : vector<8x128xf32> to vector<8x32xf32>
    %927 = vector.extract_strided_slice %924 {offsets = [0, 64], sizes = [8, 32], strides = [1, 1]} : vector<8x128xf32> to vector<8x32xf32>
    %cst_222 = arith.constant 2.000000e+00 : f32
    %928 = vector.broadcast %cst_222 : f32 to vector<8x32xf32>
    %929 = arith.mulf %928, %927 : vector<8x32xf32>
    %cst_223 = arith.constant 1.000000e+00 : f32
    %930 = vector.broadcast %cst_223 : f32 to vector<8x32xf32>
    %931 = arith.subf %929, %930 : vector<8x32xf32>
    %932 = vector.extract_strided_slice %924 {offsets = [0, 96], sizes = [8, 32], strides = [1, 1]} : vector<8x128xf32> to vector<8x32xf32>
    %933 = arith.mulf %926, %893 : vector<8x32xf32>
    %934 = arith.mulf %925, %931 : vector<8x32xf32>
    %935 = arith.addf %933, %934 : vector<8x32xf32>
    %936 = math.tanh %935 : vector<8x32xf32>
    %937 = arith.mulf %932, %936 : vector<8x32xf32>
    %cst_224 = arith.constant dense<0.000000e+00> : vector<8x128xf32>
    %938 = tpu.matmul %937, %13, %cst_224 {dimension_numbers = #tpu.dot_dimension_numbers<[1], [0], [0], [1], [0, 0, 1, 1], [], []>} : vector<8x32xf32>, vector<32x128xf32>, vector<8x128xf32> -> vector<8x128xf32>
    %939 = arith.addf %938, %15 : vector<8x128xf32>
    %cst_225 = arith.constant dense<0.000000e+00> : vector<8x128xf32>
    %940 = tpu.matmul %917, %9, %cst_225 {dimension_numbers = #tpu.dot_dimension_numbers<[1], [0], [0], [1], [0, 0, 1, 1], [], []>} : vector<8x32xf32>, vector<32x128xf32>, vector<8x128xf32> -> vector<8x128xf32>
    %941 = arith.addf %525, %940 : vector<8x128xf32>
    %942 = arith.negf %941 : vector<8x128xf32>
    %943 = math.exp %942 : vector<8x128xf32>
    %cst_226 = arith.constant 1.000000e+00 : f32
    %944 = vector.broadcast %cst_226 : f32 to vector<8x128xf32>
    %945 = arith.addf %944, %943 : vector<8x128xf32>
    %946 = arith.divf %944, %945 : vector<8x128xf32>
    %947 = vector.extract_strided_slice %946 {offsets = [0, 0], sizes = [8, 32], strides = [1, 1]} : vector<8x128xf32> to vector<8x32xf32>
    %948 = vector.extract_strided_slice %946 {offsets = [0, 32], sizes = [8, 32], strides = [1, 1]} : vector<8x128xf32> to vector<8x32xf32>
    %949 = vector.extract_strided_slice %946 {offsets = [0, 64], sizes = [8, 32], strides = [1, 1]} : vector<8x128xf32> to vector<8x32xf32>
    %cst_227 = arith.constant 2.000000e+00 : f32
    %950 = vector.broadcast %cst_227 : f32 to vector<8x32xf32>
    %951 = arith.mulf %950, %949 : vector<8x32xf32>
    %cst_228 = arith.constant 1.000000e+00 : f32
    %952 = vector.broadcast %cst_228 : f32 to vector<8x32xf32>
    %953 = arith.subf %951, %952 : vector<8x32xf32>
    %954 = vector.extract_strided_slice %946 {offsets = [0, 96], sizes = [8, 32], strides = [1, 1]} : vector<8x128xf32> to vector<8x32xf32>
    %955 = arith.mulf %948, %915 : vector<8x32xf32>
    %956 = arith.mulf %947, %953 : vector<8x32xf32>
    %957 = arith.addf %955, %956 : vector<8x32xf32>
    %958 = math.tanh %957 : vector<8x32xf32>
    %959 = arith.mulf %954, %958 : vector<8x32xf32>
    %cst_229 = arith.constant dense<0.000000e+00> : vector<8x128xf32>
    %960 = tpu.matmul %959, %11, %cst_229 {dimension_numbers = #tpu.dot_dimension_numbers<[1], [0], [0], [1], [0, 0, 1, 1], [], []>} : vector<8x32xf32>, vector<32x128xf32>, vector<8x128xf32> -> vector<8x128xf32>
    %961 = arith.addf %939, %960 : vector<8x128xf32>
    %962 = arith.negf %961 : vector<8x128xf32>
    %963 = math.exp %962 : vector<8x128xf32>
    %cst_230 = arith.constant 1.000000e+00 : f32
    %964 = vector.broadcast %cst_230 : f32 to vector<8x128xf32>
    %965 = arith.addf %964, %963 : vector<8x128xf32>
    %966 = arith.divf %964, %965 : vector<8x128xf32>
    %967 = vector.extract_strided_slice %966 {offsets = [0, 0], sizes = [8, 32], strides = [1, 1]} : vector<8x128xf32> to vector<8x32xf32>
    %968 = vector.extract_strided_slice %966 {offsets = [0, 32], sizes = [8, 32], strides = [1, 1]} : vector<8x128xf32> to vector<8x32xf32>
    %969 = vector.extract_strided_slice %966 {offsets = [0, 64], sizes = [8, 32], strides = [1, 1]} : vector<8x128xf32> to vector<8x32xf32>
    %cst_231 = arith.constant 2.000000e+00 : f32
    %970 = vector.broadcast %cst_231 : f32 to vector<8x32xf32>
    %971 = arith.mulf %970, %969 : vector<8x32xf32>
    %cst_232 = arith.constant 1.000000e+00 : f32
    %972 = vector.broadcast %cst_232 : f32 to vector<8x32xf32>
    %973 = arith.subf %971, %972 : vector<8x32xf32>
    %974 = vector.extract_strided_slice %966 {offsets = [0, 96], sizes = [8, 32], strides = [1, 1]} : vector<8x128xf32> to vector<8x32xf32>
    %975 = arith.mulf %968, %935 : vector<8x32xf32>
    %976 = arith.mulf %967, %973 : vector<8x32xf32>
    %977 = arith.addf %975, %976 : vector<8x32xf32>
    %978 = math.tanh %977 : vector<8x32xf32>
    %979 = arith.mulf %974, %978 : vector<8x32xf32>
    %cst_233 = arith.constant dense<0.000000e+00> : vector<8x128xf32>
    %980 = tpu.matmul %979, %13, %cst_233 {dimension_numbers = #tpu.dot_dimension_numbers<[1], [0], [0], [1], [0, 0, 1, 1], [], []>} : vector<8x32xf32>, vector<32x128xf32>, vector<8x128xf32> -> vector<8x128xf32>
    %981 = arith.addf %980, %15 : vector<8x128xf32>
    %cst_234 = arith.constant dense<0.000000e+00> : vector<8x128xf32>
    %982 = tpu.matmul %959, %9, %cst_234 {dimension_numbers = #tpu.dot_dimension_numbers<[1], [0], [0], [1], [0, 0, 1, 1], [], []>} : vector<8x32xf32>, vector<32x128xf32>, vector<8x128xf32> -> vector<8x128xf32>
    %983 = arith.addf %759, %982 : vector<8x128xf32>
    %984 = arith.negf %983 : vector<8x128xf32>
    %985 = math.exp %984 : vector<8x128xf32>
    %cst_235 = arith.constant 1.000000e+00 : f32
    %986 = vector.broadcast %cst_235 : f32 to vector<8x128xf32>
    %987 = arith.addf %986, %985 : vector<8x128xf32>
    %988 = arith.divf %986, %987 : vector<8x128xf32>
    %989 = vector.extract_strided_slice %988 {offsets = [0, 0], sizes = [8, 32], strides = [1, 1]} : vector<8x128xf32> to vector<8x32xf32>
    %990 = vector.extract_strided_slice %988 {offsets = [0, 32], sizes = [8, 32], strides = [1, 1]} : vector<8x128xf32> to vector<8x32xf32>
    %991 = vector.extract_strided_slice %988 {offsets = [0, 64], sizes = [8, 32], strides = [1, 1]} : vector<8x128xf32> to vector<8x32xf32>
    %cst_236 = arith.constant 2.000000e+00 : f32
    %992 = vector.broadcast %cst_236 : f32 to vector<8x32xf32>
    %993 = arith.mulf %992, %991 : vector<8x32xf32>
    %cst_237 = arith.constant 1.000000e+00 : f32
    %994 = vector.broadcast %cst_237 : f32 to vector<8x32xf32>
    %995 = arith.subf %993, %994 : vector<8x32xf32>
    %996 = vector.extract_strided_slice %988 {offsets = [0, 96], sizes = [8, 32], strides = [1, 1]} : vector<8x128xf32> to vector<8x32xf32>
    %997 = arith.mulf %990, %957 : vector<8x32xf32>
    %998 = arith.mulf %989, %995 : vector<8x32xf32>
    %999 = arith.addf %997, %998 : vector<8x32xf32>
    %1000 = math.tanh %999 : vector<8x32xf32>
    %1001 = arith.mulf %996, %1000 : vector<8x32xf32>
    %cst_238 = arith.constant dense<0.000000e+00> : vector<8x128xf32>
    %1002 = tpu.matmul %1001, %11, %cst_238 {dimension_numbers = #tpu.dot_dimension_numbers<[1], [0], [0], [1], [0, 0, 1, 1], [], []>} : vector<8x32xf32>, vector<32x128xf32>, vector<8x128xf32> -> vector<8x128xf32>
    %1003 = arith.addf %981, %1002 : vector<8x128xf32>
    %1004 = arith.negf %1003 : vector<8x128xf32>
    %1005 = math.exp %1004 : vector<8x128xf32>
    %cst_239 = arith.constant 1.000000e+00 : f32
    %1006 = vector.broadcast %cst_239 : f32 to vector<8x128xf32>
    %1007 = arith.addf %1006, %1005 : vector<8x128xf32>
    %1008 = arith.divf %1006, %1007 : vector<8x128xf32>
    %1009 = vector.extract_strided_slice %1008 {offsets = [0, 0], sizes = [8, 32], strides = [1, 1]} : vector<8x128xf32> to vector<8x32xf32>
    %1010 = vector.extract_strided_slice %1008 {offsets = [0, 32], sizes = [8, 32], strides = [1, 1]} : vector<8x128xf32> to vector<8x32xf32>
    %1011 = vector.extract_strided_slice %1008 {offsets = [0, 64], sizes = [8, 32], strides = [1, 1]} : vector<8x128xf32> to vector<8x32xf32>
    %cst_240 = arith.constant 2.000000e+00 : f32
    %1012 = vector.broadcast %cst_240 : f32 to vector<8x32xf32>
    %1013 = arith.mulf %1012, %1011 : vector<8x32xf32>
    %cst_241 = arith.constant 1.000000e+00 : f32
    %1014 = vector.broadcast %cst_241 : f32 to vector<8x32xf32>
    %1015 = arith.subf %1013, %1014 : vector<8x32xf32>
    %1016 = vector.extract_strided_slice %1008 {offsets = [0, 96], sizes = [8, 32], strides = [1, 1]} : vector<8x128xf32> to vector<8x32xf32>
    %1017 = arith.mulf %1010, %977 : vector<8x32xf32>
    %1018 = arith.mulf %1009, %1015 : vector<8x32xf32>
    %1019 = arith.addf %1017, %1018 : vector<8x32xf32>
    %1020 = math.tanh %1019 : vector<8x32xf32>
    %1021 = arith.mulf %1016, %1020 : vector<8x32xf32>
    %cst_242 = arith.constant dense<0.000000e+00> : vector<8x64xf32>
    %1022 = tpu.matmul %1021, %16, %cst_242 {dimension_numbers = #tpu.dot_dimension_numbers<[1], [0], [0], [1], [0, 0, 1, 1], [], []>} : vector<8x32xf32>, vector<32x64xf32>, vector<8x64xf32> -> vector<8x64xf32>
    %cst_243 = arith.constant dense<0xFF800000> : vector<8xf32>
    %1023 = vector.multi_reduction <maximumf>, %1022, %cst_243 [1] : vector<8x64xf32> to vector<8xf32>
    %1024 = vector.shape_cast %1023 : vector<8xf32> to vector<8x1xf32>
    %1025 = vector.broadcast %1024 : vector<8x1xf32> to vector<8x64xf32>
    %1026 = arith.cmpf oeq, %1022, %1025 : vector<8x64xf32>
    %c64_i32_244 = arith.constant 64 : i32
    %1027 = vector.broadcast %c64_i32_244 : i32 to vector<8x64xi32>
    %1028 = arith.select %1026, %17, %1027 : vector<8x64xi1>, vector<8x64xi32>
    %cst_245 = arith.constant dense<2147483647> : vector<8xi32>
    %1029 = vector.multi_reduction <minsi>, %1028, %cst_245 [1] : vector<8x64xi32> to vector<8xi32>
    %1030 = vector.shape_cast %1029 : vector<8xi32> to vector<8x1xi32>
    %1031 = vector.broadcast %1024 : vector<8x1xf32> to vector<8x64xf32>
    %1032 = arith.subf %1022, %1031 : vector<8x64xf32>
    %1033 = math.exp %1032 : vector<8x64xf32>
    %cst_246 = arith.constant dense<0.000000e+00> : vector<8xf32>
    %1034 = vector.multi_reduction <add>, %1033, %cst_246 [1] : vector<8x64xf32> to vector<8xf32>
    %1035 = vector.shape_cast %1034 : vector<8xf32> to vector<8x1xf32>
    %1036 = math.log %1035 : vector<8x1xf32>
    %1037 = vector.broadcast %1024 : vector<8x1xf32> to vector<8x64xf32>
    %1038 = arith.subf %1022, %1037 : vector<8x64xf32>
    %1039 = vector.broadcast %1036 : vector<8x1xf32> to vector<8x64xf32>
    %1040 = arith.subf %1038, %1039 : vector<8x64xf32>
    %1041 = tpu.concatenate %85, %193, %343, %535, %769, %1040 in 1 : vector<8x64xf32>, vector<8x64xf32>, vector<8x64xf32>, vector<8x64xf32>, vector<8x64xf32>, vector<8x64xf32> -> vector<8x384xf32>
    %c0_247 = arith.constant 0 : index
    %c0_248 = arith.constant 0 : index
    %1042 = vector.load %arg11[%c0_247, %c0_248] : memref<8x384xf32, #tpu.memory_space<vmem>>, vector<8x384xf32>
    tpu.vector_store %arg11[%c0_247, %c0_248], %1041 {strides = array<i32>} : memref<8x384xf32, #tpu.memory_space<vmem>>, vector<8x384xf32>,
    %1043 = tpu.concatenate %18, %70, %178, %328, %520, %754, %1030 in 1 : vector<8x1xi32>, vector<8x1xi32>, vector<8x1xi32>, vector<8x1xi32>, vector<8x1xi32>, vector<8x1xi32>, vector<8x1xi32> -> vector<8x7xi32>
    %c0_249 = arith.constant 0 : index
    %c0_250 = arith.constant 0 : index
    %1044 = vector.load %arg12[%c0_249, %c0_250] : memref<8x7xi32, #tpu.memory_space<vmem>>, vector<8x7xi32>
    tpu.vector_store %arg12[%c0_249, %c0_250], %1043 {strides = array<i32>} : memref<8x7xi32, #tpu.memory_space<vmem>>, vector<8x7xi32>,
    return
  }
  func.func @transform_0(%arg0: i32) -> (i32, i32) {
    %c0_i32 = arith.constant 0 : i32
    %c0_i32_0 = arith.constant 0 : i32
    %c0_i32_1 = arith.constant 0 : i32
    return %c0_i32, %c0_i32_0 : i32, i32
  }
  func.func @transform_1(%arg0: i32) -> (i32, i32) {
    %c0_i32 = arith.constant 0 : i32
    %c0_i32_0 = arith.constant 0 : i32
    %c0_i32_1 = arith.constant 0 : i32
    return %c0_i32, %c0_i32_0 : i32, i32
  }
  func.func @transform_2(%arg0: i32) -> (i32, i32) {
    %c0_i32 = arith.constant 0 : i32
    %c0_i32_0 = arith.constant 0 : i32
    %c0_i32_1 = arith.constant 0 : i32
    return %c0_i32, %c0_i32_0 : i32, i32
  }
  func.func @transform_3(%arg0: i32) -> (i32, i32) {
    %c0_i32 = arith.constant 0 : i32
    %c0_i32_0 = arith.constant 0 : i32
    %c0_i32_1 = arith.constant 0 : i32
    return %c0_i32, %c0_i32_0 : i32, i32
  }
  func.func @transform_4(%arg0: i32) -> (i32, i32) {
    %c0_i32 = arith.constant 0 : i32
    %c0_i32_0 = arith.constant 0 : i32
    %c0_i32_1 = arith.constant 0 : i32
    return %c0_i32, %c0_i32_0 : i32, i32
  }
  func.func @transform_5(%arg0: i32) -> (i32, i32) {
    %c0_i32 = arith.constant 0 : i32
    %c0_i32_0 = arith.constant 0 : i32
    %c0_i32_1 = arith.constant 0 : i32
    return %c0_i32, %c0_i32_0 : i32, i32
  }
  func.func @transform_6(%arg0: i32) -> (i32, i32, i32) {
    %c0_i32 = arith.constant 0 : i32
    %c0_i32_0 = arith.constant 0 : i32
    %c0_i32_1 = arith.constant 0 : i32
    %c0_i32_2 = arith.constant 0 : i32
    return %c0_i32, %c0_i32_0, %c0_i32_1 : i32, i32, i32
  }
  func.func @transform_7(%arg0: i32) -> (i32, i32, i32) {
    %c0_i32 = arith.constant 0 : i32
    %c0_i32_0 = arith.constant 0 : i32
    %c0_i32_1 = arith.constant 0 : i32
    %c0_i32_2 = arith.constant 0 : i32
    return %c0_i32, %c0_i32_0, %c0_i32_1 : i32, i32, i32
  }
  func.func @transform_8(%arg0: i32) -> (i32, i32, i32) {
    %c0_i32 = arith.constant 0 : i32
    %c0_i32_0 = arith.constant 0 : i32
    %c0_i32_1 = arith.constant 0 : i32
    %c0_i32_2 = arith.constant 0 : i32
    return %c0_i32, %c0_i32_0, %c0_i32_1 : i32, i32, i32
  }
  func.func @transform_9(%arg0: i32) -> (i32, i32) {
    %c0_i32 = arith.constant 0 : i32
    %c0_i32_0 = arith.constant 0 : i32
    %c0_i32_1 = arith.constant 0 : i32
    return %c0_i32, %c0_i32_0 : i32, i32
  }
  func.func @transform_10(%arg0: i32) -> (i32, i32) {
    %c0_i32 = arith.constant 0 : i32
    %c0_i32_0 = arith.constant 0 : i32
    %c0_i32_1 = arith.constant 0 : i32
    return %c0_i32, %c0_i32_0 : i32, i32
  }
  func.func @transform_11(%arg0: i32) -> (i32, i32) {
    %c0_i32 = arith.constant 0 : i32
    %c0_i32_0 = arith.constant 0 : i32
    %c0_i32_1 = arith.constant 0 : i32
    return %c0_i32, %c0_i32_0 : i32, i32
  }
}

</mosaic_0001>

<llo_original>
// kernel: actor_forward.1
$region0: #{actor_forward.1}
  #allocation0 [shape = 'u32[]', space=smem, size = 0x4, offset = 0x4, fixed_abs, tag = 'smem constant byte address 0x4 - core index']
  #allocation1 [shape = 'u32[72,128]{1,0:T(1,128)}', space=vmem, size = 0x9000, scoped, tag = 'internal scratch']
  %s0 = inlined_call_operand.vmem [shape: f32[8,1000], index: 0, kind: input, shape index: {}]
  %s1 = inlined_call_operand.vmem [shape: f32[1000,32], index: 1, kind: input, shape index: {}]
  %s2 = inlined_call_operand.vmem [shape: f32[1,32], index: 2, kind: input, shape index: {}]
  %s3 = inlined_call_operand.vmem [shape: f32[8,128], index: 3, kind: input, shape index: {}]
  %s4 = inlined_call_operand.vmem [shape: f32[64,128], index: 4, kind: input, shape index: {}]
  %s5 = inlined_call_operand.vmem [shape: f32[32,128], index: 5, kind: input, shape index: {}]
  %s6 = inlined_call_operand.vmem [shape: f32[1,32,128], index: 6, kind: input, shape index: {}]
  %s7 = inlined_call_operand.vmem [shape: f32[1,32,128], index: 7, kind: input, shape index: {}]
  %s8 = inlined_call_operand.vmem [shape: f32[1,8,128], index: 8, kind: input, shape index: {}]
  %s9 = inlined_call_operand.vmem [shape: f32[32,64], index: 9, kind: input, shape index: {}]
  %s10 = inlined_call_operand.vmem [shape: f32[8,384], index: 10, kind: output, shape index: {0}]
  %s11 = inlined_call_operand.hbm [shape: s32[8,7], index: 11, kind: output, shape index: {1}]
  %12 = xla_tuple %s10, %s11
  %s13 = sld [smem:[#allocation0]]
  $region58: #{actor_forward.1} parent=0
    _
  %s15 = ssub.s32 1, %s13
  %s16 = scalar_select 0, %s15, %s13
  $region1: #{actor_forward.1} parent=0
    #allocation2 [shape = 'u8[4096]{0}', space=vmem, size = 0x1000, scoped, tag = 'output window, operand 1, single buffered']
    #allocation3 [shape = 's32[1]{0}', space=sflag, size = 0x4, scoped, tag = 'scoped memory for actor_forward.1']
    %17 = vsyncpa [#allocation3], 0
    // Predicated region
    $region2: #{actor_forward.1} parent=1 // pred_check
      _
    $region3: #{actor_forward.1} parent=1 // pred_check_branch
      %19 = sbr.rel (0) target = $region5
    $region4: #{actor_forward.1} parent=1 // pred_region
      _
    $region5: #{actor_forward.1} parent=1 // pred_fallthru
      _
    // Predicated region
    $region6: #{actor_forward.1} parent=1 // pred_check
      _
    $region7: #{actor_forward.1} parent=1 // pred_check_branch
      %21 = sbr.rel (0) target = $region9
    $region8: #{actor_forward.1} parent=1 // pred_region
      _
    $region9: #{actor_forward.1} parent=1 // pred_fallthru
      _
    // Predicated region
    $region10: #{actor_forward.1} parent=1 // pred_check
      _
    $region11: #{actor_forward.1} parent=1 // pred_check_branch
      %23 = sbr.rel (0) target = $region13
    $region12: #{actor_forward.1} parent=1 // pred_region
      _
    $region13: #{actor_forward.1} parent=1 // pred_fallthru
      _
    // Predicated region
    $region14: #{actor_forward.1} parent=1 // pred_check
      _
    $region15: #{actor_forward.1} parent=1 // pred_check_branch
      %25 = sbr.rel (0) target = $region17
    $region16: #{actor_forward.1} parent=1 // pred_region
      _
    $region17: #{actor_forward.1} parent=1 // pred_fallthru
      _
    // Predicated region
    $region18: #{actor_forward.1} parent=1 // pred_check
      _
    $region19: #{actor_forward.1} parent=1 // pred_check_branch
      %27 = sbr.rel (0) target = $region21
    $region20: #{actor_forward.1} parent=1 // pred_region
      _
    $region21: #{actor_forward.1} parent=1 // pred_fallthru
      _
    // Predicated region
    $region22: #{actor_forward.1} parent=1 // pred_check
      _
    $region23: #{actor_forward.1} parent=1 // pred_check_branch
      %29 = sbr.rel (0) target = $region25
    $region24: #{actor_forward.1} parent=1 // pred_region
      _
    $region25: #{actor_forward.1} parent=1 // pred_fallthru
      _
    // Predicated region
    $region26: #{actor_forward.1} parent=1 // pred_check
      _
    $region27: #{actor_forward.1} parent=1 // pred_check_branch
      %31 = sbr.rel (0) target = $region29
    $region28: #{actor_forward.1} parent=1 // pred_region
      _
    $region29: #{actor_forward.1} parent=1 // pred_fallthru
      _
    // Predicated region
    $region30: #{actor_forward.1} parent=1 // pred_check
      _
    $region31: #{actor_forward.1} parent=1 // pred_check_branch
      %33 = sbr.rel (0) target = $region33
    $region32: #{actor_forward.1} parent=1 // pred_region
      _
    $region33: #{actor_forward.1} parent=1 // pred_fallthru
      _
    // Predicated region
    $region34: #{actor_forward.1} parent=1 // pred_check
      _
    $region35: #{actor_forward.1} parent=1 // pred_check_branch
      %35 = sbr.rel (0) target = $region37
    $region36: #{actor_forward.1} parent=1 // pred_region
      _
    $region37: #{actor_forward.1} parent=1 // pred_fallthru
      _
    // Predicated region
    $region38: #{actor_forward.1} parent=1 // pred_check
      _
    $region39: #{actor_forward.1} parent=1 // pred_check_branch
      %37 = sbr.rel (0) target = $region41
    $region40: #{actor_forward.1} parent=1 // pred_region
      _
    $region41: #{actor_forward.1} parent=1 // pred_fallthru
      _
    %v38 = vld [vmem:[%s0] sm:$0xff]
    %v39 = vld [vmem:[%s0 + $0x8] sm:$0xff]
    %v40 = vld [vmem:[%s0 + $0x10] sm:$0xff]
    %v41 = vld [vmem:[%s0 + $0x18] sm:$0xff]
    %v42 = vld [vmem:[%s0 + $0x20] sm:$0xff]
    %v43 = vld [vmem:[%s0 + $0x28] sm:$0xff]
    %v44 = vld [vmem:[%s0 + $0x30] sm:$0xff]
    %v45 = vld [vmem:[%s0 + $0x38] sm:$0xff]
    %v46 = vld [vmem:[%s1] sm:$0xff]
    %v47 = vld [vmem:[%s1 + $0x8] sm:$0xff]
    %v48 = vld [vmem:[%s1 + $0x10] sm:$0xff]
    %v49 = vld [vmem:[%s1 + $0x18] sm:$0xff]
    %v50 = vld [vmem:[%s1 + $0x20] sm:$0xff]
    %v51 = vld [vmem:[%s1 + $0x28] sm:$0xff]
    %v52 = vld [vmem:[%s1 + $0x30] sm:$0xff]
    %v53 = vld [vmem:[%s1 + $0x38] sm:$0xff]
    %v54 = vld [vmem:[%s1 + $0x40] sm:$0xff]
    %v55 = vld [vmem:[%s1 + $0x48] sm:$0xff]
    %v56 = vld [vmem:[%s1 + $0x50] sm:$0xff]
    %v57 = vld [vmem:[%s1 + $0x58] sm:$0xff]
    %v58 = vld [vmem:[%s1 + $0x60] sm:$0xff]
    %v59 = vld [vmem:[%s1 + $0x68] sm:$0xff]
    %v60 = vld [vmem:[%s1 + $0x70] sm:$0xff]
    %v61 = vld [vmem:[%s1 + $0x78] sm:$0xff]
    %v62 = vld [vmem:[%s1 + $0x80] sm:$0xff]
    %v63 = vld [vmem:[%s1 + $0x88] sm:$0xff]
    %v64 = vld [vmem:[%s1 + $0x90] sm:$0xff]
    %v65 = vld [vmem:[%s1 + $0x98] sm:$0xff]
    %v66 = vld [vmem:[%s1 + $0xa0] sm:$0xff]
    %v67 = vld [vmem:[%s1 + $0xa8] sm:$0xff]
    %v68 = vld [vmem:[%s1 + $0xb0] sm:$0xff]
    %v69 = vld [vmem:[%s1 + $0xb8] sm:$0xff]
    %v70 = vld [vmem:[%s1 + $0xc0] sm:$0xff]
    %v71 = vld [vmem:[%s1 + $0xc8] sm:$0xff]
    %v72 = vld [vmem:[%s1 + $0xd0] sm:$0xff]
    %v73 = vld [vmem:[%s1 + $0xd8] sm:$0xff]
    %v74 = vld [vmem:[%s1 + $0xe0] sm:$0xff]
    %v75 = vld [vmem:[%s1 + $0xe8] sm:$0xff]
    %v76 = vld [vmem:[%s1 + $0xf0] sm:$0xff]
    %v77 = vld [vmem:[%s1 + $0xf8] sm:$0xff]
    %v78 = vld [vmem:[%s1 + $0x100] sm:$0xff]
    %v79 = vld [vmem:[%s1 + $0x108] sm:$0xff]
    %v80 = vld [vmem:[%s1 + $0x110] sm:$0xff]
    %v81 = vld [vmem:[%s1 + $0x118] sm:$0xff]
    %v82 = vld [vmem:[%s1 + $0x120] sm:$0xff]
    %v83 = vld [vmem:[%s1 + $0x128] sm:$0xff]
    %v84 = vld [vmem:[%s1 + $0x130] sm:$0xff]
    %v85 = vld [vmem:[%s1 + $0x138] sm:$0xff]
    %v86 = vld [vmem:[%s1 + $0x140] sm:$0xff]
    %v87 = vld [vmem:[%s1 + $0x148] sm:$0xff]
    %v88 = vld [vmem:[%s1 + $0x150] sm:$0xff]
    %v89 = vld [vmem:[%s1 + $0x158] sm:$0xff]
    %v90 = vld [vmem:[%s1 + $0x160] sm:$0xff]
    %v91 = vld [vmem:[%s1 + $0x168] sm:$0xff]
    %v92 = vld [vmem:[%s1 + $0x170] sm:$0xff]
    %v93 = vld [vmem:[%s1 + $0x178] sm:$0xff]
    %v94 = vld [vmem:[%s1 + $0x180] sm:$0xff]
    %v95 = vld [vmem:[%s1 + $0x188] sm:$0xff]
    %v96 = vld [vmem:[%s1 + $0x190] sm:$0xff]
    %v97 = vld [vmem:[%s1 + $0x198] sm:$0xff]
    %v98 = vld [vmem:[%s1 + $0x1a0] sm:$0xff]
    %v99 = vld [vmem:[%s1 + $0x1a8] sm:$0xff]
    %v100 = vld [vmem:[%s1 + $0x1b0] sm:$0xff]
    %v101 = vld [vmem:[%s1 + $0x1b8] sm:$0xff]
    %v102 = vld [vmem:[%s1 + $0x1c0] sm:$0xff]
    %v103 = vld [vmem:[%s1 + $0x1c8] sm:$0xff]
    %v104 = vld [vmem:[%s1 + $0x1d0] sm:$0xff]
    %v105 = vld [vmem:[%s1 + $0x1d8] sm:$0xff]
    %v106 = vld [vmem:[%s1 + $0x1e0] sm:$0xff]
    %v107 = vld [vmem:[%s1 + $0x1e8] sm:$0xff]
    %v108 = vld [vmem:[%s1 + $0x1f0] sm:$0xff]
    %v109 = vld [vmem:[%s1 + $0x1f8] sm:$0xff]
    %v110 = vld [vmem:[%s1 + $0x200] sm:$0xff]
    %v111 = vld [vmem:[%s1 + $0x208] sm:$0xff]
    %v112 = vld [vmem:[%s1 + $0x210] sm:$0xff]
    %v113 = vld [vmem:[%s1 + $0x218] sm:$0xff]
    %v114 = vld [vmem:[%s1 + $0x220] sm:$0xff]
    %v115 = vld [vmem:[%s1 + $0x228] sm:$0xff]
    %v116 = vld [vmem:[%s1 + $0x230] sm:$0xff]
    %v117 = vld [vmem:[%s1 + $0x238] sm:$0xff]
    %v118 = vld [vmem:[%s1 + $0x240] sm:$0xff]
    %v119 = vld [vmem:[%s1 + $0x248] sm:$0xff]
    %v120 = vld [vmem:[%s1 + $0x250] sm:$0xff]
    %v121 = vld [vmem:[%s1 + $0x258] sm:$0xff]
    %v122 = vld [vmem:[%s1 + $0x260] sm:$0xff]
    %v123 = vld [vmem:[%s1 + $0x268] sm:$0xff]
    %v124 = vld [vmem:[%s1 + $0x270] sm:$0xff]
    %v125 = vld [vmem:[%s1 + $0x278] sm:$0xff]
    %v126 = vld [vmem:[%s1 + $0x280] sm:$0xff]
    %v127 = vld [vmem:[%s1 + $0x288] sm:$0xff]
    %v128 = vld [vmem:[%s1 + $0x290] sm:$0xff]
    %v129 = vld [vmem:[%s1 + $0x298] sm:$0xff]
    %v130 = vld [vmem:[%s1 + $0x2a0] sm:$0xff]
    %v131 = vld [vmem:[%s1 + $0x2a8] sm:$0xff]
    %v132 = vld [vmem:[%s1 + $0x2b0] sm:$0xff]
    %v133 = vld [vmem:[%s1 + $0x2b8] sm:$0xff]
    %v134 = vld [vmem:[%s1 + $0x2c0] sm:$0xff]
    %v135 = vld [vmem:[%s1 + $0x2c8] sm:$0xff]
    %v136 = vld [vmem:[%s1 + $0x2d0] sm:$0xff]
    %v137 = vld [vmem:[%s1 + $0x2d8] sm:$0xff]
    %v138 = vld [vmem:[%s1 + $0x2e0] sm:$0xff]
    %v139 = vld [vmem:[%s1 + $0x2e8] sm:$0xff]
    %v140 = vld [vmem:[%s1 + $0x2f0] sm:$0xff]
    %v141 = vld [vmem:[%s1 + $0x2f8] sm:$0xff]
    %v142 = vld [vmem:[%s1 + $0x300] sm:$0xff]
    %v143 = vld [vmem:[%s1 + $0x308] sm:$0xff]
    %v144 = vld [vmem:[%s1 + $0x310] sm:$0xff]
    %v145 = vld [vmem:[%s1 + $0x318] sm:$0xff]
    %v146 = vld [vmem:[%s1 + $0x320] sm:$0xff]
    %v147 = vld [vmem:[%s1 + $0x328] sm:$0xff]
    %v148 = vld [vmem:[%s1 + $0x330] sm:$0xff]
    %v149 = vld [vmem:[%s1 + $0x338] sm:$0xff]
    %v150 = vld [vmem:[%s1 + $0x340] sm:$0xff]
    %v151 = vld [vmem:[%s1 + $0x348] sm:$0xff]
    %v152 = vld [vmem:[%s1 + $0x350] sm:$0xff]
    %v153 = vld [vmem:[%s1 + $0x358] sm:$0xff]
    %v154 = vld [vmem:[%s1 + $0x360] sm:$0xff]
    %v155 = vld [vmem:[%s1 + $0x368] sm:$0xff]
    %v156 = vld [vmem:[%s1 + $0x370] sm:$0xff]
    %v157 = vld [vmem:[%s1 + $0x378] sm:$0xff]
    %v158 = vld [vmem:[%s1 + $0x380] sm:$0xff]
    %v159 = vld [vmem:[%s1 + $0x388] sm:$0xff]
    %v160 = vld [vmem:[%s1 + $0x390] sm:$0xff]
    %v161 = vld [vmem:[%s1 + $0x398] sm:$0xff]
    %v162 = vld [vmem:[%s1 + $0x3a0] sm:$0xff]
    %v163 = vld [vmem:[%s1 + $0x3a8] sm:$0xff]
    %v164 = vld [vmem:[%s1 + $0x3b0] sm:$0xff]
    %v165 = vld [vmem:[%s1 + $0x3b8] sm:$0xff]
    %v166 = vld [vmem:[%s1 + $0x3c0] sm:$0xff]
    %v167 = vld [vmem:[%s1 + $0x3c8] sm:$0xff]
    %v168 = vld [vmem:[%s1 + $0x3d0] sm:$0xff]
    %v169 = vld [vmem:[%s1 + $0x3d8] sm:$0xff]
    %v170 = vld [vmem:[%s1 + $0x3e0] sm:$0xff]
    %v171 = vld [vmem:[%s2] sm:$0x1]
    %v173 = vperm.slane %v171, 0
    %vm175 = vcmask 850944
    %v177 = vsel %vm175, %v45, 0
    %179 = vmatpush.msra.mxu0 %v61
    %180 = vmatpush.msra.mxu0 %v60
    %181 = vmatpush.msra.mxu0 %v59
    %182 = vmatpush.msra.mxu0 %v58
    %183 = vmatpush.msra.mxu0 %v57
    %184 = vmatpush.msra.mxu0 %v56
    %185 = vmatpush.msra.mxu0 %v55
    %186 = vmatpush.msra.mxu0 %v54
    %187 = vmatpush.msra.mxu0 %v53
    %188 = vmatpush.msra.mxu0 %v52
    %189 = vmatpush.msra.mxu0 %v51
    %190 = vmatpush.msra.mxu0 %v50
    %191 = vmatpush.msra.mxu0 %v49
    %192 = vmatpush.msra.mxu0 %v48
    %193 = vmatpush.msra.mxu0 %v47
    %194 = vmatpush.msra.mxu0 %v46
    %195 = vmatmul.f32.gmra.mxu0 %v38
    %v196 = vpop.f32.mrf.mxu0
    %v197 = vadd.f32 %v173, %v196
    %198 = vdwg.mxu0
    %199 = vmatpush.msra.mxu0 %v77
    %200 = vmatpush.msra.mxu0 %v76
    %201 = vmatpush.msra.mxu0 %v75
    %202 = vmatpush.msra.mxu0 %v74
    %203 = vmatpush.msra.mxu0 %v73
    %204 = vmatpush.msra.mxu0 %v72
    %205 = vmatpush.msra.mxu0 %v71
    %206 = vmatpush.msra.mxu0 %v70
    %207 = vmatpush.msra.mxu0 %v69
    %208 = vmatpush.msra.mxu0 %v68
    %209 = vmatpush.msra.mxu0 %v67
    %210 = vmatpush.msra.mxu0 %v66
    %211 = vmatpush.msra.mxu0 %v65
    %212 = vmatpush.msra.mxu0 %v64
    %213 = vmatpush.msra.mxu0 %v63
    %214 = vmatpush.msra.mxu0 %v62
    %215 = vmatmul.f32.gmra.mxu0 %v39
    %v216 = vpop.f32.mrf.mxu0
    %v217 = vadd.f32 %v197, %v216
    %218 = vdwg.mxu0
    %219 = vmatpush.msra.mxu0 %v93
    %220 = vmatpush.msra.mxu0 %v92
    %221 = vmatpush.msra.mxu0 %v91
    %222 = vmatpush.msra.mxu0 %v90
    %223 = vmatpush.msra.mxu0 %v89
    %224 = vmatpush.msra.mxu0 %v88
    %225 = vmatpush.msra.mxu0 %v87
    %226 = vmatpush.msra.mxu0 %v86
    %227 = vmatpush.msra.mxu0 %v85
    %228 = vmatpush.msra.mxu0 %v84
    %229 = vmatpush.msra.mxu0 %v83
    %230 = vmatpush.msra.mxu0 %v82
    %231 = vmatpush.msra.mxu0 %v81
    %232 = vmatpush.msra.mxu0 %v80
    %233 = vmatpush.msra.mxu0 %v79
    %234 = vmatpush.msra.mxu0 %v78
    %235 = vmatmul.f32.gmra.mxu0 %v40
    %v236 = vpop.f32.mrf.mxu0
    %v237 = vadd.f32 %v217, %v236
    %238 = vdwg.mxu0
    %239 = vmatpush.msra.mxu0 %v109
    %240 = vmatpush.msra.mxu0 %v108
    %241 = vmatpush.msra.mxu0 %v107
    %242 = vmatpush.msra.mxu0 %v106
    %243 = vmatpush.msra.mxu0 %v105
    %244 = vmatpush.msra.mxu0 %v104
    %245 = vmatpush.msra.mxu0 %v103
    %246 = vmatpush.msra.mxu0 %v102
    %247 = vmatpush.msra.mxu0 %v101
    %248 = vmatpush.msra.mxu0 %v100
    %249 = vmatpush.msra.mxu0 %v99
    %250 = vmatpush.msra.mxu0 %v98
    %251 = vmatpush.msra.mxu0 %v97
    %252 = vmatpush.msra.mxu0 %v96
    %253 = vmatpush.msra.mxu0 %v95
    %254 = vmatpush.msra.mxu0 %v94
    %255 = vmatmul.f32.gmra.mxu0 %v41
    %v256 = vpop.f32.mrf.mxu0
    %v257 = vadd.f32 %v237, %v256
    %258 = vdwg.mxu0
    %259 = vmatpush.msra.mxu0 %v125
    %260 = vmatpush.msra.mxu0 %v124
    %261 = vmatpush.msra.mxu0 %v123
    %262 = vmatpush.msra.mxu0 %v122
    %263 = vmatpush.msra.mxu0 %v121
    %264 = vmatpush.msra.mxu0 %v120
    %265 = vmatpush.msra.mxu0 %v119
    %266 = vmatpush.msra.mxu0 %v118
    %267 = vmatpush.msra.mxu0 %v117
    %268 = vmatpush.msra.mxu0 %v116
    %269 = vmatpush.msra.mxu0 %v115
    %270 = vmatpush.msra.mxu0 %v114
    %271 = vmatpush.msra.mxu0 %v113
    %272 = vmatpush.msra.mxu0 %v112
    %273 = vmatpush.msra.mxu0 %v111
    %274 = vmatpush.msra.mxu0 %v110
    %275 = vmatmul.f32.gmra.mxu0 %v42
    %v276 = vpop.f32.mrf.mxu0
    %v277 = vadd.f32 %v257, %v276
    %278 = vdwg.mxu0
    %279 = vmatpush.msra.mxu0 %v141
    %280 = vmatpush.msra.mxu0 %v140
    %281 = vmatpush.msra.mxu0 %v139
    %282 = vmatpush.msra.mxu0 %v138
    %283 = vmatpush.msra.mxu0 %v137
    %284 = vmatpush.msra.mxu0 %v136
    %285 = vmatpush.msra.mxu0 %v135
    %286 = vmatpush.msra.mxu0 %v134
    %287 = vmatpush.msra.mxu0 %v133
    %288 = vmatpush.msra.mxu0 %v132
    %289 = vmatpush.msra.mxu0 %v131
    %290 = vmatpush.msra.mxu0 %v130
    %291 = vmatpush.msra.mxu0 %v129
    %292 = vmatpush.msra.mxu0 %v128
    %293 = vmatpush.msra.mxu0 %v127
    %294 = vmatpush.msra.mxu0 %v126
    %295 = vmatmul.f32.gmra.mxu0 %v43
    %v296 = vpop.f32.mrf.mxu0
    %v297 = vadd.f32 %v277, %v296
    %298 = vdwg.mxu0
    %299 = vmatpush.msra.mxu0 %v157
    %300 = vmatpush.msra.mxu0 %v156
    %301 = vmatpush.msra.mxu0 %v155
    %302 = vmatpush.msra.mxu0 %v154
    %303 = vmatpush.msra.mxu0 %v153
    %304 = vmatpush.msra.mxu0 %v152
    %305 = vmatpush.msra.mxu0 %v151
    %306 = vmatpush.msra.mxu0 %v150
    %307 = vmatpush.msra.mxu0 %v149
    %308 = vmatpush.msra.mxu0 %v148
    %309 = vmatpush.msra.mxu0 %v147
    %310 = vmatpush.msra.mxu0 %v146
    %311 = vmatpush.msra.mxu0 %v145
    %312 = vmatpush.msra.mxu0 %v144
    %313 = vmatpush.msra.mxu0 %v143
    %314 = vmatpush.msra.mxu0 %v142
    %315 = vmatmul.f32.gmra.mxu0 %v44
    %v316 = vpop.f32.mrf.mxu0
    %v317 = vadd.f32 %v297, %v316
    %318 = vdwg.mxu0
    %319 = vmatpush.msra.mxu0 0.0
    %320 = vmatpush.msra.mxu0 0.0
    %321 = vmatpush.msra.mxu0 0.0
    %322 = vmatpush.msra.mxu0 %v170
    %323 = vmatpush.msra.mxu0 %v169
    %324 = vmatpush.msra.mxu0 %v168
    %325 = vmatpush.msra.mxu0 %v167
    %326 = vmatpush.msra.mxu0 %v166
    %327 = vmatpush.msra.mxu0 %v165
    %328 = vmatpush.msra.mxu0 %v164
    %329 = vmatpush.msra.mxu0 %v163
    %330 = vmatpush.msra.mxu0 %v162
    %331 = vmatpush.msra.mxu0 %v161
    %332 = vmatpush.msra.mxu0 %v160
    %333 = vmatpush.msra.mxu0 %v159
    %334 = vmatpush.msra.mxu0 %v158
    %335 = vmatmul.f32.gmra.mxu0 %v177
    %v336 = vpop.f32.mrf.mxu0
    %v337 = vadd.f32 %v317, %v336
    %338 = vdwg.mxu0
    %v339 = vld [vmem:[%s4] sm:$0xff]
    %v340 = vld [vmem:[%s4 + $0x8] sm:$0xff]
    %v341 = vld [vmem:[%s4 + $0x10] sm:$0xff]
    %v342 = vld [vmem:[%s4 + $0x18] sm:$0xff]
    %v343 = vld [vmem:[%s4 + $0x20] sm:$0xff]
    %v344 = vld [vmem:[%s4 + $0x28] sm:$0xff]
    %v345 = vld [vmem:[%s4 + $0x30] sm:$0xff]
    %v346 = vld [vmem:[%s4 + $0x38] sm:$0xff]
    %v347 = vld [vmem:[%s5] sm:$0xff]
    %v348 = vld [vmem:[%s5 + $0x8] sm:$0xff]
    %v349 = vld [vmem:[%s5 + $0x10] sm:$0xff]
    %v350 = vld [vmem:[%s5 + $0x18] sm:$0xff]
    %v351 = vld [vmem:[%s6] sm:$0xff]
    %v352 = vld [vmem:[%s6 + $0x8] sm:$0xff]
    %v353 = vld [vmem:[%s6 + $0x10] sm:$0xff]
    %v354 = vld [vmem:[%s6 + $0x18] sm:$0xff]
    %v355 = vld [vmem:[%s7] sm:$0xff]
    %v356 = vld [vmem:[%s7 + $0x8] sm:$0xff]
    %v357 = vld [vmem:[%s7 + $0x10] sm:$0xff]
    %v358 = vld [vmem:[%s7 + $0x18] sm:$0xff]
    %v359 = vld [vmem:[%s8] sm:$0xff]
    %v360 = vld [vmem:[%s9] sm:$0xff]
    %v361 = vld [vmem:[%s9 + $0x8] sm:$0xff]
    %v362 = vld [vmem:[%s9 + $0x10] sm:$0xff]
    %v363 = vld [vmem:[%s9 + $0x18] sm:$0xff]
    %v364 = vlaneseq
    %v365 = vand.u32 %v364, 127
    %v366 = vld [vmem:[%s3] sm:$0xff]
    %vm367 = vcmask 261120
    %v369 = vsel %vm367, %v337, 0
    %371 = vmatpush.msra.mxu0 0.0
    %372 = vmatpush.msra.mxu0 0.0
    %373 = vmatpush.msra.mxu0 0.0
    %374 = vmatpush.msra.mxu0 0.0
    %375 = vmatpush.msra.mxu0 0.0
    %376 = vmatpush.msra.mxu0 0.0
    %377 = vmatpush.msra.mxu0 0.0
    %378 = vmatpush.msra.mxu0 0.0
    %379 = vmatpush.msra.mxu0 0.0
    %380 = vmatpush.msra.mxu0 0.0
    %381 = vmatpush.msra.mxu0 0.0
    %382 = vmatpush.msra.mxu0 0.0
    %383 = vmatpush.msra.mxu0 %v358
    %384 = vmatpush.msra.mxu0 %v357
    %385 = vmatpush.msra.mxu0 %v356
    %386 = vmatpush.msra.mxu0 %v355
    %387 = vmatmul.f32.gmra.mxu0 %v369
    %v388 = vpop.f32.mrf.mxu0
    %v389 = vadd.f32 %v359, %v388
    %390 = vdwg.mxu0
    %391 = vmatpush.msra.mxu0 0.0
    %392 = vmatpush.msra.mxu0 0.0
    %393 = vmatpush.msra.mxu0 0.0
    %394 = vmatpush.msra.mxu0 0.0
    %395 = vmatpush.msra.mxu0 0.0
    %396 = vmatpush.msra.mxu0 0.0
    %397 = vmatpush.msra.mxu0 0.0
    %398 = vmatpush.msra.mxu0 0.0
    %399 = vmatpush.msra.mxu0 0.0
    %400 = vmatpush.msra.mxu0 0.0
    %401 = vmatpush.msra.mxu0 0.0
    %402 = vmatpush.msra.mxu0 0.0
    %403 = vmatpush.msra.mxu0 %v350
    %404 = vmatpush.msra.mxu0 %v349
    %405 = vmatpush.msra.mxu0 %v348
    %406 = vmatpush.msra.mxu0 %v347
    %407 = vmatmul.f32.gmra.mxu0 %v369
    %v408 = vpop.f32.mrf.mxu0
    %v409 = vadd.f32 0.0, %v408
    %410 = vdwg.mxu0
    %v411 = vadd.f32 %v366, %v409
    %v412 = vxor.u32 %v411, 2147483648
    %v413 = vmul.f32 %v412, 1.442695
    %v414 = vpow.pop %v413
    %v415 = vadd.f32 %v414, 1.0
    %v416 = vrcp.pop %v415
    %v417 = vmul.f32 %v415, %v416
    %v418 = vsub.f32 1.0, %v417
    %v419 = vmul.f32 %v416, %v418
    %v420 = vadd.f32 %v416, %v419
    %vm421 = vweird.f32 %v415
    %vm422 = vweird.f32 %v416
    %vm423 = vmor %vm421, %vm422
    %v424 = vsel %vm423, %v416, %v420
    %v425 = vand.u32 2147483647, %v415
    %vm426 = vcmp.eq.f32.partialorder %v425, 8.507059e+37
    %v427 = vand.u32 %v415, 2147483648
    %v428 = vor.u32 1.1754944e-38, %v427
    %v429 = vsel %vm426, %v428, %v424
    %v430 = vmul.f32 1.0, %v429
    %v431 = vmul.f32 %v430, 2.0
    %v432 = vsub.f32 %v431, 1.0
    %v433 = vmul.f32 %v430, 0.0
    %435 = vrot.lane.b32.xlu0 %v432, 64
    %v436 = vpop.permute.xlu0 %435
    %v438 = vmul.f32 %v430, %v436
    %440 = vrot.lane.b32.xlu0 %v438, 32
    %v441 = vpop.permute.xlu0 %440
    %v443 = vadd.f32 %v433, %v441
    %v444 = vtanh.pop %v443
    %446 = vrot.lane.b32.xlu0 %v444, 64
    %v447 = vpop.permute.xlu0 %446
    %v449 = vmul.f32 %v430, %v447
    %451 = vrot.lane.b32.xlu0 %v449, 32
    %v452 = vpop.permute.xlu0 %451
    %v453 = vsel %vm367, %v452, 0
    %455 = vmatpush.msra.mxu0 0.0
    %456 = vmatpush.msra.mxu0 0.0
    %457 = vmatpush.msra.mxu0 0.0
    %458 = vmatpush.msra.mxu0 0.0
    %459 = vmatpush.msra.mxu0 0.0
    %460 = vmatpush.msra.mxu0 0.0
    %461 = vmatpush.msra.mxu0 0.0
    %462 = vmatpush.msra.mxu0 0.0
    %463 = vmatpush.msra.mxu0 0.0
    %464 = vmatpush.msra.mxu0 0.0
    %465 = vmatpush.msra.mxu0 0.0
    %466 = vmatpush.msra.mxu0 0.0
    %467 = vmatpush.msra.mxu0 %v354
    %468 = vmatpush.msra.mxu0 %v353
    %469 = vmatpush.msra.mxu0 %v352
    %470 = vmatpush.msra.mxu0 %v351
    %471 = vmatmul.f32.gmra.mxu0 %v453
    %v472 = vpop.f32.mrf.mxu0
    %v473 = vadd.f32 0.0, %v472
    %474 = vdwg.mxu0
    %v475 = vadd.f32 %v389, %v473
    %v476 = vxor.u32 %v475, 2147483648
    %v477 = vmul.f32 %v476, 1.442695
    %v478 = vpow.pop %v477
    %v479 = vadd.f32 %v478, 1.0
    %v480 = vrcp.pop %v479
    %v481 = vmul.f32 %v479, %v480
    %v482 = vsub.f32 1.0, %v481
    %v483 = vmul.f32 %v480, %v482
    %v484 = vadd.f32 %v480, %v483
    %vm485 = vweird.f32 %v479
    %vm486 = vweird.f32 %v480
    %vm487 = vmor %vm485, %vm486
    %v488 = vsel %vm487, %v480, %v484
    %v489 = vand.u32 2147483647, %v479
    %vm490 = vcmp.eq.f32.partialorder %v489, 8.507059e+37
    %v491 = vand.u32 %v479, 2147483648
    %v492 = vor.u32 1.1754944e-38, %v491
    %v493 = vsel %vm490, %v492, %v488
    %v494 = vmul.f32 1.0, %v493
    %v495 = vmul.f32 %v494, 2.0
    %v496 = vsub.f32 %v495, 1.0
    %v497 = vmul.f32 %v494, 0.0
    %499 = vrot.lane.b32.xlu0 %v496, 64
    %v500 = vpop.permute.xlu0 %499
    %v502 = vmul.f32 %v494, %v500
    %504 = vrot.lane.b32.xlu0 %v502, 32
    %v505 = vpop.permute.xlu0 %504
    %v507 = vadd.f32 %v497, %v505
    %v508 = vtanh.pop %v507
    %510 = vrot.lane.b32.xlu0 %v508, 64
    %v511 = vpop.permute.xlu0 %510
    %v513 = vmul.f32 %v494, %v511
    %515 = vrot.lane.b32.xlu0 %v513, 32
    %v516 = vpop.permute.xlu0 %515
    %v517 = vsel %vm367, %v516, 0
    %519 = vmatpush.msra.mxu0 0.0
    %520 = vmatpush.msra.mxu0 0.0
    %521 = vmatpush.msra.mxu0 0.0
    %522 = vmatpush.msra.mxu0 0.0
    %523 = vmatpush.msra.mxu0 0.0
    %524 = vmatpush.msra.mxu0 0.0
    %525 = vmatpush.msra.mxu0 0.0
    %526 = vmatpush.msra.mxu0 0.0
    %527 = vmatpush.msra.mxu0 0.0
    %528 = vmatpush.msra.mxu0 0.0
    %529 = vmatpush.msra.mxu0 0.0
    %530 = vmatpush.msra.mxu0 0.0
    %531 = vmatpush.msra.mxu0 %v363
    %532 = vmatpush.msra.mxu0 %v362
    %533 = vmatpush.msra.mxu0 %v361
    %534 = vmatpush.msra.mxu0 %v360
    %535 = vmatmul.f32.gmra.mxu0 %v517
    %v536 = vpop.f32.mrf.mxu0
    %v537 = vadd.f32 0.0, %v536
    %538 = vdwg.mxu0
    %vm539 = vcmask 523264
    %v540 = vsel %vm539, %v537, -inf
    %541 = vmax.xlane.f32.xlu0 %v540
    %v542 = vpop.xlane.xlu0 %541
    %vm543 = vcmp.eq.f32.partialorder %v537, %v542
    %v544 = vsel %vm543, %v365, 64
    %v545 = vsel %vm539, %v544, 2147483647
    %v546 = vand.u32 %v545, 65535
    %v547 = vshra.s32 %v545, 16
    %v548 = vcvt.s32.f32 %v546
    %v549 = vcvt.s32.f32 %v547
    %550 = vmin.xlane.f32.xlu0 %v549
    %v551 = vpop.xlane.xlu0 %550
    %vm552 = vcmp.eq.f32.partialorder %v549, %v551
    %v553 = vsel %vm552, %v548, inf
    %554 = vmin.xlane.f32.xlu0 %v553
    %v555 = vpop.xlane.xlu0 %554
    %v556 = vcvt.f32.s32 %v555
    %v557 = vcvt.f32.s32 %v551
    %v558 = vshll.u32 %v557, 16
    %v559 = vadd.s32 %v558, %v556
    %vm560 = vcmp.eq.s32.totalorder %v559, %v365
    %v561 = vsel %vm560, 1, 0
    %v562 = vcvt.s32.f32 %v561
    %v564 = vsel %vm539, %v562, 0
    %566 = vmatpush.msra.mxu0 0.0
    %567 = vmatpush.msra.mxu0 0.0
    %568 = vmatpush.msra.mxu0 0.0
    %569 = vmatpush.msra.mxu0 0.0
    %570 = vmatpush.msra.mxu0 0.0
    %571 = vmatpush.msra.mxu0 0.0
    %572 = vmatpush.msra.mxu0 0.0
    %573 = vmatpush.msra.mxu0 0.0
    %574 = vmatpush.msra.mxu0 %v346
    %575 = vmatpush.msra.mxu0 %v345
    %576 = vmatpush.msra.mxu0 %v344
    %577 = vmatpush.msra.mxu0 %v343
    %578 = vmatpush.msra.mxu0 %v342
    %579 = vmatpush.msra.mxu0 %v341
    %580 = vmatpush.msra.mxu0 %v340
    %581 = vmatpush.msra.mxu0 %v339
    %582 = vmatmul.f32.gmra.mxu0 %v564
    %v583 = vpop.f32.mrf.mxu0
    %v584 = vadd.f32 0.0, %v583
    %585 = vdwg.mxu0
    %v586 = vsub.f32 %v537, %v542
    %v587 = vmul.f32 %v586, 1.442695
    %v588 = vpow.pop %v587
    %v589 = vsel %vm539, %v588, 0.0
    %590 = vadd.xlane.f32.xlu0 %v589
    %v591 = vpop.xlane.xlu0 %590
    %v592 = vlog2.pop %v591
    %v593 = vmul.f32 %v592, 0.6931472
    %v594 = vsub.f32 %v586, %v593
    %595 = vmatpush.msra.mxu0 0.0
    %596 = vmatpush.msra.mxu0 0.0
    %597 = vmatpush.msra.mxu0 0.0
    %598 = vmatpush.msra.mxu0 0.0
    %599 = vmatpush.msra.mxu0 0.0
    %600 = vmatpush.msra.mxu0 0.0
    %601 = vmatpush.msra.mxu0 0.0
    %602 = vmatpush.msra.mxu0 0.0
    %603 = vmatpush.msra.mxu0 0.0
    %604 = vmatpush.msra.mxu0 0.0
    %605 = vmatpush.msra.mxu0 0.0
    %606 = vmatpush.msra.mxu0 0.0
    %607 = vmatpush.msra.mxu0 %v358
    %608 = vmatpush.msra.mxu0 %v357
    %609 = vmatpush.msra.mxu0 %v356
    %610 = vmatpush.msra.mxu0 %v355
    %611 = vmatmul.f32.gmra.mxu0 %v517
    %v612 = vpop.f32.mrf.mxu0
    %v613 = vadd.f32 %v359, %v612
    %614 = vdwg.mxu0
    %615 = vmatpush.msra.mxu0 0.0
    %616 = vmatpush.msra.mxu0 0.0
    %617 = vmatpush.msra.mxu0 0.0
    %618 = vmatpush.msra.mxu0 0.0
    %619 = vmatpush.msra.mxu0 0.0
    %620 = vmatpush.msra.mxu0 0.0
    %621 = vmatpush.msra.mxu0 0.0
    %622 = vmatpush.msra.mxu0 0.0
    %623 = vmatpush.msra.mxu0 0.0
    %624 = vmatpush.msra.mxu0 0.0
    %625 = vmatpush.msra.mxu0 0.0
    %626 = vmatpush.msra.mxu0 0.0
    %627 = vmatpush.msra.mxu0 %v350
    %628 = vmatpush.msra.mxu0 %v349
    %629 = vmatpush.msra.mxu0 %v348
    %630 = vmatpush.msra.mxu0 %v347
    %631 = vmatmul.f32.gmra.mxu0 %v453
    %v632 = vpop.f32.mrf.mxu0
    %v633 = vadd.f32 0.0, %v632
    %634 = vdwg.mxu0
    %v635 = vadd.f32 %v366, %v633
    %v636 = vxor.u32 %v635, 2147483648
    %v637 = vmul.f32 %v636, 1.442695
    %v638 = vpow.pop %v637
    %v639 = vadd.f32 %v638, 1.0
    %v640 = vrcp.pop %v639
    %v641 = vmul.f32 %v639, %v640
    %v642 = vsub.f32 1.0, %v641
    %v643 = vmul.f32 %v640, %v642
    %v644 = vadd.f32 %v640, %v643
    %vm645 = vweird.f32 %v639
    %vm646 = vweird.f32 %v640
    %vm647 = vmor %vm645, %vm646
    %v648 = vsel %vm647, %v640, %v644
    %v649 = vand.u32 2147483647, %v639
    %vm650 = vcmp.eq.f32.partialorder %v649, 8.507059e+37
    %v651 = vand.u32 %v639, 2147483648
    %v652 = vor.u32 1.1754944e-38, %v651
    %v653 = vsel %vm650, %v652, %v648
    %v654 = vmul.f32 1.0, %v653
    %v655 = vmul.f32 %v654, 2.0
    %v656 = vsub.f32 %v655, 1.0
    %v657 = vmul.f32 %v654, %v443
    %659 = vrot.lane.b32.xlu0 %v656, 64
    %v660 = vpop.permute.xlu0 %659
    %v662 = vmul.f32 %v654, %v660
    %664 = vrot.lane.b32.xlu0 %v662, 32
    %v665 = vpop.permute.xlu0 %664
    %v667 = vadd.f32 %v657, %v665
    %v668 = vtanh.pop %v667
    %670 = vrot.lane.b32.xlu0 %v668, 64
    %v671 = vpop.permute.xlu0 %670
    %v673 = vmul.f32 %v654, %v671
    %675 = vrot.lane.b32.xlu0 %v673, 32
    %v676 = vpop.permute.xlu0 %675
    %v677 = vsel %vm367, %v676, 0
    %679 = vmatpush.msra.mxu0 0.0
    %680 = vmatpush.msra.mxu0 0.0
    %681 = vmatpush.msra.mxu0 0.0
    %682 = vmatpush.msra.mxu0 0.0
    %683 = vmatpush.msra.mxu0 0.0
    %684 = vmatpush.msra.mxu0 0.0
    %685 = vmatpush.msra.mxu0 0.0
    %686 = vmatpush.msra.mxu0 0.0
    %687 = vmatpush.msra.mxu0 0.0
    %688 = vmatpush.msra.mxu0 0.0
    %689 = vmatpush.msra.mxu0 0.0
    %690 = vmatpush.msra.mxu0 0.0
    %691 = vmatpush.msra.mxu0 %v354
    %692 = vmatpush.msra.mxu0 %v353
    %693 = vmatpush.msra.mxu0 %v352
    %694 = vmatpush.msra.mxu0 %v351
    %695 = vmatmul.f32.gmra.mxu0 %v677
    %v696 = vpop.f32.mrf.mxu0
    %v697 = vadd.f32 0.0, %v696
    %698 = vdwg.mxu0
    %v699 = vadd.f32 %v613, %v697
    %v700 = vxor.u32 %v699, 2147483648
    %v701 = vmul.f32 %v700, 1.442695
    %v702 = vpow.pop %v701
    %v703 = vadd.f32 %v702, 1.0
    %v704 = vrcp.pop %v703
    %v705 = vmul.f32 %v703, %v704
    %v706 = vsub.f32 1.0, %v705
    %v707 = vmul.f32 %v704, %v706
    %v708 = vadd.f32 %v704, %v707
    %vm709 = vweird.f32 %v703
    %vm710 = vweird.f32 %v704
    %vm711 = vmor %vm709, %vm710
    %v712 = vsel %vm711, %v704, %v708
    %v713 = vand.u32 2147483647, %v703
    %vm714 = vcmp.eq.f32.partialorder %v713, 8.507059e+37
    %v715 = vand.u32 %v703, 2147483648
    %v716 = vor.u32 1.1754944e-38, %v715
    %v717 = vsel %vm714, %v716, %v712
    %v718 = vmul.f32 1.0, %v717
    %v719 = vmul.f32 %v718, 2.0
    %v720 = vsub.f32 %v719, 1.0
    %v721 = vmul.f32 %v718, %v507
    %723 = vrot.lane.b32.xlu0 %v720, 64
    %v724 = vpop.permute.xlu0 %723
    %v726 = vmul.f32 %v718, %v724
    %728 = vrot.lane.b32.xlu0 %v726, 32
    %v729 = vpop.permute.xlu0 %728
    %v731 = vadd.f32 %v721, %v729
    %v732 = vtanh.pop %v731
    %734 = vrot.lane.b32.xlu0 %v732, 64
    %v735 = vpop.permute.xlu0 %734
    %v737 = vmul.f32 %v718, %v735
    %739 = vrot.lane.b32.xlu0 %v737, 32
    %v740 = vpop.permute.xlu0 %739
    %v741 = vsel %vm367, %v740, 0
    %743 = vmatpush.msra.mxu0 0.0
    %744 = vmatpush.msra.mxu0 0.0
    %745 = vmatpush.msra.mxu0 0.0
    %746 = vmatpush.msra.mxu0 0.0
    %747 = vmatpush.msra.mxu0 0.0
    %748 = vmatpush.msra.mxu0 0.0
    %749 = vmatpush.msra.mxu0 0.0
    %750 = vmatpush.msra.mxu0 0.0
    %751 = vmatpush.msra.mxu0 0.0
    %752 = vmatpush.msra.mxu0 0.0
    %753 = vmatpush.msra.mxu0 0.0
    %754 = vmatpush.msra.mxu0 0.0
    %755 = vmatpush.msra.mxu0 %v358
    %756 = vmatpush.msra.mxu0 %v357
    %757 = vmatpush.msra.mxu0 %v356
    %758 = vmatpush.msra.mxu0 %v355
    %759 = vmatmul.f32.gmra.mxu0 %v741
    %v760 = vpop.f32.mrf.mxu0
    %v761 = vadd.f32 %v359, %v760
    %762 = vdwg.mxu0
    %763 = vmatpush.msra.mxu0 0.0
    %764 = vmatpush.msra.mxu0 0.0
    %765 = vmatpush.msra.mxu0 0.0
    %766 = vmatpush.msra.mxu0 0.0
    %767 = vmatpush.msra.mxu0 0.0
    %768 = vmatpush.msra.mxu0 0.0
    %769 = vmatpush.msra.mxu0 0.0
    %770 = vmatpush.msra.mxu0 0.0
    %771 = vmatpush.msra.mxu0 0.0
    %772 = vmatpush.msra.mxu0 0.0
    %773 = vmatpush.msra.mxu0 0.0
    %774 = vmatpush.msra.mxu0 0.0
    %775 = vmatpush.msra.mxu0 %v350
    %776 = vmatpush.msra.mxu0 %v349
    %777 = vmatpush.msra.mxu0 %v348
    %778 = vmatpush.msra.mxu0 %v347
    %779 = vmatmul.f32.gmra.mxu0 %v677
    %v780 = vpop.f32.mrf.mxu0
    %v781 = vadd.f32 0.0, %v780
    %782 = vdwg.mxu0
    %v783 = vadd.f32 %v584, %v781
    %v784 = vxor.u32 %v783, 2147483648
    %v785 = vmul.f32 %v784, 1.442695
    %v786 = vpow.pop %v785
    %v787 = vadd.f32 %v786, 1.0
    %v788 = vrcp.pop %v787
    %v789 = vmul.f32 %v787, %v788
    %v790 = vsub.f32 1.0, %v789
    %v791 = vmul.f32 %v788, %v790
    %v792 = vadd.f32 %v788, %v791
    %vm793 = vweird.f32 %v787
    %vm794 = vweird.f32 %v788
    %vm795 = vmor %vm793, %vm794
    %v796 = vsel %vm795, %v788, %v792
    %v797 = vand.u32 2147483647, %v787
    %vm798 = vcmp.eq.f32.partialorder %v797, 8.507059e+37
    %v799 = vand.u32 %v787, 2147483648
    %v800 = vor.u32 1.1754944e-38, %v799
    %v801 = vsel %vm798, %v800, %v796
    %v802 = vmul.f32 1.0, %v801
    %v803 = vmul.f32 %v802, 2.0
    %v804 = vsub.f32 %v803, 1.0
    %v805 = vmul.f32 %v802, %v667
    %807 = vrot.lane.b32.xlu0 %v804, 64
    %v808 = vpop.permute.xlu0 %807
    %v810 = vmul.f32 %v802, %v808
    %812 = vrot.lane.b32.xlu0 %v810, 32
    %v813 = vpop.permute.xlu0 %812
    %v815 = vadd.f32 %v805, %v813
    %v816 = vtanh.pop %v815
    %818 = vrot.lane.b32.xlu0 %v816, 64
    %v819 = vpop.permute.xlu0 %818
    %v821 = vmul.f32 %v802, %v819
    %823 = vrot.lane.b32.xlu0 %v821, 32
    %v824 = vpop.permute.xlu0 %823
    %v825 = vsel %vm367, %v824, 0
    %827 = vmatpush.msra.mxu0 0.0
    %828 = vmatpush.msra.mxu0 0.0
    %829 = vmatpush.msra.mxu0 0.0
    %830 = vmatpush.msra.mxu0 0.0
    %831 = vmatpush.msra.mxu0 0.0
    %832 = vmatpush.msra.mxu0 0.0
    %833 = vmatpush.msra.mxu0 0.0
    %834 = vmatpush.msra.mxu0 0.0
    %835 = vmatpush.msra.mxu0 0.0
    %836 = vmatpush.msra.mxu0 0.0
    %837 = vmatpush.msra.mxu0 0.0
    %838 = vmatpush.msra.mxu0 0.0
    %839 = vmatpush.msra.mxu0 %v354
    %840 = vmatpush.msra.mxu0 %v353
    %841 = vmatpush.msra.mxu0 %v352
    %842 = vmatpush.msra.mxu0 %v351
    %843 = vmatmul.f32.gmra.mxu0 %v825
    %v844 = vpop.f32.mrf.mxu0
    %v845 = vadd.f32 0.0, %v844
    %846 = vdwg.mxu0
    %v847 = vadd.f32 %v761, %v845
    %v848 = vxor.u32 %v847, 2147483648
    %v849 = vmul.f32 %v848, 1.442695
    %v850 = vpow.pop %v849
    %v851 = vadd.f32 %v850, 1.0
    %v852 = vrcp.pop %v851
    %v853 = vmul.f32 %v851, %v852
    %v854 = vsub.f32 1.0, %v853
    %v855 = vmul.f32 %v852, %v854
    %v856 = vadd.f32 %v852, %v855
    %vm857 = vweird.f32 %v851
    %vm858 = vweird.f32 %v852
    %vm859 = vmor %vm857, %vm858
    %v860 = vsel %vm859, %v852, %v856
    %v861 = vand.u32 2147483647, %v851
    %vm862 = vcmp.eq.f32.partialorder %v861, 8.507059e+37
    %v863 = vand.u32 %v851, 2147483648
    %v864 = vor.u32 1.1754944e-38, %v863
    %v865 = vsel %vm862, %v864, %v860
    %v866 = vmul.f32 1.0, %v865
    %v867 = vmul.f32 %v866, 2.0
    %v868 = vsub.f32 %v867, 1.0
    %v869 = vmul.f32 %v866, %v731
    %871 = vrot.lane.b32.xlu0 %v868, 64
    %v872 = vpop.permute.xlu0 %871
    %v874 = vmul.f32 %v866, %v872
    %876 = vrot.lane.b32.xlu0 %v874, 32
    %v877 = vpop.permute.xlu0 %876
    %v879 = vadd.f32 %v869, %v877
    %v880 = vtanh.pop %v879
    %882 = vrot.lane.b32.xlu0 %v880, 64
    %v883 = vpop.permute.xlu0 %882
    %v885 = vmul.f32 %v866, %v883
    %887 = vrot.lane.b32.xlu0 %v885, 32
    %v888 = vpop.permute.xlu0 %887
    %v889 = vsel %vm367, %v888, 0
    %891 = vmatpush.msra.mxu0 0.0
    %892 = vmatpush.msra.mxu0 0.0
    %893 = vmatpush.msra.mxu0 0.0
    %894 = vmatpush.msra.mxu0 0.0
    %895 = vmatpush.msra.mxu0 0.0
    %896 = vmatpush.msra.mxu0 0.0
    %897 = vmatpush.msra.mxu0 0.0
    %898 = vmatpush.msra.mxu0 0.0
    %899 = vmatpush.msra.mxu0 0.0
    %900 = vmatpush.msra.mxu0 0.0
    %901 = vmatpush.msra.mxu0 0.0
    %902 = vmatpush.msra.mxu0 0.0
    %903 = vmatpush.msra.mxu0 %v363
    %904 = vmatpush.msra.mxu0 %v362
    %905 = vmatpush.msra.mxu0 %v361
    %906 = vmatpush.msra.mxu0 %v360
    %907 = vmatmul.f32.gmra.mxu0 %v889
    %v908 = vpop.f32.mrf.mxu0
    %v909 = vadd.f32 0.0, %v908
    %910 = vdwg.mxu0
    %v911 = vsel %vm539, %v909, -inf
    %912 = vmax.xlane.f32.xlu0 %v911
    %v913 = vpop.xlane.xlu0 %912
    %vm914 = vcmp.eq.f32.partialorder %v909, %v913
    %v915 = vsel %vm914, %v365, 64
    %v916 = vsel %vm539, %v915, 2147483647
    %v917 = vand.u32 %v916, 65535
    %v918 = vshra.s32 %v916, 16
    %v919 = vcvt.s32.f32 %v917
    %v920 = vcvt.s32.f32 %v918
    %921 = vmin.xlane.f32.xlu0 %v920
    %v922 = vpop.xlane.xlu0 %921
    %vm923 = vcmp.eq.f32.partialorder %v920, %v922
    %v924 = vsel %vm923, %v919, inf
    %925 = vmin.xlane.f32.xlu0 %v924
    %v926 = vpop.xlane.xlu0 %925
    %v927 = vcvt.f32.s32 %v926
    %v928 = vcvt.f32.s32 %v922
    %v929 = vshll.u32 %v928, 16
    %v930 = vadd.s32 %v929, %v927
    %vm931 = vcmp.eq.s32.totalorder %v930, %v365
    %v932 = vsel %vm931, 1, 0
    %v933 = vcvt.s32.f32 %v932
    %v935 = vsel %vm539, %v933, 0
    %937 = vmatpush.msra.mxu0 0.0
    %938 = vmatpush.msra.mxu0 0.0
    %939 = vmatpush.msra.mxu0 0.0
    %940 = vmatpush.msra.mxu0 0.0
    %941 = vmatpush.msra.mxu0 0.0
    %942 = vmatpush.msra.mxu0 0.0
    %943 = vmatpush.msra.mxu0 0.0
    %944 = vmatpush.msra.mxu0 0.0
    %945 = vmatpush.msra.mxu0 %v346
    %946 = vmatpush.msra.mxu0 %v345
    %947 = vmatpush.msra.mxu0 %v344
    %948 = vmatpush.msra.mxu0 %v343
    %949 = vmatpush.msra.mxu0 %v342
    %950 = vmatpush.msra.mxu0 %v341
    %951 = vmatpush.msra.mxu0 %v340
    %952 = vmatpush.msra.mxu0 %v339
    %953 = vmatmul.f32.gmra.mxu0 %v935
    %v954 = vpop.f32.mrf.mxu0
    %v955 = vadd.f32 0.0, %v954
    %956 = vdwg.mxu0
    %v957 = vsub.f32 %v909, %v913
    %v958 = vmul.f32 %v957, 1.442695
    %v959 = vpow.pop %v958
    %v960 = vsel %vm539, %v959, 0.0
    %961 = vadd.xlane.f32.xlu0 %v960
    %v962 = vpop.xlane.xlu0 %961
    %v963 = vlog2.pop %v962
    %v964 = vmul.f32 %v963, 0.6931472
    %v965 = vsub.f32 %v957, %v964
    %966 = vmatpush.msra.mxu0 0.0
    %967 = vmatpush.msra.mxu0 0.0
    %968 = vmatpush.msra.mxu0 0.0
    %969 = vmatpush.msra.mxu0 0.0
    %970 = vmatpush.msra.mxu0 0.0
    %971 = vmatpush.msra.mxu0 0.0
    %972 = vmatpush.msra.mxu0 0.0
    %973 = vmatpush.msra.mxu0 0.0
    %974 = vmatpush.msra.mxu0 0.0
    %975 = vmatpush.msra.mxu0 0.0
    %976 = vmatpush.msra.mxu0 0.0
    %977 = vmatpush.msra.mxu0 0.0
    %978 = vmatpush.msra.mxu0 %v358
    %979 = vmatpush.msra.mxu0 %v357
    %980 = vmatpush.msra.mxu0 %v356
    %981 = vmatpush.msra.mxu0 %v355
    %982 = vmatmul.f32.gmra.mxu0 %v889
    %v983 = vpop.f32.mrf.mxu0
    %v984 = vadd.f32 %v359, %v983
    %985 = vdwg.mxu0
    %986 = vmatpush.msra.mxu0 0.0
    %987 = vmatpush.msra.mxu0 0.0
    %988 = vmatpush.msra.mxu0 0.0
    %989 = vmatpush.msra.mxu0 0.0
    %990 = vmatpush.msra.mxu0 0.0
    %991 = vmatpush.msra.mxu0 0.0
    %992 = vmatpush.msra.mxu0 0.0
    %993 = vmatpush.msra.mxu0 0.0
    %994 = vmatpush.msra.mxu0 0.0
    %995 = vmatpush.msra.mxu0 0.0
    %996 = vmatpush.msra.mxu0 0.0
    %997 = vmatpush.msra.mxu0 0.0
    %998 = vmatpush.msra.mxu0 %v350
    %999 = vmatpush.msra.mxu0 %v349
    %1000 = vmatpush.msra.mxu0 %v348
    %1001 = vmatpush.msra.mxu0 %v347
    %1002 = vmatmul.f32.gmra.mxu0 %v825
    %v1003 = vpop.f32.mrf.mxu0
    %v1004 = vadd.f32 0.0, %v1003
    %1005 = vdwg.mxu0
    %v1006 = vadd.f32 %v366, %v1004
    %v1007 = vxor.u32 %v1006, 2147483648
    %v1008 = vmul.f32 %v1007, 1.442695
    %v1009 = vpow.pop %v1008
    %v1010 = vadd.f32 %v1009, 1.0
    %v1011 = vrcp.pop %v1010
    %v1012 = vmul.f32 %v1010, %v1011
    %v1013 = vsub.f32 1.0, %v1012
    %v1014 = vmul.f32 %v1011, %v1013
    %v1015 = vadd.f32 %v1011, %v1014
    %vm1016 = vweird.f32 %v1010
    %vm1017 = vweird.f32 %v1011
    %vm1018 = vmor %vm1016, %vm1017
    %v1019 = vsel %vm1018, %v1011, %v1015
    %v1020 = vand.u32 2147483647, %v1010
    %vm1021 = vcmp.eq.f32.partialorder %v1020, 8.507059e+37
    %v1022 = vand.u32 %v1010, 2147483648
    %v1023 = vor.u32 1.1754944e-38, %v1022
    %v1024 = vsel %vm1021, %v1023, %v1019
    %v1025 = vmul.f32 1.0, %v1024
    %v1026 = vmul.f32 %v1025, 2.0
    %v1027 = vsub.f32 %v1026, 1.0
    %v1028 = vmul.f32 %v1025, %v815
    %1030 = vrot.lane.b32.xlu0 %v1027, 64
    %v1031 = vpop.permute.xlu0 %1030
    %v1033 = vmul.f32 %v1025, %v1031
    %1035 = vrot.lane.b32.xlu0 %v1033, 32
    %v1036 = vpop.permute.xlu0 %1035
    %v1038 = vadd.f32 %v1028, %v1036
    %v1039 = vtanh.pop %v1038
    %1041 = vrot.lane.b32.xlu0 %v1039, 64
    %v1042 = vpop.permute.xlu0 %1041
    %v1044 = vmul.f32 %v1025, %v1042
    %1046 = vrot.lane.b32.xlu0 %v1044, 32
    %v1047 = vpop.permute.xlu0 %1046
    %v1048 = vsel %vm367, %v1047, 0
    %1050 = vmatpush.msra.mxu0 0.0
    %1051 = vmatpush.msra.mxu0 0.0
    %1052 = vmatpush.msra.mxu0 0.0
    %1053 = vmatpush.msra.mxu0 0.0
    %1054 = vmatpush.msra.mxu0 0.0
    %1055 = vmatpush.msra.mxu0 0.0
    %1056 = vmatpush.msra.mxu0 0.0
    %1057 = vmatpush.msra.mxu0 0.0
    %1058 = vmatpush.msra.mxu0 0.0
    %1059 = vmatpush.msra.mxu0 0.0
    %1060 = vmatpush.msra.mxu0 0.0
    %1061 = vmatpush.msra.mxu0 0.0
    %1062 = vmatpush.msra.mxu0 %v354
    %1063 = vmatpush.msra.mxu0 %v353
    %1064 = vmatpush.msra.mxu0 %v352
    %1065 = vmatpush.msra.mxu0 %v351
    %1066 = vmatmul.f32.gmra.mxu0 %v1048
    %v1067 = vpop.f32.mrf.mxu0
    %v1068 = vadd.f32 0.0, %v1067
    %1069 = vdwg.mxu0
    %v1070 = vadd.f32 %v984, %v1068
    %v1071 = vxor.u32 %v1070, 2147483648
    %v1072 = vmul.f32 %v1071, 1.442695
    %v1073 = vpow.pop %v1072
    %v1074 = vadd.f32 %v1073, 1.0
    %v1075 = vrcp.pop %v1074
    %v1076 = vmul.f32 %v1074, %v1075
    %v1077 = vsub.f32 1.0, %v1076
    %v1078 = vmul.f32 %v1075, %v1077
    %v1079 = vadd.f32 %v1075, %v1078
    %vm1080 = vweird.f32 %v1074
    %vm1081 = vweird.f32 %v1075
    %vm1082 = vmor %vm1080, %vm1081
    %v1083 = vsel %vm1082, %v1075, %v1079
    %v1084 = vand.u32 2147483647, %v1074
    %vm1085 = vcmp.eq.f32.partialorder %v1084, 8.507059e+37
    %v1086 = vand.u32 %v1074, 2147483648
    %v1087 = vor.u32 1.1754944e-38, %v1086
    %v1088 = vsel %vm1085, %v1087, %v1083
    %v1089 = vmul.f32 1.0, %v1088
    %v1090 = vmul.f32 %v1089, 2.0
    %v1091 = vsub.f32 %v1090, 1.0
    %v1092 = vmul.f32 %v1089, %v879
    %1094 = vrot.lane.b32.xlu0 %v1091, 64
    %v1095 = vpop.permute.xlu0 %1094
    %v1097 = vmul.f32 %v1089, %v1095
    %1099 = vrot.lane.b32.xlu0 %v1097, 32
    %v1100 = vpop.permute.xlu0 %1099
    %v1102 = vadd.f32 %v1092, %v1100
    %v1103 = vtanh.pop %v1102
    %1105 = vrot.lane.b32.xlu0 %v1103, 64
    %v1106 = vpop.permute.xlu0 %1105
    %v1108 = vmul.f32 %v1089, %v1106
    %1110 = vrot.lane.b32.xlu0 %v1108, 32
    %v1111 = vpop.permute.xlu0 %1110
    %v1112 = vsel %vm367, %v1111, 0
    %1114 = vmatpush.msra.mxu0 0.0
    %1115 = vmatpush.msra.mxu0 0.0
    %1116 = vmatpush.msra.mxu0 0.0
    %1117 = vmatpush.msra.mxu0 0.0
    %1118 = vmatpush.msra.mxu0 0.0
    %1119 = vmatpush.msra.mxu0 0.0
    %1120 = vmatpush.msra.mxu0 0.0
    %1121 = vmatpush.msra.mxu0 0.0
    %1122 = vmatpush.msra.mxu0 0.0
    %1123 = vmatpush.msra.mxu0 0.0
    %1124 = vmatpush.msra.mxu0 0.0
    %1125 = vmatpush.msra.mxu0 0.0
    %1126 = vmatpush.msra.mxu0 %v358
    %1127 = vmatpush.msra.mxu0 %v357
    %1128 = vmatpush.msra.mxu0 %v356
    %1129 = vmatpush.msra.mxu0 %v355
    %1130 = vmatmul.f32.gmra.mxu0 %v1112
    %v1131 = vpop.f32.mrf.mxu0
    %v1132 = vadd.f32 %v359, %v1131
    %1133 = vdwg.mxu0
    %1134 = vmatpush.msra.mxu0 0.0
    %1135 = vmatpush.msra.mxu0 0.0
    %1136 = vmatpush.msra.mxu0 0.0
    %1137 = vmatpush.msra.mxu0 0.0
    %1138 = vmatpush.msra.mxu0 0.0
    %1139 = vmatpush.msra.mxu0 0.0
    %1140 = vmatpush.msra.mxu0 0.0
    %1141 = vmatpush.msra.mxu0 0.0
    %1142 = vmatpush.msra.mxu0 0.0
    %1143 = vmatpush.msra.mxu0 0.0
    %1144 = vmatpush.msra.mxu0 0.0
    %1145 = vmatpush.msra.mxu0 0.0
    %1146 = vmatpush.msra.mxu0 %v350
    %1147 = vmatpush.msra.mxu0 %v349
    %1148 = vmatpush.msra.mxu0 %v348
    %1149 = vmatpush.msra.mxu0 %v347
    %1150 = vmatmul.f32.gmra.mxu0 %v1048
    %v1151 = vpop.f32.mrf.mxu0
    %v1152 = vadd.f32 0.0, %v1151
    %1153 = vdwg.mxu0
    %v1154 = vadd.f32 %v584, %v1152
    %v1155 = vxor.u32 %v1154, 2147483648
    %v1156 = vmul.f32 %v1155, 1.442695
    %v1157 = vpow.pop %v1156
    %v1158 = vadd.f32 %v1157, 1.0
    %v1159 = vrcp.pop %v1158
    %v1160 = vmul.f32 %v1158, %v1159
    %v1161 = vsub.f32 1.0, %v1160
    %v1162 = vmul.f32 %v1159, %v1161
    %v1163 = vadd.f32 %v1159, %v1162
    %vm1164 = vweird.f32 %v1158
    %vm1165 = vweird.f32 %v1159
    %vm1166 = vmor %vm1164, %vm1165
    %v1167 = vsel %vm1166, %v1159, %v1163
    %v1168 = vand.u32 2147483647, %v1158
    %vm1169 = vcmp.eq.f32.partialorder %v1168, 8.507059e+37
    %v1170 = vand.u32 %v1158, 2147483648
    %v1171 = vor.u32 1.1754944e-38, %v1170
    %v1172 = vsel %vm1169, %v1171, %v1167
    %v1173 = vmul.f32 1.0, %v1172
    %v1174 = vmul.f32 %v1173, 2.0
    %v1175 = vsub.f32 %v1174, 1.0
    %v1176 = vmul.f32 %v1173, %v1038
    %1178 = vrot.lane.b32.xlu0 %v1175, 64
    %v1179 = vpop.permute.xlu0 %1178
    %v1181 = vmul.f32 %v1173, %v1179
    %1183 = vrot.lane.b32.xlu0 %v1181, 32
    %v1184 = vpop.permute.xlu0 %1183
    %v1186 = vadd.f32 %v1176, %v1184
    %v1187 = vtanh.pop %v1186
    %1189 = vrot.lane.b32.xlu0 %v1187, 64
    %v1190 = vpop.permute.xlu0 %1189
    %v1192 = vmul.f32 %v1173, %v1190
    %1194 = vrot.lane.b32.xlu0 %v1192, 32
    %v1195 = vpop.permute.xlu0 %1194
    %v1196 = vsel %vm367, %v1195, 0
    %1198 = vmatpush.msra.mxu0 0.0
    %1199 = vmatpush.msra.mxu0 0.0
    %1200 = vmatpush.msra.mxu0 0.0
    %1201 = vmatpush.msra.mxu0 0.0
    %1202 = vmatpush.msra.mxu0 0.0
    %1203 = vmatpush.msra.mxu0 0.0
    %1204 = vmatpush.msra.mxu0 0.0
    %1205 = vmatpush.msra.mxu0 0.0
    %1206 = vmatpush.msra.mxu0 0.0
    %1207 = vmatpush.msra.mxu0 0.0
    %1208 = vmatpush.msra.mxu0 0.0
    %1209 = vmatpush.msra.mxu0 0.0
    %1210 = vmatpush.msra.mxu0 %v354
    %1211 = vmatpush.msra.mxu0 %v353
    %1212 = vmatpush.msra.mxu0 %v352
    %1213 = vmatpush.msra.mxu0 %v351
    %1214 = vmatmul.f32.gmra.mxu0 %v1196
    %v1215 = vpop.f32.mrf.mxu0
    %v1216 = vadd.f32 0.0, %v1215
    %1217 = vdwg.mxu0
    %v1218 = vadd.f32 %v1132, %v1216
    %v1219 = vxor.u32 %v1218, 2147483648
    %v1220 = vmul.f32 %v1219, 1.442695
    %v1221 = vpow.pop %v1220
    %v1222 = vadd.f32 %v1221, 1.0
    %v1223 = vrcp.pop %v1222
    %v1224 = vmul.f32 %v1222, %v1223
    %v1225 = vsub.f32 1.0, %v1224
    %v1226 = vmul.f32 %v1223, %v1225
    %v1227 = vadd.f32 %v1223, %v1226
    %vm1228 = vweird.f32 %v1222
    %vm1229 = vweird.f32 %v1223
    %vm1230 = vmor %vm1228, %vm1229
    %v1231 = vsel %vm1230, %v1223, %v1227
    %v1232 = vand.u32 2147483647, %v1222
    %vm1233 = vcmp.eq.f32.partialorder %v1232, 8.507059e+37
    %v1234 = vand.u32 %v1222, 2147483648
    %v1235 = vor.u32 1.1754944e-38, %v1234
    %v1236 = vsel %vm1233, %v1235, %v1231
    %v1237 = vmul.f32 1.0, %v1236
    %v1238 = vmul.f32 %v1237, 2.0
    %v1239 = vsub.f32 %v1238, 1.0
    %v1240 = vmul.f32 %v1237, %v1102
    %1242 = vrot.lane.b32.xlu0 %v1239, 64
    %v1243 = vpop.permute.xlu0 %1242
    %v1245 = vmul.f32 %v1237, %v1243
    %1247 = vrot.lane.b32.xlu0 %v1245, 32
    %v1248 = vpop.permute.xlu0 %1247
    %v1250 = vadd.f32 %v1240, %v1248
    %v1251 = vtanh.pop %v1250
    %1253 = vrot.lane.b32.xlu0 %v1251, 64
    %v1254 = vpop.permute.xlu0 %1253
    %v1256 = vmul.f32 %v1237, %v1254
    %1258 = vrot.lane.b32.xlu0 %v1256, 32
    %v1259 = vpop.permute.xlu0 %1258
    %v1260 = vsel %vm367, %v1259, 0
    %1262 = vmatpush.msra.mxu0 0.0
    %1263 = vmatpush.msra.mxu0 0.0
    %1264 = vmatpush.msra.mxu0 0.0
    %1265 = vmatpush.msra.mxu0 0.0
    %1266 = vmatpush.msra.mxu0 0.0
    %1267 = vmatpush.msra.mxu0 0.0
    %1268 = vmatpush.msra.mxu0 0.0
    %1269 = vmatpush.msra.mxu0 0.0
    %1270 = vmatpush.msra.mxu0 0.0
    %1271 = vmatpush.msra.mxu0 0.0
    %1272 = vmatpush.msra.mxu0 0.0
    %1273 = vmatpush.msra.mxu0 0.0
    %1274 = vmatpush.msra.mxu0 %v358
    %1275 = vmatpush.msra.mxu0 %v357
    %1276 = vmatpush.msra.mxu0 %v356
    %1277 = vmatpush.msra.mxu0 %v355
    %1278 = vmatmul.f32.gmra.mxu0 %v1260
    %v1279 = vpop.f32.mrf.mxu0
    %v1280 = vadd.f32 %v359, %v1279
    %1281 = vdwg.mxu0
    %1282 = vmatpush.msra.mxu0 0.0
    %1283 = vmatpush.msra.mxu0 0.0
    %1284 = vmatpush.msra.mxu0 0.0
    %1285 = vmatpush.msra.mxu0 0.0
    %1286 = vmatpush.msra.mxu0 0.0
    %1287 = vmatpush.msra.mxu0 0.0
    %1288 = vmatpush.msra.mxu0 0.0
    %1289 = vmatpush.msra.mxu0 0.0
    %1290 = vmatpush.msra.mxu0 0.0
    %1291 = vmatpush.msra.mxu0 0.0
    %1292 = vmatpush.msra.mxu0 0.0
    %1293 = vmatpush.msra.mxu0 0.0
    %1294 = vmatpush.msra.mxu0 %v350
    %1295 = vmatpush.msra.mxu0 %v349
    %1296 = vmatpush.msra.mxu0 %v348
    %1297 = vmatpush.msra.mxu0 %v347
    %1298 = vmatmul.f32.gmra.mxu0 %v1196
    %v1299 = vpop.f32.mrf.mxu0
    %v1300 = vadd.f32 0.0, %v1299
    %1301 = vdwg.mxu0
    %v1302 = vadd.f32 %v955, %v1300
    %v1303 = vxor.u32 %v1302, 2147483648
    %v1304 = vmul.f32 %v1303, 1.442695
    %v1305 = vpow.pop %v1304
    %v1306 = vadd.f32 %v1305, 1.0
    %v1307 = vrcp.pop %v1306
    %v1308 = vmul.f32 %v1306, %v1307
    %v1309 = vsub.f32 1.0, %v1308
    %v1310 = vmul.f32 %v1307, %v1309
    %v1311 = vadd.f32 %v1307, %v1310
    %vm1312 = vweird.f32 %v1306
    %vm1313 = vweird.f32 %v1307
    %vm1314 = vmor %vm1312, %vm1313
    %v1315 = vsel %vm1314, %v1307, %v1311
    %v1316 = vand.u32 2147483647, %v1306
    %vm1317 = vcmp.eq.f32.partialorder %v1316, 8.507059e+37
    %v1318 = vand.u32 %v1306, 2147483648
    %v1319 = vor.u32 1.1754944e-38, %v1318
    %v1320 = vsel %vm1317, %v1319, %v1315
    %v1321 = vmul.f32 1.0, %v1320
    %v1322 = vmul.f32 %v1321, 2.0
    %v1323 = vsub.f32 %v1322, 1.0
    %v1324 = vmul.f32 %v1321, %v1186
    %1326 = vrot.lane.b32.xlu0 %v1323, 64
    %v1327 = vpop.permute.xlu0 %1326
    %v1329 = vmul.f32 %v1321, %v1327
    %1331 = vrot.lane.b32.xlu0 %v1329, 32
    %v1332 = vpop.permute.xlu0 %1331
    %v1334 = vadd.f32 %v1324, %v1332
    %v1335 = vtanh.pop %v1334
    %1337 = vrot.lane.b32.xlu0 %v1335, 64
    %v1338 = vpop.permute.xlu0 %1337
    %v1340 = vmul.f32 %v1321, %v1338
    %1342 = vrot.lane.b32.xlu0 %v1340, 32
    %v1343 = vpop.permute.xlu0 %1342
    %v1344 = vsel %vm367, %v1343, 0
    %1346 = vmatpush.msra.mxu0 0.0
    %1347 = vmatpush.msra.mxu0 0.0
    %1348 = vmatpush.msra.mxu0 0.0
    %1349 = vmatpush.msra.mxu0 0.0
    %1350 = vmatpush.msra.mxu0 0.0
    %1351 = vmatpush.msra.mxu0 0.0
    %1352 = vmatpush.msra.mxu0 0.0
    %1353 = vmatpush.msra.mxu0 0.0
    %1354 = vmatpush.msra.mxu0 0.0
    %1355 = vmatpush.msra.mxu0 0.0
    %1356 = vmatpush.msra.mxu0 0.0
    %1357 = vmatpush.msra.mxu0 0.0
    %1358 = vmatpush.msra.mxu0 %v354
    %1359 = vmatpush.msra.mxu0 %v353
    %1360 = vmatpush.msra.mxu0 %v352
    %1361 = vmatpush.msra.mxu0 %v351
    %1362 = vmatmul.f32.gmra.mxu0 %v1344
    %v1363 = vpop.f32.mrf.mxu0
    %v1364 = vadd.f32 0.0, %v1363
    %1365 = vdwg.mxu0
    %v1366 = vadd.f32 %v1280, %v1364
    %v1367 = vxor.u32 %v1366, 2147483648
    %v1368 = vmul.f32 %v1367, 1.442695
    %v1369 = vpow.pop %v1368
    %v1370 = vadd.f32 %v1369, 1.0
    %v1371 = vrcp.pop %v1370
    %v1372 = vmul.f32 %v1370, %v1371
    %v1373 = vsub.f32 1.0, %v1372
    %v1374 = vmul.f32 %v1371, %v1373
    %v1375 = vadd.f32 %v1371, %v1374
    %vm1376 = vweird.f32 %v1370
    %vm1377 = vweird.f32 %v1371
    %vm1378 = vmor %vm1376, %vm1377
    %v1379 = vsel %vm1378, %v1371, %v1375
    %v1380 = vand.u32 2147483647, %v1370
    %vm1381 = vcmp.eq.f32.partialorder %v1380, 8.507059e+37
    %v1382 = vand.u32 %v1370, 2147483648
    %v1383 = vor.u32 1.1754944e-38, %v1382
    %v1384 = vsel %vm1381, %v1383, %v1379
    %v1385 = vmul.f32 1.0, %v1384
    %v1386 = vmul.f32 %v1385, 2.0
    %v1387 = vsub.f32 %v1386, 1.0
    %v1388 = vmul.f32 %v1385, %v1250
    %1390 = vrot.lane.b32.xlu0 %v1387, 64
    %v1391 = vpop.permute.xlu0 %1390
    %v1393 = vmul.f32 %v1385, %v1391
    %1395 = vrot.lane.b32.xlu0 %v1393, 32
    %v1396 = vpop.permute.xlu0 %1395
    %v1398 = vadd.f32 %v1388, %v1396
    %v1399 = vtanh.pop %v1398
    %1401 = vrot.lane.b32.xlu0 %v1399, 64
    %v1402 = vpop.permute.xlu0 %1401
    %v1404 = vmul.f32 %v1385, %v1402
    %1406 = vrot.lane.b32.xlu0 %v1404, 32
    %v1407 = vpop.permute.xlu0 %1406
    %v1408 = vsel %vm367, %v1407, 0
    %1410 = vmatpush.msra.mxu0 0.0
    %1411 = vmatpush.msra.mxu0 0.0
    %1412 = vmatpush.msra.mxu0 0.0
    %1413 = vmatpush.msra.mxu0 0.0
    %1414 = vmatpush.msra.mxu0 0.0
    %1415 = vmatpush.msra.mxu0 0.0
    %1416 = vmatpush.msra.mxu0 0.0
    %1417 = vmatpush.msra.mxu0 0.0
    %1418 = vmatpush.msra.mxu0 0.0
    %1419 = vmatpush.msra.mxu0 0.0
    %1420 = vmatpush.msra.mxu0 0.0
    %1421 = vmatpush.msra.mxu0 0.0
    %1422 = vmatpush.msra.mxu0 %v363
    %1423 = vmatpush.msra.mxu0 %v362
    %1424 = vmatpush.msra.mxu0 %v361
    %1425 = vmatpush.msra.mxu0 %v360
    %1426 = vmatmul.f32.gmra.mxu0 %v1408
    %v1427 = vpop.f32.mrf.mxu0
    %v1428 = vadd.f32 0.0, %v1427
    %1429 = vdwg.mxu0
    %v1430 = vsel %vm539, %v1428, -inf
    %1431 = vmax.xlane.f32.xlu0 %v1430
    %v1432 = vpop.xlane.xlu0 %1431
    %vm1433 = vcmp.eq.f32.partialorder %v1428, %v1432
    %v1434 = vsel %vm1433, %v365, 64
    %v1435 = vsel %vm539, %v1434, 2147483647
    %v1436 = vand.u32 %v1435, 65535
    %v1437 = vshra.s32 %v1435, 16
    %v1438 = vcvt.s32.f32 %v1436
    %v1439 = vcvt.s32.f32 %v1437
    %1440 = vmin.xlane.f32.xlu0 %v1439
    %v1441 = vpop.xlane.xlu0 %1440
    %vm1442 = vcmp.eq.f32.partialorder %v1439, %v1441
    %v1443 = vsel %vm1442, %v1438, inf
    %1444 = vmin.xlane.f32.xlu0 %v1443
    %v1445 = vpop.xlane.xlu0 %1444
    %v1446 = vcvt.f32.s32 %v1445
    %v1447 = vcvt.f32.s32 %v1441
    %v1448 = vshll.u32 %v1447, 16
    %v1449 = vadd.s32 %v1448, %v1446
    %vm1450 = vcmp.eq.s32.totalorder %v1449, %v365
    %v1451 = vsel %vm1450, 1, 0
    %v1452 = vcvt.s32.f32 %v1451
    %v1454 = vsel %vm539, %v1452, 0
    %1456 = vmatpush.msra.mxu0 0.0
    %1457 = vmatpush.msra.mxu0 0.0
    %1458 = vmatpush.msra.mxu0 0.0
    %1459 = vmatpush.msra.mxu0 0.0
    %1460 = vmatpush.msra.mxu0 0.0
    %1461 = vmatpush.msra.mxu0 0.0
    %1462 = vmatpush.msra.mxu0 0.0
    %1463 = vmatpush.msra.mxu0 0.0
    %1464 = vmatpush.msra.mxu0 %v346
    %1465 = vmatpush.msra.mxu0 %v345
    %1466 = vmatpush.msra.mxu0 %v344
    %1467 = vmatpush.msra.mxu0 %v343
    %1468 = vmatpush.msra.mxu0 %v342
    %1469 = vmatpush.msra.mxu0 %v341
    %1470 = vmatpush.msra.mxu0 %v340
    %1471 = vmatpush.msra.mxu0 %v339
    %1472 = vmatmul.f32.gmra.mxu0 %v1454
    %v1473 = vpop.f32.mrf.mxu0
    %v1474 = vadd.f32 0.0, %v1473
    %1475 = vdwg.mxu0
    %v1476 = vsub.f32 %v1428, %v1432
    %v1477 = vmul.f32 %v1476, 1.442695
    %v1478 = vpow.pop %v1477
    %v1479 = vsel %vm539, %v1478, 0.0
    %1480 = vadd.xlane.f32.xlu0 %v1479
    %v1481 = vpop.xlane.xlu0 %1480
    %v1482 = vlog2.pop %v1481
    %v1483 = vmul.f32 %v1482, 0.6931472
    %v1484 = vsub.f32 %v1476, %v1483
    %1485 = vmatpush.msra.mxu0 0.0
    %1486 = vmatpush.msra.mxu0 0.0
    %1487 = vmatpush.msra.mxu0 0.0
    %1488 = vmatpush.msra.mxu0 0.0
    %1489 = vmatpush.msra.mxu0 0.0
    %1490 = vmatpush.msra.mxu0 0.0
    %1491 = vmatpush.msra.mxu0 0.0
    %1492 = vmatpush.msra.mxu0 0.0
    %1493 = vmatpush.msra.mxu0 0.0
    %1494 = vmatpush.msra.mxu0 0.0
    %1495 = vmatpush.msra.mxu0 0.0
    %1496 = vmatpush.msra.mxu0 0.0
    %1497 = vmatpush.msra.mxu0 %v358
    %1498 = vmatpush.msra.mxu0 %v357
    %1499 = vmatpush.msra.mxu0 %v356
    %1500 = vmatpush.msra.mxu0 %v355
    %1501 = vmatmul.f32.gmra.mxu0 %v1408
    %v1502 = vpop.f32.mrf.mxu0
    %v1503 = vadd.f32 %v359, %v1502
    %1504 = vdwg.mxu0
    %1505 = vmatpush.msra.mxu0 0.0
    %1506 = vmatpush.msra.mxu0 0.0
    %1507 = vmatpush.msra.mxu0 0.0
    %1508 = vmatpush.msra.mxu0 0.0
    %1509 = vmatpush.msra.mxu0 0.0
    %1510 = vmatpush.msra.mxu0 0.0
    %1511 = vmatpush.msra.mxu0 0.0
    %1512 = vmatpush.msra.mxu0 0.0
    %1513 = vmatpush.msra.mxu0 0.0
    %1514 = vmatpush.msra.mxu0 0.0
    %1515 = vmatpush.msra.mxu0 0.0
    %1516 = vmatpush.msra.mxu0 0.0
    %1517 = vmatpush.msra.mxu0 %v350
    %1518 = vmatpush.msra.mxu0 %v349
    %1519 = vmatpush.msra.mxu0 %v348
    %1520 = vmatpush.msra.mxu0 %v347
    %1521 = vmatmul.f32.gmra.mxu0 %v1344
    %v1522 = vpop.f32.mrf.mxu0
    %v1523 = vadd.f32 0.0, %v1522
    %1524 = vdwg.mxu0
    %v1525 = vadd.f32 %v366, %v1523
    %v1526 = vxor.u32 %v1525, 2147483648
    %v1527 = vmul.f32 %v1526, 1.442695
    %v1528 = vpow.pop %v1527
    %v1529 = vadd.f32 %v1528, 1.0
    %v1530 = vrcp.pop %v1529
    %v1531 = vmul.f32 %v1529, %v1530
    %v1532 = vsub.f32 1.0, %v1531
    %v1533 = vmul.f32 %v1530, %v1532
    %v1534 = vadd.f32 %v1530, %v1533
    %vm1535 = vweird.f32 %v1529
    %vm1536 = vweird.f32 %v1530
    %vm1537 = vmor %vm1535, %vm1536
    %v1538 = vsel %vm1537, %v1530, %v1534
    %v1539 = vand.u32 2147483647, %v1529
    %vm1540 = vcmp.eq.f32.partialorder %v1539, 8.507059e+37
    %v1541 = vand.u32 %v1529, 2147483648
    %v1542 = vor.u32 1.1754944e-38, %v1541
    %v1543 = vsel %vm1540, %v1542, %v1538
    %v1544 = vmul.f32 1.0, %v1543
    %v1545 = vmul.f32 %v1544, 2.0
    %v1546 = vsub.f32 %v1545, 1.0
    %v1547 = vmul.f32 %v1544, %v1334
    %1549 = vrot.lane.b32.xlu0 %v1546, 64
    %v1550 = vpop.permute.xlu0 %1549
    %v1552 = vmul.f32 %v1544, %v1550
    %1554 = vrot.lane.b32.xlu0 %v1552, 32
    %v1555 = vpop.permute.xlu0 %1554
    %v1557 = vadd.f32 %v1547, %v1555
    %v1558 = vtanh.pop %v1557
    %1560 = vrot.lane.b32.xlu0 %v1558, 64
    %v1561 = vpop.permute.xlu0 %1560
    %v1563 = vmul.f32 %v1544, %v1561
    %1565 = vrot.lane.b32.xlu0 %v1563, 32
    %v1566 = vpop.permute.xlu0 %1565
    %v1567 = vsel %vm367, %v1566, 0
    %1569 = vmatpush.msra.mxu0 0.0
    %1570 = vmatpush.msra.mxu0 0.0
    %1571 = vmatpush.msra.mxu0 0.0
    %1572 = vmatpush.msra.mxu0 0.0
    %1573 = vmatpush.msra.mxu0 0.0
    %1574 = vmatpush.msra.mxu0 0.0
    %1575 = vmatpush.msra.mxu0 0.0
    %1576 = vmatpush.msra.mxu0 0.0
    %1577 = vmatpush.msra.mxu0 0.0
    %1578 = vmatpush.msra.mxu0 0.0
    %1579 = vmatpush.msra.mxu0 0.0
    %1580 = vmatpush.msra.mxu0 0.0
    %1581 = vmatpush.msra.mxu0 %v354
    %1582 = vmatpush.msra.mxu0 %v353
    %1583 = vmatpush.msra.mxu0 %v352
    %1584 = vmatpush.msra.mxu0 %v351
    %1585 = vmatmul.f32.gmra.mxu0 %v1567
    %v1586 = vpop.f32.mrf.mxu0
    %v1587 = vadd.f32 0.0, %v1586
    %1588 = vdwg.mxu0
    %v1589 = vadd.f32 %v1503, %v1587
    %v1590 = vxor.u32 %v1589, 2147483648
    %v1591 = vmul.f32 %v1590, 1.442695
    %v1592 = vpow.pop %v1591
    %v1593 = vadd.f32 %v1592, 1.0
    %v1594 = vrcp.pop %v1593
    %v1595 = vmul.f32 %v1593, %v1594
    %v1596 = vsub.f32 1.0, %v1595
    %v1597 = vmul.f32 %v1594, %v1596
    %v1598 = vadd.f32 %v1594, %v1597
    %vm1599 = vweird.f32 %v1593
    %vm1600 = vweird.f32 %v1594
    %vm1601 = vmor %vm1599, %vm1600
    %v1602 = vsel %vm1601, %v1594, %v1598
    %v1603 = vand.u32 2147483647, %v1593
    %vm1604 = vcmp.eq.f32.partialorder %v1603, 8.507059e+37
    %v1605 = vand.u32 %v1593, 2147483648
    %v1606 = vor.u32 1.1754944e-38, %v1605
    %v1607 = vsel %vm1604, %v1606, %v1602
    %v1608 = vmul.f32 1.0, %v1607
    %v1609 = vmul.f32 %v1608, 2.0
    %v1610 = vsub.f32 %v1609, 1.0
    %v1611 = vmul.f32 %v1608, %v1398
    %1613 = vrot.lane.b32.xlu0 %v1610, 64
    %v1614 = vpop.permute.xlu0 %1613
    %v1616 = vmul.f32 %v1608, %v1614
    %1618 = vrot.lane.b32.xlu0 %v1616, 32
    %v1619 = vpop.permute.xlu0 %1618
    %v1621 = vadd.f32 %v1611, %v1619
    %v1622 = vtanh.pop %v1621
    %1624 = vrot.lane.b32.xlu0 %v1622, 64
    %v1625 = vpop.permute.xlu0 %1624
    %v1627 = vmul.f32 %v1608, %v1625
    %1629 = vrot.lane.b32.xlu0 %v1627, 32
    %v1630 = vpop.permute.xlu0 %1629
    %v1631 = vsel %vm367, %v1630, 0
    %1633 = vmatpush.msra.mxu0 0.0
    %1634 = vmatpush.msra.mxu0 0.0
    %1635 = vmatpush.msra.mxu0 0.0
    %1636 = vmatpush.msra.mxu0 0.0
    %1637 = vmatpush.msra.mxu0 0.0
    %1638 = vmatpush.msra.mxu0 0.0
    %1639 = vmatpush.msra.mxu0 0.0
    %1640 = vmatpush.msra.mxu0 0.0
    %1641 = vmatpush.msra.mxu0 0.0
    %1642 = vmatpush.msra.mxu0 0.0
    %1643 = vmatpush.msra.mxu0 0.0
    %1644 = vmatpush.msra.mxu0 0.0
    %1645 = vmatpush.msra.mxu0 %v358
    %1646 = vmatpush.msra.mxu0 %v357
    %1647 = vmatpush.msra.mxu0 %v356
    %1648 = vmatpush.msra.mxu0 %v355
    %1649 = vmatmul.f32.gmra.mxu0 %v1631
    %v1650 = vpop.f32.mrf.mxu0
    %v1651 = vadd.f32 %v359, %v1650
    %1652 = vdwg.mxu0
    %1653 = vmatpush.msra.mxu0 0.0
    %1654 = vmatpush.msra.mxu0 0.0
    %1655 = vmatpush.msra.mxu0 0.0
    %1656 = vmatpush.msra.mxu0 0.0
    %1657 = vmatpush.msra.mxu0 0.0
    %1658 = vmatpush.msra.mxu0 0.0
    %1659 = vmatpush.msra.mxu0 0.0
    %1660 = vmatpush.msra.mxu0 0.0
    %1661 = vmatpush.msra.mxu0 0.0
    %1662 = vmatpush.msra.mxu0 0.0
    %1663 = vmatpush.msra.mxu0 0.0
    %1664 = vmatpush.msra.mxu0 0.0
    %1665 = vmatpush.msra.mxu0 %v350
    %1666 = vmatpush.msra.mxu0 %v349
    %1667 = vmatpush.msra.mxu0 %v348
    %1668 = vmatpush.msra.mxu0 %v347
    %1669 = vmatmul.f32.gmra.mxu0 %v1567
    %v1670 = vpop.f32.mrf.mxu0
    %v1671 = vadd.f32 0.0, %v1670
    %1672 = vdwg.mxu0
    %v1673 = vadd.f32 %v584, %v1671
    %v1674 = vxor.u32 %v1673, 2147483648
    %v1675 = vmul.f32 %v1674, 1.442695
    %v1676 = vpow.pop %v1675
    %v1677 = vadd.f32 %v1676, 1.0
    %v1678 = vrcp.pop %v1677
    %v1679 = vmul.f32 %v1677, %v1678
    %v1680 = vsub.f32 1.0, %v1679
    %v1681 = vmul.f32 %v1678, %v1680
    %v1682 = vadd.f32 %v1678, %v1681
    %vm1683 = vweird.f32 %v1677
    %vm1684 = vweird.f32 %v1678
    %vm1685 = vmor %vm1683, %vm1684
    %v1686 = vsel %vm1685, %v1678, %v1682
    %v1687 = vand.u32 2147483647, %v1677
    %vm1688 = vcmp.eq.f32.partialorder %v1687, 8.507059e+37
    %v1689 = vand.u32 %v1677, 2147483648
    %v1690 = vor.u32 1.1754944e-38, %v1689
    %v1691 = vsel %vm1688, %v1690, %v1686
    %v1692 = vmul.f32 1.0, %v1691
    %v1693 = vmul.f32 %v1692, 2.0
    %v1694 = vsub.f32 %v1693, 1.0
    %v1695 = vmul.f32 %v1692, %v1557
    %1697 = vrot.lane.b32.xlu0 %v1694, 64
    %v1698 = vpop.permute.xlu0 %1697
    %v1700 = vmul.f32 %v1692, %v1698
    %1702 = vrot.lane.b32.xlu0 %v1700, 32
    %v1703 = vpop.permute.xlu0 %1702
    %v1705 = vadd.f32 %v1695, %v1703
    %v1706 = vtanh.pop %v1705
    %1708 = vrot.lane.b32.xlu0 %v1706, 64
    %v1709 = vpop.permute.xlu0 %1708
    %v1711 = vmul.f32 %v1692, %v1709
    %1713 = vrot.lane.b32.xlu0 %v1711, 32
    %v1714 = vpop.permute.xlu0 %1713
    %v1715 = vsel %vm367, %v1714, 0
    %1717 = vmatpush.msra.mxu0 0.0
    %1718 = vmatpush.msra.mxu0 0.0
    %1719 = vmatpush.msra.mxu0 0.0
    %1720 = vmatpush.msra.mxu0 0.0
    %1721 = vmatpush.msra.mxu0 0.0
    %1722 = vmatpush.msra.mxu0 0.0
    %1723 = vmatpush.msra.mxu0 0.0
    %1724 = vmatpush.msra.mxu0 0.0
    %1725 = vmatpush.msra.mxu0 0.0
    %1726 = vmatpush.msra.mxu0 0.0
    %1727 = vmatpush.msra.mxu0 0.0
    %1728 = vmatpush.msra.mxu0 0.0
    %1729 = vmatpush.msra.mxu0 %v354
    %1730 = vmatpush.msra.mxu0 %v353
    %1731 = vmatpush.msra.mxu0 %v352
    %1732 = vmatpush.msra.mxu0 %v351
    %1733 = vmatmul.f32.gmra.mxu0 %v1715
    %v1734 = vpop.f32.mrf.mxu0
    %v1735 = vadd.f32 0.0, %v1734
    %1736 = vdwg.mxu0
    %v1737 = vadd.f32 %v1651, %v1735
    %v1738 = vxor.u32 %v1737, 2147483648
    %v1739 = vmul.f32 %v1738, 1.442695
    %v1740 = vpow.pop %v1739
    %v1741 = vadd.f32 %v1740, 1.0
    %v1742 = vrcp.pop %v1741
    %v1743 = vmul.f32 %v1741, %v1742
    %v1744 = vsub.f32 1.0, %v1743
    %v1745 = vmul.f32 %v1742, %v1744
    %v1746 = vadd.f32 %v1742, %v1745
    %vm1747 = vweird.f32 %v1741
    %vm1748 = vweird.f32 %v1742
    %vm1749 = vmor %vm1747, %vm1748
    %v1750 = vsel %vm1749, %v1742, %v1746
    %v1751 = vand.u32 2147483647, %v1741
    %vm1752 = vcmp.eq.f32.partialorder %v1751, 8.507059e+37
    %v1753 = vand.u32 %v1741, 2147483648
    %v1754 = vor.u32 1.1754944e-38, %v1753
    %v1755 = vsel %vm1752, %v1754, %v1750
    %v1756 = vmul.f32 1.0, %v1755
    %v1757 = vmul.f32 %v1756, 2.0
    %v1758 = vsub.f32 %v1757, 1.0
    %v1759 = vmul.f32 %v1756, %v1621
    %1761 = vrot.lane.b32.xlu0 %v1758, 64
    %v1762 = vpop.permute.xlu0 %1761
    %v1764 = vmul.f32 %v1756, %v1762
    %1766 = vrot.lane.b32.xlu0 %v1764, 32
    %v1767 = vpop.permute.xlu0 %1766
    %v1769 = vadd.f32 %v1759, %v1767
    %v1770 = vtanh.pop %v1769
    %1772 = vrot.lane.b32.xlu0 %v1770, 64
    %v1773 = vpop.permute.xlu0 %1772
    %v1775 = vmul.f32 %v1756, %v1773
    %1777 = vrot.lane.b32.xlu0 %v1775, 32
    %v1778 = vpop.permute.xlu0 %1777
    %v1779 = vsel %vm367, %v1778, 0
    %1781 = vmatpush.msra.mxu0 0.0
    %1782 = vmatpush.msra.mxu0 0.0
    %1783 = vmatpush.msra.mxu0 0.0
    %1784 = vmatpush.msra.mxu0 0.0
    %1785 = vmatpush.msra.mxu0 0.0
    %1786 = vmatpush.msra.mxu0 0.0
    %1787 = vmatpush.msra.mxu0 0.0
    %1788 = vmatpush.msra.mxu0 0.0
    %1789 = vmatpush.msra.mxu0 0.0
    %1790 = vmatpush.msra.mxu0 0.0
    %1791 = vmatpush.msra.mxu0 0.0
    %1792 = vmatpush.msra.mxu0 0.0
    %1793 = vmatpush.msra.mxu0 %v358
    %1794 = vmatpush.msra.mxu0 %v357
    %1795 = vmatpush.msra.mxu0 %v356
    %1796 = vmatpush.msra.mxu0 %v355
    %1797 = vmatmul.f32.gmra.mxu0 %v1779
    %v1798 = vpop.f32.mrf.mxu0
    %v1799 = vadd.f32 %v359, %v1798
    %1800 = vdwg.mxu0
    %1801 = vmatpush.msra.mxu0 0.0
    %1802 = vmatpush.msra.mxu0 0.0
    %1803 = vmatpush.msra.mxu0 0.0
    %1804 = vmatpush.msra.mxu0 0.0
    %1805 = vmatpush.msra.mxu0 0.0
    %1806 = vmatpush.msra.mxu0 0.0
    %1807 = vmatpush.msra.mxu0 0.0
    %1808 = vmatpush.msra.mxu0 0.0
    %1809 = vmatpush.msra.mxu0 0.0
    %1810 = vmatpush.msra.mxu0 0.0
    %1811 = vmatpush.msra.mxu0 0.0
    %1812 = vmatpush.msra.mxu0 0.0
    %1813 = vmatpush.msra.mxu0 %v350
    %1814 = vmatpush.msra.mxu0 %v349
    %1815 = vmatpush.msra.mxu0 %v348
    %1816 = vmatpush.msra.mxu0 %v347
    %1817 = vmatmul.f32.gmra.mxu0 %v1715
    %v1818 = vpop.f32.mrf.mxu0
    %v1819 = vadd.f32 0.0, %v1818
    %1820 = vdwg.mxu0
    %v1821 = vadd.f32 %v955, %v1819
    %v1822 = vxor.u32 %v1821, 2147483648
    %v1823 = vmul.f32 %v1822, 1.442695
    %v1824 = vpow.pop %v1823
    %v1825 = vadd.f32 %v1824, 1.0
    %v1826 = vrcp.pop %v1825
    %v1827 = vmul.f32 %v1825, %v1826
    %v1828 = vsub.f32 1.0, %v1827
    %v1829 = vmul.f32 %v1826, %v1828
    %v1830 = vadd.f32 %v1826, %v1829
    %vm1831 = vweird.f32 %v1825
    %vm1832 = vweird.f32 %v1826
    %vm1833 = vmor %vm1831, %vm1832
    %v1834 = vsel %vm1833, %v1826, %v1830
    %v1835 = vand.u32 2147483647, %v1825
    %vm1836 = vcmp.eq.f32.partialorder %v1835, 8.507059e+37
    %v1837 = vand.u32 %v1825, 2147483648
    %v1838 = vor.u32 1.1754944e-38, %v1837
    %v1839 = vsel %vm1836, %v1838, %v1834
    %v1840 = vmul.f32 1.0, %v1839
    %v1841 = vmul.f32 %v1840, 2.0
    %v1842 = vsub.f32 %v1841, 1.0
    %v1843 = vmul.f32 %v1840, %v1705
    %1845 = vrot.lane.b32.xlu0 %v1842, 64
    %v1846 = vpop.permute.xlu0 %1845
    %v1848 = vmul.f32 %v1840, %v1846
    %1850 = vrot.lane.b32.xlu0 %v1848, 32
    %v1851 = vpop.permute.xlu0 %1850
    %v1853 = vadd.f32 %v1843, %v1851
    %v1854 = vtanh.pop %v1853
    %1856 = vrot.lane.b32.xlu0 %v1854, 64
    %v1857 = vpop.permute.xlu0 %1856
    %v1859 = vmul.f32 %v1840, %v1857
    %1861 = vrot.lane.b32.xlu0 %v1859, 32
    %v1862 = vpop.permute.xlu0 %1861
    %v1863 = vsel %vm367, %v1862, 0
    %1865 = vmatpush.msra.mxu0 0.0
    %1866 = vmatpush.msra.mxu0 0.0
    %1867 = vmatpush.msra.mxu0 0.0
    %1868 = vmatpush.msra.mxu0 0.0
    %1869 = vmatpush.msra.mxu0 0.0
    %1870 = vmatpush.msra.mxu0 0.0
    %1871 = vmatpush.msra.mxu0 0.0
    %1872 = vmatpush.msra.mxu0 0.0
    %1873 = vmatpush.msra.mxu0 0.0
    %1874 = vmatpush.msra.mxu0 0.0
    %1875 = vmatpush.msra.mxu0 0.0
    %1876 = vmatpush.msra.mxu0 0.0
    %1877 = vmatpush.msra.mxu0 %v354
    %1878 = vmatpush.msra.mxu0 %v353
    %1879 = vmatpush.msra.mxu0 %v352
    %1880 = vmatpush.msra.mxu0 %v351
    %1881 = vmatmul.f32.gmra.mxu0 %v1863
    %v1882 = vpop.f32.mrf.mxu0
    %v1883 = vadd.f32 0.0, %v1882
    %1884 = vdwg.mxu0
    %v1885 = vadd.f32 %v1799, %v1883
    %v1886 = vxor.u32 %v1885, 2147483648
    %v1887 = vmul.f32 %v1886, 1.442695
    %v1888 = vpow.pop %v1887
    %v1889 = vadd.f32 %v1888, 1.0
    %v1890 = vrcp.pop %v1889
    %v1891 = vmul.f32 %v1889, %v1890
    %v1892 = vsub.f32 1.0, %v1891
    %v1893 = vmul.f32 %v1890, %v1892
    %v1894 = vadd.f32 %v1890, %v1893
    %vm1895 = vweird.f32 %v1889
    %vm1896 = vweird.f32 %v1890
    %vm1897 = vmor %vm1895, %vm1896
    %v1898 = vsel %vm1897, %v1890, %v1894
    %v1899 = vand.u32 2147483647, %v1889
    %vm1900 = vcmp.eq.f32.partialorder %v1899, 8.507059e+37
    %v1901 = vand.u32 %v1889, 2147483648
    %v1902 = vor.u32 1.1754944e-38, %v1901
    %v1903 = vsel %vm1900, %v1902, %v1898
    %v1904 = vmul.f32 1.0, %v1903
    %v1905 = vmul.f32 %v1904, 2.0
    %v1906 = vsub.f32 %v1905, 1.0
    %v1907 = vmul.f32 %v1904, %v1769
    %1909 = vrot.lane.b32.xlu0 %v1906, 64
    %v1910 = vpop.permute.xlu0 %1909
    %v1912 = vmul.f32 %v1904, %v1910
    %1914 = vrot.lane.b32.xlu0 %v1912, 32
    %v1915 = vpop.permute.xlu0 %1914
    %v1917 = vadd.f32 %v1907, %v1915
    %v1918 = vtanh.pop %v1917
    %1920 = vrot.lane.b32.xlu0 %v1918, 64
    %v1921 = vpop.permute.xlu0 %1920
    %v1923 = vmul.f32 %v1904, %v1921
    %1925 = vrot.lane.b32.xlu0 %v1923, 32
    %v1926 = vpop.permute.xlu0 %1925
    %v1927 = vsel %vm367, %v1926, 0
    %1929 = vmatpush.msra.mxu0 0.0
    %1930 = vmatpush.msra.mxu0 0.0
    %1931 = vmatpush.msra.mxu0 0.0
    %1932 = vmatpush.msra.mxu0 0.0
    %1933 = vmatpush.msra.mxu0 0.0
    %1934 = vmatpush.msra.mxu0 0.0
    %1935 = vmatpush.msra.mxu0 0.0
    %1936 = vmatpush.msra.mxu0 0.0
    %1937 = vmatpush.msra.mxu0 0.0
    %1938 = vmatpush.msra.mxu0 0.0
    %1939 = vmatpush.msra.mxu0 0.0
    %1940 = vmatpush.msra.mxu0 0.0
    %1941 = vmatpush.msra.mxu0 %v358
    %1942 = vmatpush.msra.mxu0 %v357
    %1943 = vmatpush.msra.mxu0 %v356
    %1944 = vmatpush.msra.mxu0 %v355
    %1945 = vmatmul.f32.gmra.mxu0 %v1927
    %v1946 = vpop.f32.mrf.mxu0
    %v1947 = vadd.f32 %v359, %v1946
    %1948 = vdwg.mxu0
    %1949 = vmatpush.msra.mxu0 0.0
    %1950 = vmatpush.msra.mxu0 0.0
    %1951 = vmatpush.msra.mxu0 0.0
    %1952 = vmatpush.msra.mxu0 0.0
    %1953 = vmatpush.msra.mxu0 0.0
    %1954 = vmatpush.msra.mxu0 0.0
    %1955 = vmatpush.msra.mxu0 0.0
    %1956 = vmatpush.msra.mxu0 0.0
    %1957 = vmatpush.msra.mxu0 0.0
    %1958 = vmatpush.msra.mxu0 0.0
    %1959 = vmatpush.msra.mxu0 0.0
    %1960 = vmatpush.msra.mxu0 0.0
    %1961 = vmatpush.msra.mxu0 %v350
    %1962 = vmatpush.msra.mxu0 %v349
    %1963 = vmatpush.msra.mxu0 %v348
    %1964 = vmatpush.msra.mxu0 %v347
    %1965 = vmatmul.f32.gmra.mxu0 %v1863
    %v1966 = vpop.f32.mrf.mxu0
    %v1967 = vadd.f32 0.0, %v1966
    %1968 = vdwg.mxu0
    %v1969 = vadd.f32 %v1474, %v1967
    %v1970 = vxor.u32 %v1969, 2147483648
    %v1971 = vmul.f32 %v1970, 1.442695
    %v1972 = vpow.pop %v1971
    %v1973 = vadd.f32 %v1972, 1.0
    %v1974 = vrcp.pop %v1973
    %v1975 = vmul.f32 %v1973, %v1974
    %v1976 = vsub.f32 1.0, %v1975
    %v1977 = vmul.f32 %v1974, %v1976
    %v1978 = vadd.f32 %v1974, %v1977
    %vm1979 = vweird.f32 %v1973
    %vm1980 = vweird.f32 %v1974
    %vm1981 = vmor %vm1979, %vm1980
    %v1982 = vsel %vm1981, %v1974, %v1978
    %v1983 = vand.u32 2147483647, %v1973
    %vm1984 = vcmp.eq.f32.partialorder %v1983, 8.507059e+37
    %v1985 = vand.u32 %v1973, 2147483648
    %v1986 = vor.u32 1.1754944e-38, %v1985
    %v1987 = vsel %vm1984, %v1986, %v1982
    %v1988 = vmul.f32 1.0, %v1987
    %v1989 = vmul.f32 %v1988, 2.0
    %v1990 = vsub.f32 %v1989, 1.0
    %v1991 = vmul.f32 %v1988, %v1853
    %1993 = vrot.lane.b32.xlu0 %v1990, 64
    %v1994 = vpop.permute.xlu0 %1993
    %v1996 = vmul.f32 %v1988, %v1994
    %1998 = vrot.lane.b32.xlu0 %v1996, 32
    %v1999 = vpop.permute.xlu0 %1998
    %v2001 = vadd.f32 %v1991, %v1999
    %v2002 = vtanh.pop %v2001
    %2004 = vrot.lane.b32.xlu0 %v2002, 64
    %v2005 = vpop.permute.xlu0 %2004
    %v2007 = vmul.f32 %v1988, %v2005
    %2009 = vrot.lane.b32.xlu0 %v2007, 32
    %v2010 = vpop.permute.xlu0 %2009
    %v2011 = vsel %vm367, %v2010, 0
    %2013 = vmatpush.msra.mxu0 0.0
    %2014 = vmatpush.msra.mxu0 0.0
    %2015 = vmatpush.msra.mxu0 0.0
    %2016 = vmatpush.msra.mxu0 0.0
    %2017 = vmatpush.msra.mxu0 0.0
    %2018 = vmatpush.msra.mxu0 0.0
    %2019 = vmatpush.msra.mxu0 0.0
    %2020 = vmatpush.msra.mxu0 0.0
    %2021 = vmatpush.msra.mxu0 0.0
    %2022 = vmatpush.msra.mxu0 0.0
    %2023 = vmatpush.msra.mxu0 0.0
    %2024 = vmatpush.msra.mxu0 0.0
    %2025 = vmatpush.msra.mxu0 %v354
    %2026 = vmatpush.msra.mxu0 %v353
    %2027 = vmatpush.msra.mxu0 %v352
    %2028 = vmatpush.msra.mxu0 %v351
    %2029 = vmatmul.f32.gmra.mxu0 %v2011
    %v2030 = vpop.f32.mrf.mxu0
    %v2031 = vadd.f32 0.0, %v2030
    %2032 = vdwg.mxu0
    %v2033 = vadd.f32 %v1947, %v2031
    %v2034 = vxor.u32 %v2033, 2147483648
    %v2035 = vmul.f32 %v2034, 1.442695
    %v2036 = vpow.pop %v2035
    %v2037 = vadd.f32 %v2036, 1.0
    %v2038 = vrcp.pop %v2037
    %v2039 = vmul.f32 %v2037, %v2038
    %v2040 = vsub.f32 1.0, %v2039
    %v2041 = vmul.f32 %v2038, %v2040
    %v2042 = vadd.f32 %v2038, %v2041
    %vm2043 = vweird.f32 %v2037
    %vm2044 = vweird.f32 %v2038
    %vm2045 = vmor %vm2043, %vm2044
    %v2046 = vsel %vm2045, %v2038, %v2042
    %v2047 = vand.u32 2147483647, %v2037
    %vm2048 = vcmp.eq.f32.partialorder %v2047, 8.507059e+37
    %v2049 = vand.u32 %v2037, 2147483648
    %v2050 = vor.u32 1.1754944e-38, %v2049
    %v2051 = vsel %vm2048, %v2050, %v2046
    %v2052 = vmul.f32 1.0, %v2051
    %v2053 = vmul.f32 %v2052, 2.0
    %v2054 = vsub.f32 %v2053, 1.0
    %v2055 = vmul.f32 %v2052, %v1917
    %2057 = vrot.lane.b32.xlu0 %v2054, 64
    %v2058 = vpop.permute.xlu0 %2057
    %v2060 = vmul.f32 %v2052, %v2058
    %2062 = vrot.lane.b32.xlu0 %v2060, 32
    %v2063 = vpop.permute.xlu0 %2062
    %v2065 = vadd.f32 %v2055, %v2063
    %v2066 = vtanh.pop %v2065
    %2068 = vrot.lane.b32.xlu0 %v2066, 64
    %v2069 = vpop.permute.xlu0 %2068
    %v2071 = vmul.f32 %v2052, %v2069
    %2073 = vrot.lane.b32.xlu0 %v2071, 32
    %v2074 = vpop.permute.xlu0 %2073
    %v2075 = vsel %vm367, %v2074, 0
    %2077 = vmatpush.msra.mxu0 0.0
    %2078 = vmatpush.msra.mxu0 0.0
    %2079 = vmatpush.msra.mxu0 0.0
    %2080 = vmatpush.msra.mxu0 0.0
    %2081 = vmatpush.msra.mxu0 0.0
    %2082 = vmatpush.msra.mxu0 0.0
    %2083 = vmatpush.msra.mxu0 0.0
    %2084 = vmatpush.msra.mxu0 0.0
    %2085 = vmatpush.msra.mxu0 0.0
    %2086 = vmatpush.msra.mxu0 0.0
    %2087 = vmatpush.msra.mxu0 0.0
    %2088 = vmatpush.msra.mxu0 0.0
    %2089 = vmatpush.msra.mxu0 %v363
    %2090 = vmatpush.msra.mxu0 %v362
    %2091 = vmatpush.msra.mxu0 %v361
    %2092 = vmatpush.msra.mxu0 %v360
    %2093 = vmatmul.f32.gmra.mxu0 %v2075
    %v2094 = vpop.f32.mrf.mxu0
    %v2095 = vadd.f32 0.0, %v2094
    %2096 = vdwg.mxu0
    %v2097 = vsel %vm539, %v2095, -inf
    %2098 = vmax.xlane.f32.xlu0 %v2097
    %v2099 = vpop.xlane.xlu0 %2098
    %vm2100 = vcmp.eq.f32.partialorder %v2095, %v2099
    %v2101 = vsel %vm2100, %v365, 64
    %v2102 = vsel %vm539, %v2101, 2147483647
    %v2103 = vand.u32 %v2102, 65535
    %v2104 = vshra.s32 %v2102, 16
    %v2105 = vcvt.s32.f32 %v2103
    %v2106 = vcvt.s32.f32 %v2104
    %2107 = vmin.xlane.f32.xlu0 %v2106
    %v2108 = vpop.xlane.xlu0 %2107
    %vm2109 = vcmp.eq.f32.partialorder %v2106, %v2108
    %v2110 = vsel %vm2109, %v2105, inf
    %2111 = vmin.xlane.f32.xlu0 %v2110
    %v2112 = vpop.xlane.xlu0 %2111
    %v2113 = vcvt.f32.s32 %v2112
    %v2114 = vcvt.f32.s32 %v2108
    %v2115 = vshll.u32 %v2114, 16
    %v2116 = vadd.s32 %v2115, %v2113
    %vm2117 = vcmp.eq.s32.totalorder %v2116, %v365
    %v2118 = vsel %vm2117, 1, 0
    %v2119 = vcvt.s32.f32 %v2118
    %v2121 = vsel %vm539, %v2119, 0
    %2123 = vmatpush.msra.mxu0 0.0
    %2124 = vmatpush.msra.mxu0 0.0
    %2125 = vmatpush.msra.mxu0 0.0
    %2126 = vmatpush.msra.mxu0 0.0
    %2127 = vmatpush.msra.mxu0 0.0
    %2128 = vmatpush.msra.mxu0 0.0
    %2129 = vmatpush.msra.mxu0 0.0
    %2130 = vmatpush.msra.mxu0 0.0
    %2131 = vmatpush.msra.mxu0 %v346
    %2132 = vmatpush.msra.mxu0 %v345
    %2133 = vmatpush.msra.mxu0 %v344
    %2134 = vmatpush.msra.mxu0 %v343
    %2135 = vmatpush.msra.mxu0 %v342
    %2136 = vmatpush.msra.mxu0 %v341
    %2137 = vmatpush.msra.mxu0 %v340
    %2138 = vmatpush.msra.mxu0 %v339
    %2139 = vmatmul.f32.gmra.mxu0 %v2121
    %v2140 = vpop.f32.mrf.mxu0
    %v2141 = vadd.f32 0.0, %v2140
    %2142 = vdwg.mxu0
    %v2143 = vsub.f32 %v2095, %v2099
    %v2144 = vmul.f32 %v2143, 1.442695
    %v2145 = vpow.pop %v2144
    %v2146 = vsel %vm539, %v2145, 0.0
    %2147 = vadd.xlane.f32.xlu0 %v2146
    %v2148 = vpop.xlane.xlu0 %2147
    %v2149 = vlog2.pop %v2148
    %v2150 = vmul.f32 %v2149, 0.6931472
    %v2151 = vsub.f32 %v2143, %v2150
    %2152 = vmatpush.msra.mxu0 0.0
    %2153 = vmatpush.msra.mxu0 0.0
    %2154 = vmatpush.msra.mxu0 0.0
    %2155 = vmatpush.msra.mxu0 0.0
    %2156 = vmatpush.msra.mxu0 0.0
    %2157 = vmatpush.msra.mxu0 0.0
    %2158 = vmatpush.msra.mxu0 0.0
    %2159 = vmatpush.msra.mxu0 0.0
    %2160 = vmatpush.msra.mxu0 0.0
    %2161 = vmatpush.msra.mxu0 0.0
    %2162 = vmatpush.msra.mxu0 0.0
    %2163 = vmatpush.msra.mxu0 0.0
    %2164 = vmatpush.msra.mxu0 %v358
    %2165 = vmatpush.msra.mxu0 %v357
    %2166 = vmatpush.msra.mxu0 %v356
    %2167 = vmatpush.msra.mxu0 %v355
    %2168 = vmatmul.f32.gmra.mxu0 %v2075
    %v2169 = vpop.f32.mrf.mxu0
    %v2170 = vadd.f32 %v359, %v2169
    %2171 = vdwg.mxu0
    %2172 = vmatpush.msra.mxu0 0.0
    %2173 = vmatpush.msra.mxu0 0.0
    %2174 = vmatpush.msra.mxu0 0.0
    %2175 = vmatpush.msra.mxu0 0.0
    %2176 = vmatpush.msra.mxu0 0.0
    %2177 = vmatpush.msra.mxu0 0.0
    %2178 = vmatpush.msra.mxu0 0.0
    %2179 = vmatpush.msra.mxu0 0.0
    %2180 = vmatpush.msra.mxu0 0.0
    %2181 = vmatpush.msra.mxu0 0.0
    %2182 = vmatpush.msra.mxu0 0.0
    %2183 = vmatpush.msra.mxu0 0.0
    %2184 = vmatpush.msra.mxu0 %v350
    %2185 = vmatpush.msra.mxu0 %v349
    %2186 = vmatpush.msra.mxu0 %v348
    %2187 = vmatpush.msra.mxu0 %v347
    %2188 = vmatmul.f32.gmra.mxu0 %v2011
    %v2189 = vpop.f32.mrf.mxu0
    %v2190 = vadd.f32 0.0, %v2189
    %2191 = vdwg.mxu0
    %v2192 = vadd.f32 %v366, %v2190
    %v2193 = vxor.u32 %v2192, 2147483648
    %v2194 = vmul.f32 %v2193, 1.442695
    %v2195 = vpow.pop %v2194
    %v2196 = vadd.f32 %v2195, 1.0
    %v2197 = vrcp.pop %v2196
    %v2198 = vmul.f32 %v2196, %v2197
    %v2199 = vsub.f32 1.0, %v2198
    %v2200 = vmul.f32 %v2197, %v2199
    %v2201 = vadd.f32 %v2197, %v2200
    %vm2202 = vweird.f32 %v2196
    %vm2203 = vweird.f32 %v2197
    %vm2204 = vmor %vm2202, %vm2203
    %v2205 = vsel %vm2204, %v2197, %v2201
    %v2206 = vand.u32 2147483647, %v2196
    %vm2207 = vcmp.eq.f32.partialorder %v2206, 8.507059e+37
    %v2208 = vand.u32 %v2196, 2147483648
    %v2209 = vor.u32 1.1754944e-38, %v2208
    %v2210 = vsel %vm2207, %v2209, %v2205
    %v2211 = vmul.f32 1.0, %v2210
    %v2212 = vmul.f32 %v2211, 2.0
    %v2213 = vsub.f32 %v2212, 1.0
    %v2214 = vmul.f32 %v2211, %v2001
    %2216 = vrot.lane.b32.xlu0 %v2213, 64
    %v2217 = vpop.permute.xlu0 %2216
    %v2219 = vmul.f32 %v2211, %v2217
    %2221 = vrot.lane.b32.xlu0 %v2219, 32
    %v2222 = vpop.permute.xlu0 %2221
    %v2224 = vadd.f32 %v2214, %v2222
    %v2225 = vtanh.pop %v2224
    %2227 = vrot.lane.b32.xlu0 %v2225, 64
    %v2228 = vpop.permute.xlu0 %2227
    %v2230 = vmul.f32 %v2211, %v2228
    %2232 = vrot.lane.b32.xlu0 %v2230, 32
    %v2233 = vpop.permute.xlu0 %2232
    %v2234 = vsel %vm367, %v2233, 0
    %2236 = vmatpush.msra.mxu0 0.0
    %2237 = vmatpush.msra.mxu0 0.0
    %2238 = vmatpush.msra.mxu0 0.0
    %2239 = vmatpush.msra.mxu0 0.0
    %2240 = vmatpush.msra.mxu0 0.0
    %2241 = vmatpush.msra.mxu0 0.0
    %2242 = vmatpush.msra.mxu0 0.0
    %2243 = vmatpush.msra.mxu0 0.0
    %2244 = vmatpush.msra.mxu0 0.0
    %2245 = vmatpush.msra.mxu0 0.0
    %2246 = vmatpush.msra.mxu0 0.0
    %2247 = vmatpush.msra.mxu0 0.0
    %2248 = vmatpush.msra.mxu0 %v354
    %2249 = vmatpush.msra.mxu0 %v353
    %2250 = vmatpush.msra.mxu0 %v352
    %2251 = vmatpush.msra.mxu0 %v351
    %2252 = vmatmul.f32.gmra.mxu0 %v2234
    %v2253 = vpop.f32.mrf.mxu0
    %v2254 = vadd.f32 0.0, %v2253
    %2255 = vdwg.mxu0
    %v2256 = vadd.f32 %v2170, %v2254
    %v2257 = vxor.u32 %v2256, 2147483648
    %v2258 = vmul.f32 %v2257, 1.442695
    %v2259 = vpow.pop %v2258
    %v2260 = vadd.f32 %v2259, 1.0
    %v2261 = vrcp.pop %v2260
    %v2262 = vmul.f32 %v2260, %v2261
    %v2263 = vsub.f32 1.0, %v2262
    %v2264 = vmul.f32 %v2261, %v2263
    %v2265 = vadd.f32 %v2261, %v2264
    %vm2266 = vweird.f32 %v2260
    %vm2267 = vweird.f32 %v2261
    %vm2268 = vmor %vm2266, %vm2267
    %v2269 = vsel %vm2268, %v2261, %v2265
    %v2270 = vand.u32 2147483647, %v2260
    %vm2271 = vcmp.eq.f32.partialorder %v2270, 8.507059e+37
    %v2272 = vand.u32 %v2260, 2147483648
    %v2273 = vor.u32 1.1754944e-38, %v2272
    %v2274 = vsel %vm2271, %v2273, %v2269
    %v2275 = vmul.f32 1.0, %v2274
    %v2276 = vmul.f32 %v2275, 2.0
    %v2277 = vsub.f32 %v2276, 1.0
    %v2278 = vmul.f32 %v2275, %v2065
    %2280 = vrot.lane.b32.xlu0 %v2277, 64
    %v2281 = vpop.permute.xlu0 %2280
    %v2283 = vmul.f32 %v2275, %v2281
    %2285 = vrot.lane.b32.xlu0 %v2283, 32
    %v2286 = vpop.permute.xlu0 %2285
    %v2288 = vadd.f32 %v2278, %v2286
    %v2289 = vtanh.pop %v2288
    %2291 = vrot.lane.b32.xlu0 %v2289, 64
    %v2292 = vpop.permute.xlu0 %2291
    %v2294 = vmul.f32 %v2275, %v2292
    %2296 = vrot.lane.b32.xlu0 %v2294, 32
    %v2297 = vpop.permute.xlu0 %2296
    %v2298 = vsel %vm367, %v2297, 0
    %2300 = vmatpush.msra.mxu0 0.0
    %2301 = vmatpush.msra.mxu0 0.0
    %2302 = vmatpush.msra.mxu0 0.0
    %2303 = vmatpush.msra.mxu0 0.0
    %2304 = vmatpush.msra.mxu0 0.0
    %2305 = vmatpush.msra.mxu0 0.0
    %2306 = vmatpush.msra.mxu0 0.0
    %2307 = vmatpush.msra.mxu0 0.0
    %2308 = vmatpush.msra.mxu0 0.0
    %2309 = vmatpush.msra.mxu0 0.0
    %2310 = vmatpush.msra.mxu0 0.0
    %2311 = vmatpush.msra.mxu0 0.0
    %2312 = vmatpush.msra.mxu0 %v358
    %2313 = vmatpush.msra.mxu0 %v357
    %2314 = vmatpush.msra.mxu0 %v356
    %2315 = vmatpush.msra.mxu0 %v355
    %2316 = vmatmul.f32.gmra.mxu0 %v2298
    %v2317 = vpop.f32.mrf.mxu0
    %v2318 = vadd.f32 %v359, %v2317
    %2319 = vdwg.mxu0
    %2320 = vmatpush.msra.mxu0 0.0
    %2321 = vmatpush.msra.mxu0 0.0
    %2322 = vmatpush.msra.mxu0 0.0
    %2323 = vmatpush.msra.mxu0 0.0
    %2324 = vmatpush.msra.mxu0 0.0
    %2325 = vmatpush.msra.mxu0 0.0
    %2326 = vmatpush.msra.mxu0 0.0
    %2327 = vmatpush.msra.mxu0 0.0
    %2328 = vmatpush.msra.mxu0 0.0
    %2329 = vmatpush.msra.mxu0 0.0
    %2330 = vmatpush.msra.mxu0 0.0
    %2331 = vmatpush.msra.mxu0 0.0
    %2332 = vmatpush.msra.mxu0 %v350
    %2333 = vmatpush.msra.mxu0 %v349
    %2334 = vmatpush.msra.mxu0 %v348
    %2335 = vmatpush.msra.mxu0 %v347
    %2336 = vmatmul.f32.gmra.mxu0 %v2234
    %v2337 = vpop.f32.mrf.mxu0
    %v2338 = vadd.f32 0.0, %v2337
    %2339 = vdwg.mxu0
    %v2340 = vadd.f32 %v584, %v2338
    %v2341 = vxor.u32 %v2340, 2147483648
    %v2342 = vmul.f32 %v2341, 1.442695
    %v2343 = vpow.pop %v2342
    %v2344 = vadd.f32 %v2343, 1.0
    %v2345 = vrcp.pop %v2344
    %v2346 = vmul.f32 %v2344, %v2345
    %v2347 = vsub.f32 1.0, %v2346
    %v2348 = vmul.f32 %v2345, %v2347
    %v2349 = vadd.f32 %v2345, %v2348
    %vm2350 = vweird.f32 %v2344
    %vm2351 = vweird.f32 %v2345
    %vm2352 = vmor %vm2350, %vm2351
    %v2353 = vsel %vm2352, %v2345, %v2349
    %v2354 = vand.u32 2147483647, %v2344
    %vm2355 = vcmp.eq.f32.partialorder %v2354, 8.507059e+37
    %v2356 = vand.u32 %v2344, 2147483648
    %v2357 = vor.u32 1.1754944e-38, %v2356
    %v2358 = vsel %vm2355, %v2357, %v2353
    %v2359 = vmul.f32 1.0, %v2358
    %v2360 = vmul.f32 %v2359, 2.0
    %v2361 = vsub.f32 %v2360, 1.0
    %v2362 = vmul.f32 %v2359, %v2224
    %2364 = vrot.lane.b32.xlu0 %v2361, 64
    %v2365 = vpop.permute.xlu0 %2364
    %v2367 = vmul.f32 %v2359, %v2365
    %2369 = vrot.lane.b32.xlu0 %v2367, 32
    %v2370 = vpop.permute.xlu0 %2369
    %v2372 = vadd.f32 %v2362, %v2370
    %v2373 = vtanh.pop %v2372
    %2375 = vrot.lane.b32.xlu0 %v2373, 64
    %v2376 = vpop.permute.xlu0 %2375
    %v2378 = vmul.f32 %v2359, %v2376
    %2380 = vrot.lane.b32.xlu0 %v2378, 32
    %v2381 = vpop.permute.xlu0 %2380
    %v2382 = vsel %vm367, %v2381, 0
    %2384 = vmatpush.msra.mxu0 0.0
    %2385 = vmatpush.msra.mxu0 0.0
    %2386 = vmatpush.msra.mxu0 0.0
    %2387 = vmatpush.msra.mxu0 0.0
    %2388 = vmatpush.msra.mxu0 0.0
    %2389 = vmatpush.msra.mxu0 0.0
    %2390 = vmatpush.msra.mxu0 0.0
    %2391 = vmatpush.msra.mxu0 0.0
    %2392 = vmatpush.msra.mxu0 0.0
    %2393 = vmatpush.msra.mxu0 0.0
    %2394 = vmatpush.msra.mxu0 0.0
    %2395 = vmatpush.msra.mxu0 0.0
    %2396 = vmatpush.msra.mxu0 %v354
    %2397 = vmatpush.msra.mxu0 %v353
    %2398 = vmatpush.msra.mxu0 %v352
    %2399 = vmatpush.msra.mxu0 %v351
    %2400 = vmatmul.f32.gmra.mxu0 %v2382
    %v2401 = vpop.f32.mrf.mxu0
    %v2402 = vadd.f32 0.0, %v2401
    %2403 = vdwg.mxu0
    %v2404 = vadd.f32 %v2318, %v2402
    %v2405 = vxor.u32 %v2404, 2147483648
    %v2406 = vmul.f32 %v2405, 1.442695
    %v2407 = vpow.pop %v2406
    %v2408 = vadd.f32 %v2407, 1.0
    %v2409 = vrcp.pop %v2408
    %v2410 = vmul.f32 %v2408, %v2409
    %v2411 = vsub.f32 1.0, %v2410
    %v2412 = vmul.f32 %v2409, %v2411
    %v2413 = vadd.f32 %v2409, %v2412
    %vm2414 = vweird.f32 %v2408
    %vm2415 = vweird.f32 %v2409
    %vm2416 = vmor %vm2414, %vm2415
    %v2417 = vsel %vm2416, %v2409, %v2413
    %v2418 = vand.u32 2147483647, %v2408
    %vm2419 = vcmp.eq.f32.partialorder %v2418, 8.507059e+37
    %v2420 = vand.u32 %v2408, 2147483648
    %v2421 = vor.u32 1.1754944e-38, %v2420
    %v2422 = vsel %vm2419, %v2421, %v2417
    %v2423 = vmul.f32 1.0, %v2422
    %v2424 = vmul.f32 %v2423, 2.0
    %v2425 = vsub.f32 %v2424, 1.0
    %v2426 = vmul.f32 %v2423, %v2288
    %2428 = vrot.lane.b32.xlu0 %v2425, 64
    %v2429 = vpop.permute.xlu0 %2428
    %v2431 = vmul.f32 %v2423, %v2429
    %2433 = vrot.lane.b32.xlu0 %v2431, 32
    %v2434 = vpop.permute.xlu0 %2433
    %v2436 = vadd.f32 %v2426, %v2434
    %v2437 = vtanh.pop %v2436
    %2439 = vrot.lane.b32.xlu0 %v2437, 64
    %v2440 = vpop.permute.xlu0 %2439
    %v2442 = vmul.f32 %v2423, %v2440
    %2444 = vrot.lane.b32.xlu0 %v2442, 32
    %v2445 = vpop.permute.xlu0 %2444
    %v2446 = vsel %vm367, %v2445, 0
    %2448 = vmatpush.msra.mxu0 0.0
    %2449 = vmatpush.msra.mxu0 0.0
    %2450 = vmatpush.msra.mxu0 0.0
    %2451 = vmatpush.msra.mxu0 0.0
    %2452 = vmatpush.msra.mxu0 0.0
    %2453 = vmatpush.msra.mxu0 0.0
    %2454 = vmatpush.msra.mxu0 0.0
    %2455 = vmatpush.msra.mxu0 0.0
    %2456 = vmatpush.msra.mxu0 0.0
    %2457 = vmatpush.msra.mxu0 0.0
    %2458 = vmatpush.msra.mxu0 0.0
    %2459 = vmatpush.msra.mxu0 0.0
    %2460 = vmatpush.msra.mxu0 %v358
    %2461 = vmatpush.msra.mxu0 %v357
    %2462 = vmatpush.msra.mxu0 %v356
    %2463 = vmatpush.msra.mxu0 %v355
    %2464 = vmatmul.f32.gmra.mxu0 %v2446
    %v2465 = vpop.f32.mrf.mxu0
    %v2466 = vadd.f32 %v359, %v2465
    %2467 = vdwg.mxu0
    %2468 = vmatpush.msra.mxu0 0.0
    %2469 = vmatpush.msra.mxu0 0.0
    %2470 = vmatpush.msra.mxu0 0.0
    %2471 = vmatpush.msra.mxu0 0.0
    %2472 = vmatpush.msra.mxu0 0.0
    %2473 = vmatpush.msra.mxu0 0.0
    %2474 = vmatpush.msra.mxu0 0.0
    %2475 = vmatpush.msra.mxu0 0.0
    %2476 = vmatpush.msra.mxu0 0.0
    %2477 = vmatpush.msra.mxu0 0.0
    %2478 = vmatpush.msra.mxu0 0.0
    %2479 = vmatpush.msra.mxu0 0.0
    %2480 = vmatpush.msra.mxu0 %v350
    %2481 = vmatpush.msra.mxu0 %v349
    %2482 = vmatpush.msra.mxu0 %v348
    %2483 = vmatpush.msra.mxu0 %v347
    %2484 = vmatmul.f32.gmra.mxu0 %v2382
    %v2485 = vpop.f32.mrf.mxu0
    %v2486 = vadd.f32 0.0, %v2485
    %2487 = vdwg.mxu0
    %v2488 = vadd.f32 %v955, %v2486
    %v2489 = vxor.u32 %v2488, 2147483648
    %v2490 = vmul.f32 %v2489, 1.442695
    %v2491 = vpow.pop %v2490
    %v2492 = vadd.f32 %v2491, 1.0
    %v2493 = vrcp.pop %v2492
    %v2494 = vmul.f32 %v2492, %v2493
    %v2495 = vsub.f32 1.0, %v2494
    %v2496 = vmul.f32 %v2493, %v2495
    %v2497 = vadd.f32 %v2493, %v2496
    %vm2498 = vweird.f32 %v2492
    %vm2499 = vweird.f32 %v2493
    %vm2500 = vmor %vm2498, %vm2499
    %v2501 = vsel %vm2500, %v2493, %v2497
    %v2502 = vand.u32 2147483647, %v2492
    %vm2503 = vcmp.eq.f32.partialorder %v2502, 8.507059e+37
    %v2504 = vand.u32 %v2492, 2147483648
    %v2505 = vor.u32 1.1754944e-38, %v2504
    %v2506 = vsel %vm2503, %v2505, %v2501
    %v2507 = vmul.f32 1.0, %v2506
    %v2508 = vmul.f32 %v2507, 2.0
    %v2509 = vsub.f32 %v2508, 1.0
    %v2510 = vmul.f32 %v2507, %v2372
    %2512 = vrot.lane.b32.xlu0 %v2509, 64
    %v2513 = vpop.permute.xlu0 %2512
    %v2515 = vmul.f32 %v2507, %v2513
    %2517 = vrot.lane.b32.xlu0 %v2515, 32
    %v2518 = vpop.permute.xlu0 %2517
    %v2520 = vadd.f32 %v2510, %v2518
    %v2521 = vtanh.pop %v2520
    %2523 = vrot.lane.b32.xlu0 %v2521, 64
    %v2524 = vpop.permute.xlu0 %2523
    %v2526 = vmul.f32 %v2507, %v2524
    %2528 = vrot.lane.b32.xlu0 %v2526, 32
    %v2529 = vpop.permute.xlu0 %2528
    %v2530 = vsel %vm367, %v2529, 0
    %2532 = vmatpush.msra.mxu0 0.0
    %2533 = vmatpush.msra.mxu0 0.0
    %2534 = vmatpush.msra.mxu0 0.0
    %2535 = vmatpush.msra.mxu0 0.0
    %2536 = vmatpush.msra.mxu0 0.0
    %2537 = vmatpush.msra.mxu0 0.0
    %2538 = vmatpush.msra.mxu0 0.0
    %2539 = vmatpush.msra.mxu0 0.0
    %2540 = vmatpush.msra.mxu0 0.0
    %2541 = vmatpush.msra.mxu0 0.0
    %2542 = vmatpush.msra.mxu0 0.0
    %2543 = vmatpush.msra.mxu0 0.0
    %2544 = vmatpush.msra.mxu0 %v354
    %2545 = vmatpush.msra.mxu0 %v353
    %2546 = vmatpush.msra.mxu0 %v352
    %2547 = vmatpush.msra.mxu0 %v351
    %2548 = vmatmul.f32.gmra.mxu0 %v2530
    %v2549 = vpop.f32.mrf.mxu0
    %v2550 = vadd.f32 0.0, %v2549
    %2551 = vdwg.mxu0
    %v2552 = vadd.f32 %v2466, %v2550
    %v2553 = vxor.u32 %v2552, 2147483648
    %v2554 = vmul.f32 %v2553, 1.442695
    %v2555 = vpow.pop %v2554
    %v2556 = vadd.f32 %v2555, 1.0
    %v2557 = vrcp.pop %v2556
    %v2558 = vmul.f32 %v2556, %v2557
    %v2559 = vsub.f32 1.0, %v2558
    %v2560 = vmul.f32 %v2557, %v2559
    %v2561 = vadd.f32 %v2557, %v2560
    %vm2562 = vweird.f32 %v2556
    %vm2563 = vweird.f32 %v2557
    %vm2564 = vmor %vm2562, %vm2563
    %v2565 = vsel %vm2564, %v2557, %v2561
    %v2566 = vand.u32 2147483647, %v2556
    %vm2567 = vcmp.eq.f32.partialorder %v2566, 8.507059e+37
    %v2568 = vand.u32 %v2556, 2147483648
    %v2569 = vor.u32 1.1754944e-38, %v2568
    %v2570 = vsel %vm2567, %v2569, %v2565
    %v2571 = vmul.f32 1.0, %v2570
    %v2572 = vmul.f32 %v2571, 2.0
    %v2573 = vsub.f32 %v2572, 1.0
    %v2574 = vmul.f32 %v2571, %v2436
    %2576 = vrot.lane.b32.xlu0 %v2573, 64
    %v2577 = vpop.permute.xlu0 %2576
    %v2579 = vmul.f32 %v2571, %v2577
    %2581 = vrot.lane.b32.xlu0 %v2579, 32
    %v2582 = vpop.permute.xlu0 %2581
    %v2584 = vadd.f32 %v2574, %v2582
    %v2585 = vtanh.pop %v2584
    %2587 = vrot.lane.b32.xlu0 %v2585, 64
    %v2588 = vpop.permute.xlu0 %2587
    %v2590 = vmul.f32 %v2571, %v2588
    %2592 = vrot.lane.b32.xlu0 %v2590, 32
    %v2593 = vpop.permute.xlu0 %2592
    %v2594 = vsel %vm367, %v2593, 0
    %2596 = vmatpush.msra.mxu0 0.0
    %2597 = vmatpush.msra.mxu0 0.0
    %2598 = vmatpush.msra.mxu0 0.0
    %2599 = vmatpush.msra.mxu0 0.0
    %2600 = vmatpush.msra.mxu0 0.0
    %2601 = vmatpush.msra.mxu0 0.0
    %2602 = vmatpush.msra.mxu0 0.0
    %2603 = vmatpush.msra.mxu0 0.0
    %2604 = vmatpush.msra.mxu0 0.0
    %2605 = vmatpush.msra.mxu0 0.0
    %2606 = vmatpush.msra.mxu0 0.0
    %2607 = vmatpush.msra.mxu0 0.0
    %2608 = vmatpush.msra.mxu0 %v358
    %2609 = vmatpush.msra.mxu0 %v357
    %2610 = vmatpush.msra.mxu0 %v356
    %2611 = vmatpush.msra.mxu0 %v355
    %2612 = vmatmul.f32.gmra.mxu0 %v2594
    %v2613 = vpop.f32.mrf.mxu0
    %v2614 = vadd.f32 %v359, %v2613
    %2615 = vdwg.mxu0
    %2616 = vmatpush.msra.mxu0 0.0
    %2617 = vmatpush.msra.mxu0 0.0
    %2618 = vmatpush.msra.mxu0 0.0
    %2619 = vmatpush.msra.mxu0 0.0
    %2620 = vmatpush.msra.mxu0 0.0
    %2621 = vmatpush.msra.mxu0 0.0
    %2622 = vmatpush.msra.mxu0 0.0
    %2623 = vmatpush.msra.mxu0 0.0
    %2624 = vmatpush.msra.mxu0 0.0
    %2625 = vmatpush.msra.mxu0 0.0
    %2626 = vmatpush.msra.mxu0 0.0
    %2627 = vmatpush.msra.mxu0 0.0
    %2628 = vmatpush.msra.mxu0 %v350
    %2629 = vmatpush.msra.mxu0 %v349
    %2630 = vmatpush.msra.mxu0 %v348
    %2631 = vmatpush.msra.mxu0 %v347
    %2632 = vmatmul.f32.gmra.mxu0 %v2530
    %v2633 = vpop.f32.mrf.mxu0
    %v2634 = vadd.f32 0.0, %v2633
    %2635 = vdwg.mxu0
    %v2636 = vadd.f32 %v1474, %v2634
    %v2637 = vxor.u32 %v2636, 2147483648
    %v2638 = vmul.f32 %v2637, 1.442695
    %v2639 = vpow.pop %v2638
    %v2640 = vadd.f32 %v2639, 1.0
    %v2641 = vrcp.pop %v2640
    %v2642 = vmul.f32 %v2640, %v2641
    %v2643 = vsub.f32 1.0, %v2642
    %v2644 = vmul.f32 %v2641, %v2643
    %v2645 = vadd.f32 %v2641, %v2644
    %vm2646 = vweird.f32 %v2640
    %vm2647 = vweird.f32 %v2641
    %vm2648 = vmor %vm2646, %vm2647
    %v2649 = vsel %vm2648, %v2641, %v2645
    %v2650 = vand.u32 2147483647, %v2640
    %vm2651 = vcmp.eq.f32.partialorder %v2650, 8.507059e+37
    %v2652 = vand.u32 %v2640, 2147483648
    %v2653 = vor.u32 1.1754944e-38, %v2652
    %v2654 = vsel %vm2651, %v2653, %v2649
    %v2655 = vmul.f32 1.0, %v2654
    %v2656 = vmul.f32 %v2655, 2.0
    %v2657 = vsub.f32 %v2656, 1.0
    %v2658 = vmul.f32 %v2655, %v2520
    %2660 = vrot.lane.b32.xlu0 %v2657, 64
    %v2661 = vpop.permute.xlu0 %2660
    %v2663 = vmul.f32 %v2655, %v2661
    %2665 = vrot.lane.b32.xlu0 %v2663, 32
    %v2666 = vpop.permute.xlu0 %2665
    %v2668 = vadd.f32 %v2658, %v2666
    %v2669 = vtanh.pop %v2668
    %2671 = vrot.lane.b32.xlu0 %v2669, 64
    %v2672 = vpop.permute.xlu0 %2671
    %v2674 = vmul.f32 %v2655, %v2672
    %2676 = vrot.lane.b32.xlu0 %v2674, 32
    %v2677 = vpop.permute.xlu0 %2676
    %v2678 = vsel %vm367, %v2677, 0
    %2680 = vmatpush.msra.mxu0 0.0
    %2681 = vmatpush.msra.mxu0 0.0
    %2682 = vmatpush.msra.mxu0 0.0
    %2683 = vmatpush.msra.mxu0 0.0
    %2684 = vmatpush.msra.mxu0 0.0
    %2685 = vmatpush.msra.mxu0 0.0
    %2686 = vmatpush.msra.mxu0 0.0
    %2687 = vmatpush.msra.mxu0 0.0
    %2688 = vmatpush.msra.mxu0 0.0
    %2689 = vmatpush.msra.mxu0 0.0
    %2690 = vmatpush.msra.mxu0 0.0
    %2691 = vmatpush.msra.mxu0 0.0
    %2692 = vmatpush.msra.mxu0 %v354
    %2693 = vmatpush.msra.mxu0 %v353
    %2694 = vmatpush.msra.mxu0 %v352
    %2695 = vmatpush.msra.mxu0 %v351
    %2696 = vmatmul.f32.gmra.mxu0 %v2678
    %v2697 = vpop.f32.mrf.mxu0
    %v2698 = vadd.f32 0.0, %v2697
    %2699 = vdwg.mxu0
    %v2700 = vadd.f32 %v2614, %v2698
    %v2701 = vxor.u32 %v2700, 2147483648
    %v2702 = vmul.f32 %v2701, 1.442695
    %v2703 = vpow.pop %v2702
    %v2704 = vadd.f32 %v2703, 1.0
    %v2705 = vrcp.pop %v2704
    %v2706 = vmul.f32 %v2704, %v2705
    %v2707 = vsub.f32 1.0, %v2706
    %v2708 = vmul.f32 %v2705, %v2707
    %v2709 = vadd.f32 %v2705, %v2708
    %vm2710 = vweird.f32 %v2704
    %vm2711 = vweird.f32 %v2705
    %vm2712 = vmor %vm2710, %vm2711
    %v2713 = vsel %vm2712, %v2705, %v2709
    %v2714 = vand.u32 2147483647, %v2704
    %vm2715 = vcmp.eq.f32.partialorder %v2714, 8.507059e+37
    %v2716 = vand.u32 %v2704, 2147483648
    %v2717 = vor.u32 1.1754944e-38, %v2716
    %v2718 = vsel %vm2715, %v2717, %v2713
    %v2719 = vmul.f32 1.0, %v2718
    %v2720 = vmul.f32 %v2719, 2.0
    %v2721 = vsub.f32 %v2720, 1.0
    %v2722 = vmul.f32 %v2719, %v2584
    %2724 = vrot.lane.b32.xlu0 %v2721, 64
    %v2725 = vpop.permute.xlu0 %2724
    %v2727 = vmul.f32 %v2719, %v2725
    %2729 = vrot.lane.b32.xlu0 %v2727, 32
    %v2730 = vpop.permute.xlu0 %2729
    %v2732 = vadd.f32 %v2722, %v2730
    %v2733 = vtanh.pop %v2732
    %2735 = vrot.lane.b32.xlu0 %v2733, 64
    %v2736 = vpop.permute.xlu0 %2735
    %v2738 = vmul.f32 %v2719, %v2736
    %2740 = vrot.lane.b32.xlu0 %v2738, 32
    %v2741 = vpop.permute.xlu0 %2740
    %v2742 = vsel %vm367, %v2741, 0
    %2744 = vmatpush.msra.mxu0 0.0
    %2745 = vmatpush.msra.mxu0 0.0
    %2746 = vmatpush.msra.mxu0 0.0
    %2747 = vmatpush.msra.mxu0 0.0
    %2748 = vmatpush.msra.mxu0 0.0
    %2749 = vmatpush.msra.mxu0 0.0
    %2750 = vmatpush.msra.mxu0 0.0
    %2751 = vmatpush.msra.mxu0 0.0
    %2752 = vmatpush.msra.mxu0 0.0
    %2753 = vmatpush.msra.mxu0 0.0
    %2754 = vmatpush.msra.mxu0 0.0
    %2755 = vmatpush.msra.mxu0 0.0
    %2756 = vmatpush.msra.mxu0 %v358
    %2757 = vmatpush.msra.mxu0 %v357
    %2758 = vmatpush.msra.mxu0 %v356
    %2759 = vmatpush.msra.mxu0 %v355
    %2760 = vmatmul.f32.gmra.mxu0 %v2742
    %v2761 = vpop.f32.mrf.mxu0
    %v2762 = vadd.f32 %v359, %v2761
    %2763 = vdwg.mxu0
    %2764 = vmatpush.msra.mxu0 0.0
    %2765 = vmatpush.msra.mxu0 0.0
    %2766 = vmatpush.msra.mxu0 0.0
    %2767 = vmatpush.msra.mxu0 0.0
    %2768 = vmatpush.msra.mxu0 0.0
    %2769 = vmatpush.msra.mxu0 0.0
    %2770 = vmatpush.msra.mxu0 0.0
    %2771 = vmatpush.msra.mxu0 0.0
    %2772 = vmatpush.msra.mxu0 0.0
    %2773 = vmatpush.msra.mxu0 0.0
    %2774 = vmatpush.msra.mxu0 0.0
    %2775 = vmatpush.msra.mxu0 0.0
    %2776 = vmatpush.msra.mxu0 %v350
    %2777 = vmatpush.msra.mxu0 %v349
    %2778 = vmatpush.msra.mxu0 %v348
    %2779 = vmatpush.msra.mxu0 %v347
    %2780 = vmatmul.f32.gmra.mxu0 %v2678
    %v2781 = vpop.f32.mrf.mxu0
    %v2782 = vadd.f32 0.0, %v2781
    %2783 = vdwg.mxu0
    %v2784 = vadd.f32 %v2141, %v2782
    %v2785 = vxor.u32 %v2784, 2147483648
    %v2786 = vmul.f32 %v2785, 1.442695
    %v2787 = vpow.pop %v2786
    %v2788 = vadd.f32 %v2787, 1.0
    %v2789 = vrcp.pop %v2788
    %v2790 = vmul.f32 %v2788, %v2789
    %v2791 = vsub.f32 1.0, %v2790
    %v2792 = vmul.f32 %v2789, %v2791
    %v2793 = vadd.f32 %v2789, %v2792
    %vm2794 = vweird.f32 %v2788
    %vm2795 = vweird.f32 %v2789
    %vm2796 = vmor %vm2794, %vm2795
    %v2797 = vsel %vm2796, %v2789, %v2793
    %v2798 = vand.u32 2147483647, %v2788
    %vm2799 = vcmp.eq.f32.partialorder %v2798, 8.507059e+37
    %v2800 = vand.u32 %v2788, 2147483648
    %v2801 = vor.u32 1.1754944e-38, %v2800
    %v2802 = vsel %vm2799, %v2801, %v2797
    %v2803 = vmul.f32 1.0, %v2802
    %v2804 = vmul.f32 %v2803, 2.0
    %v2805 = vsub.f32 %v2804, 1.0
    %v2806 = vmul.f32 %v2803, %v2668
    %2808 = vrot.lane.b32.xlu0 %v2805, 64
    %v2809 = vpop.permute.xlu0 %2808
    %v2811 = vmul.f32 %v2803, %v2809
    %2813 = vrot.lane.b32.xlu0 %v2811, 32
    %v2814 = vpop.permute.xlu0 %2813
    %v2816 = vadd.f32 %v2806, %v2814
    %v2817 = vtanh.pop %v2816
    %2819 = vrot.lane.b32.xlu0 %v2817, 64
    %v2820 = vpop.permute.xlu0 %2819
    %v2822 = vmul.f32 %v2803, %v2820
    %2824 = vrot.lane.b32.xlu0 %v2822, 32
    %v2825 = vpop.permute.xlu0 %2824
    %v2826 = vsel %vm367, %v2825, 0
    %2828 = vmatpush.msra.mxu0 0.0
    %2829 = vmatpush.msra.mxu0 0.0
    %2830 = vmatpush.msra.mxu0 0.0
    %2831 = vmatpush.msra.mxu0 0.0
    %2832 = vmatpush.msra.mxu0 0.0
    %2833 = vmatpush.msra.mxu0 0.0
    %2834 = vmatpush.msra.mxu0 0.0
    %2835 = vmatpush.msra.mxu0 0.0
    %2836 = vmatpush.msra.mxu0 0.0
    %2837 = vmatpush.msra.mxu0 0.0
    %2838 = vmatpush.msra.mxu0 0.0
    %2839 = vmatpush.msra.mxu0 0.0
    %2840 = vmatpush.msra.mxu0 %v354
    %2841 = vmatpush.msra.mxu0 %v353
    %2842 = vmatpush.msra.mxu0 %v352
    %2843 = vmatpush.msra.mxu0 %v351
    %2844 = vmatmul.f32.gmra.mxu0 %v2826
    %v2845 = vpop.f32.mrf.mxu0
    %v2846 = vadd.f32 0.0, %v2845
    %2847 = vdwg.mxu0
    %v2848 = vadd.f32 %v2762, %v2846
    %v2849 = vxor.u32 %v2848, 2147483648
    %v2850 = vmul.f32 %v2849, 1.442695
    %v2851 = vpow.pop %v2850
    %v2852 = vadd.f32 %v2851, 1.0
    %v2853 = vrcp.pop %v2852
    %v2854 = vmul.f32 %v2852, %v2853
    %v2855 = vsub.f32 1.0, %v2854
    %v2856 = vmul.f32 %v2853, %v2855
    %v2857 = vadd.f32 %v2853, %v2856
    %vm2858 = vweird.f32 %v2852
    %vm2859 = vweird.f32 %v2853
    %vm2860 = vmor %vm2858, %vm2859
    %v2861 = vsel %vm2860, %v2853, %v2857
    %v2862 = vand.u32 2147483647, %v2852
    %vm2863 = vcmp.eq.f32.partialorder %v2862, 8.507059e+37
    %v2864 = vand.u32 %v2852, 2147483648
    %v2865 = vor.u32 1.1754944e-38, %v2864
    %v2866 = vsel %vm2863, %v2865, %v2861
    %v2867 = vmul.f32 1.0, %v2866
    %v2868 = vmul.f32 %v2867, 2.0
    %v2869 = vsub.f32 %v2868, 1.0
    %v2870 = vmul.f32 %v2867, %v2732
    %2872 = vrot.lane.b32.xlu0 %v2869, 64
    %v2873 = vpop.permute.xlu0 %2872
    %v2875 = vmul.f32 %v2867, %v2873
    %2877 = vrot.lane.b32.xlu0 %v2875, 32
    %v2878 = vpop.permute.xlu0 %2877
    %v2880 = vadd.f32 %v2870, %v2878
    %v2881 = vtanh.pop %v2880
    %2883 = vrot.lane.b32.xlu0 %v2881, 64
    %v2884 = vpop.permute.xlu0 %2883
    %v2886 = vmul.f32 %v2867, %v2884
    %2888 = vrot.lane.b32.xlu0 %v2886, 32
    %v2889 = vpop.permute.xlu0 %2888
    %v2890 = vsel %vm367, %v2889, 0
    %2892 = vmatpush.msra.mxu0 0.0
    %2893 = vmatpush.msra.mxu0 0.0
    %2894 = vmatpush.msra.mxu0 0.0
    %2895 = vmatpush.msra.mxu0 0.0
    %2896 = vmatpush.msra.mxu0 0.0
    %2897 = vmatpush.msra.mxu0 0.0
    %2898 = vmatpush.msra.mxu0 0.0
    %2899 = vmatpush.msra.mxu0 0.0
    %2900 = vmatpush.msra.mxu0 0.0
    %2901 = vmatpush.msra.mxu0 0.0
    %2902 = vmatpush.msra.mxu0 0.0
    %2903 = vmatpush.msra.mxu0 0.0
    %2904 = vmatpush.msra.mxu0 %v363
    %2905 = vmatpush.msra.mxu0 %v362
    %2906 = vmatpush.msra.mxu0 %v361
    %2907 = vmatpush.msra.mxu0 %v360
    %2908 = vmatmul.f32.gmra.mxu0 %v2890
    %v2909 = vpop.f32.mrf.mxu0
    %v2910 = vadd.f32 0.0, %v2909
    %2911 = vdwg.mxu0
    %v2912 = vsel %vm539, %v2910, -inf
    %2913 = vmax.xlane.f32.xlu0 %v2912
    %v2914 = vpop.xlane.xlu0 %2913
    %vm2915 = vcmp.eq.f32.partialorder %v2910, %v2914
    %v2916 = vsel %vm2915, %v365, 64
    %v2917 = vsel %vm539, %v2916, 2147483647
    %v2918 = vand.u32 %v2917, 65535
    %v2919 = vshra.s32 %v2917, 16
    %v2920 = vcvt.s32.f32 %v2918
    %v2921 = vcvt.s32.f32 %v2919
    %2922 = vmin.xlane.f32.xlu0 %v2921
    %v2923 = vpop.xlane.xlu0 %2922
    %vm2924 = vcmp.eq.f32.partialorder %v2921, %v2923
    %v2925 = vsel %vm2924, %v2920, inf
    %2926 = vmin.xlane.f32.xlu0 %v2925
    %v2927 = vpop.xlane.xlu0 %2926
    %v2928 = vcvt.f32.s32 %v2927
    %v2929 = vcvt.f32.s32 %v2923
    %v2930 = vshll.u32 %v2929, 16
    %v2931 = vadd.s32 %v2930, %v2928
    %vm2932 = vcmp.eq.s32.totalorder %v2931, %v365
    %v2933 = vsel %vm2932, 1, 0
    %v2934 = vcvt.s32.f32 %v2933
    %v2935 = vsub.f32 %v2910, %v2914
    %v2936 = vmul.f32 %v2935, 1.442695
    %v2937 = vpow.pop %v2936
    %v2938 = vsel %vm539, %v2937, 0.0
    %2939 = vadd.xlane.f32.xlu0 %v2938
    %v2940 = vpop.xlane.xlu0 %2939
    %v2941 = vlog2.pop %v2940
    %v2942 = vmul.f32 %v2941, 0.6931472
    %v2943 = vsub.f32 %v2935, %v2942
    %2944 = vmatpush.msra.mxu0 0.0
    %2945 = vmatpush.msra.mxu0 0.0
    %2946 = vmatpush.msra.mxu0 0.0
    %2947 = vmatpush.msra.mxu0 0.0
    %2948 = vmatpush.msra.mxu0 0.0
    %2949 = vmatpush.msra.mxu0 0.0
    %2950 = vmatpush.msra.mxu0 0.0
    %2951 = vmatpush.msra.mxu0 0.0
    %2952 = vmatpush.msra.mxu0 0.0
    %2953 = vmatpush.msra.mxu0 0.0
    %2954 = vmatpush.msra.mxu0 0.0
    %2955 = vmatpush.msra.mxu0 0.0
    %2956 = vmatpush.msra.mxu0 %v358
    %2957 = vmatpush.msra.mxu0 %v357
    %2958 = vmatpush.msra.mxu0 %v356
    %2959 = vmatpush.msra.mxu0 %v355
    %2960 = vmatmul.f32.gmra.mxu0 %v2890
    %v2961 = vpop.f32.mrf.mxu0
    %v2962 = vadd.f32 %v359, %v2961
    %2963 = vdwg.mxu0
    %2964 = vmatpush.msra.mxu0 0.0
    %2965 = vmatpush.msra.mxu0 0.0
    %2966 = vmatpush.msra.mxu0 0.0
    %2967 = vmatpush.msra.mxu0 0.0
    %2968 = vmatpush.msra.mxu0 0.0
    %2969 = vmatpush.msra.mxu0 0.0
    %2970 = vmatpush.msra.mxu0 0.0
    %2971 = vmatpush.msra.mxu0 0.0
    %2972 = vmatpush.msra.mxu0 0.0
    %2973 = vmatpush.msra.mxu0 0.0
    %2974 = vmatpush.msra.mxu0 0.0
    %2975 = vmatpush.msra.mxu0 0.0
    %2976 = vmatpush.msra.mxu0 %v350
    %2977 = vmatpush.msra.mxu0 %v349
    %2978 = vmatpush.msra.mxu0 %v348
    %2979 = vmatpush.msra.mxu0 %v347
    %2980 = vmatmul.f32.gmra.mxu0 %v2826
    %v2981 = vpop.f32.mrf.mxu0
    %v2982 = vadd.f32 0.0, %v2981
    %2983 = vdwg.mxu0
    %v2984 = vadd.f32 %v366, %v2982
    %v2985 = vxor.u32 %v2984, 2147483648
    %v2986 = vmul.f32 %v2985, 1.442695
    %v2987 = vpow.pop %v2986
    %v2988 = vadd.f32 %v2987, 1.0
    %v2989 = vrcp.pop %v2988
    %v2990 = vmul.f32 %v2988, %v2989
    %v2991 = vsub.f32 1.0, %v2990
    %v2992 = vmul.f32 %v2989, %v2991
    %v2993 = vadd.f32 %v2989, %v2992
    %vm2994 = vweird.f32 %v2988
    %vm2995 = vweird.f32 %v2989
    %vm2996 = vmor %vm2994, %vm2995
    %v2997 = vsel %vm2996, %v2989, %v2993
    %v2998 = vand.u32 2147483647, %v2988
    %vm2999 = vcmp.eq.f32.partialorder %v2998, 8.507059e+37
    %v3000 = vand.u32 %v2988, 2147483648
    %v3001 = vor.u32 1.1754944e-38, %v3000
    %v3002 = vsel %vm2999, %v3001, %v2997
    %v3003 = vmul.f32 1.0, %v3002
    %v3004 = vmul.f32 %v3003, 2.0
    %v3005 = vsub.f32 %v3004, 1.0
    %v3006 = vmul.f32 %v3003, %v2816
    %3008 = vrot.lane.b32.xlu0 %v3005, 64
    %v3009 = vpop.permute.xlu0 %3008
    %v3011 = vmul.f32 %v3003, %v3009
    %3013 = vrot.lane.b32.xlu0 %v3011, 32
    %v3014 = vpop.permute.xlu0 %3013
    %v3016 = vadd.f32 %v3006, %v3014
    %v3017 = vtanh.pop %v3016
    %3019 = vrot.lane.b32.xlu0 %v3017, 64
    %v3020 = vpop.permute.xlu0 %3019
    %v3022 = vmul.f32 %v3003, %v3020
    %3024 = vrot.lane.b32.xlu0 %v3022, 32
    %v3025 = vpop.permute.xlu0 %3024
    %v3026 = vsel %vm367, %v3025, 0
    %3028 = vmatpush.msra.mxu0 0.0
    %3029 = vmatpush.msra.mxu0 0.0
    %3030 = vmatpush.msra.mxu0 0.0
    %3031 = vmatpush.msra.mxu0 0.0
    %3032 = vmatpush.msra.mxu0 0.0
    %3033 = vmatpush.msra.mxu0 0.0
    %3034 = vmatpush.msra.mxu0 0.0
    %3035 = vmatpush.msra.mxu0 0.0
    %3036 = vmatpush.msra.mxu0 0.0
    %3037 = vmatpush.msra.mxu0 0.0
    %3038 = vmatpush.msra.mxu0 0.0
    %3039 = vmatpush.msra.mxu0 0.0
    %3040 = vmatpush.msra.mxu0 %v354
    %3041 = vmatpush.msra.mxu0 %v353
    %3042 = vmatpush.msra.mxu0 %v352
    %3043 = vmatpush.msra.mxu0 %v351
    %3044 = vmatmul.f32.gmra.mxu0 %v3026
    %v3045 = vpop.f32.mrf.mxu0
    %v3046 = vadd.f32 0.0, %v3045
    %3047 = vdwg.mxu0
    %v3048 = vadd.f32 %v2962, %v3046
    %v3049 = vxor.u32 %v3048, 2147483648
    %v3050 = vmul.f32 %v3049, 1.442695
    %v3051 = vpow.pop %v3050
    %v3052 = vadd.f32 %v3051, 1.0
    %v3053 = vrcp.pop %v3052
    %v3054 = vmul.f32 %v3052, %v3053
    %v3055 = vsub.f32 1.0, %v3054
    %v3056 = vmul.f32 %v3053, %v3055
    %v3057 = vadd.f32 %v3053, %v3056
    %vm3058 = vweird.f32 %v3052
    %vm3059 = vweird.f32 %v3053
    %vm3060 = vmor %vm3058, %vm3059
    %v3061 = vsel %vm3060, %v3053, %v3057
    %v3062 = vand.u32 2147483647, %v3052
    %vm3063 = vcmp.eq.f32.partialorder %v3062, 8.507059e+37
    %v3064 = vand.u32 %v3052, 2147483648
    %v3065 = vor.u32 1.1754944e-38, %v3064
    %v3066 = vsel %vm3063, %v3065, %v3061
    %v3067 = vmul.f32 1.0, %v3066
    %v3068 = vmul.f32 %v3067, 2.0
    %v3069 = vsub.f32 %v3068, 1.0
    %v3070 = vmul.f32 %v3067, %v2880
    %3072 = vrot.lane.b32.xlu0 %v3069, 64
    %v3073 = vpop.permute.xlu0 %3072
    %v3075 = vmul.f32 %v3067, %v3073
    %3077 = vrot.lane.b32.xlu0 %v3075, 32
    %v3078 = vpop.permute.xlu0 %3077
    %v3080 = vadd.f32 %v3070, %v3078
    %v3081 = vtanh.pop %v3080
    %3083 = vrot.lane.b32.xlu0 %v3081, 64
    %v3084 = vpop.permute.xlu0 %3083
    %v3086 = vmul.f32 %v3067, %v3084
    %3088 = vrot.lane.b32.xlu0 %v3086, 32
    %v3089 = vpop.permute.xlu0 %3088
    %v3090 = vsel %vm367, %v3089, 0
    %3092 = vmatpush.msra.mxu0 0.0
    %3093 = vmatpush.msra.mxu0 0.0
    %3094 = vmatpush.msra.mxu0 0.0
    %3095 = vmatpush.msra.mxu0 0.0
    %3096 = vmatpush.msra.mxu0 0.0
    %3097 = vmatpush.msra.mxu0 0.0
    %3098 = vmatpush.msra.mxu0 0.0
    %3099 = vmatpush.msra.mxu0 0.0
    %3100 = vmatpush.msra.mxu0 0.0
    %3101 = vmatpush.msra.mxu0 0.0
    %3102 = vmatpush.msra.mxu0 0.0
    %3103 = vmatpush.msra.mxu0 0.0
    %3104 = vmatpush.msra.mxu0 %v358
    %3105 = vmatpush.msra.mxu0 %v357
    %3106 = vmatpush.msra.mxu0 %v356
    %3107 = vmatpush.msra.mxu0 %v355
    %3108 = vmatmul.f32.gmra.mxu0 %v3090
    %v3109 = vpop.f32.mrf.mxu0
    %v3110 = vadd.f32 %v359, %v3109
    %3111 = vdwg.mxu0
    %3112 = vmatpush.msra.mxu0 0.0
    %3113 = vmatpush.msra.mxu0 0.0
    %3114 = vmatpush.msra.mxu0 0.0
    %3115 = vmatpush.msra.mxu0 0.0
    %3116 = vmatpush.msra.mxu0 0.0
    %3117 = vmatpush.msra.mxu0 0.0
    %3118 = vmatpush.msra.mxu0 0.0
    %3119 = vmatpush.msra.mxu0 0.0
    %3120 = vmatpush.msra.mxu0 0.0
    %3121 = vmatpush.msra.mxu0 0.0
    %3122 = vmatpush.msra.mxu0 0.0
    %3123 = vmatpush.msra.mxu0 0.0
    %3124 = vmatpush.msra.mxu0 %v350
    %3125 = vmatpush.msra.mxu0 %v349
    %3126 = vmatpush.msra.mxu0 %v348
    %3127 = vmatpush.msra.mxu0 %v347
    %3128 = vmatmul.f32.gmra.mxu0 %v3026
    %v3129 = vpop.f32.mrf.mxu0
    %v3130 = vadd.f32 0.0, %v3129
    %3131 = vdwg.mxu0
    %v3132 = vadd.f32 %v584, %v3130
    %v3133 = vxor.u32 %v3132, 2147483648
    %v3134 = vmul.f32 %v3133, 1.442695
    %v3135 = vpow.pop %v3134
    %v3136 = vadd.f32 %v3135, 1.0
    %v3137 = vrcp.pop %v3136
    %v3138 = vmul.f32 %v3136, %v3137
    %v3139 = vsub.f32 1.0, %v3138
    %v3140 = vmul.f32 %v3137, %v3139
    %v3141 = vadd.f32 %v3137, %v3140
    %vm3142 = vweird.f32 %v3136
    %vm3143 = vweird.f32 %v3137
    %vm3144 = vmor %vm3142, %vm3143
    %v3145 = vsel %vm3144, %v3137, %v3141
    %v3146 = vand.u32 2147483647, %v3136
    %vm3147 = vcmp.eq.f32.partialorder %v3146, 8.507059e+37
    %v3148 = vand.u32 %v3136, 2147483648
    %v3149 = vor.u32 1.1754944e-38, %v3148
    %v3150 = vsel %vm3147, %v3149, %v3145
    %v3151 = vmul.f32 1.0, %v3150
    %v3152 = vmul.f32 %v3151, 2.0
    %v3153 = vsub.f32 %v3152, 1.0
    %v3154 = vmul.f32 %v3151, %v3016
    %3156 = vrot.lane.b32.xlu0 %v3153, 64
    %v3157 = vpop.permute.xlu0 %3156
    %v3159 = vmul.f32 %v3151, %v3157
    %3161 = vrot.lane.b32.xlu0 %v3159, 32
    %v3162 = vpop.permute.xlu0 %3161
    %v3164 = vadd.f32 %v3154, %v3162
    %v3165 = vtanh.pop %v3164
    %3167 = vrot.lane.b32.xlu0 %v3165, 64
    %v3168 = vpop.permute.xlu0 %3167
    %v3170 = vmul.f32 %v3151, %v3168
    %3172 = vrot.lane.b32.xlu0 %v3170, 32
    %v3173 = vpop.permute.xlu0 %3172
    %v3174 = vsel %vm367, %v3173, 0
    %3176 = vmatpush.msra.mxu0 0.0
    %3177 = vmatpush.msra.mxu0 0.0
    %3178 = vmatpush.msra.mxu0 0.0
    %3179 = vmatpush.msra.mxu0 0.0
    %3180 = vmatpush.msra.mxu0 0.0
    %3181 = vmatpush.msra.mxu0 0.0
    %3182 = vmatpush.msra.mxu0 0.0
    %3183 = vmatpush.msra.mxu0 0.0
    %3184 = vmatpush.msra.mxu0 0.0
    %3185 = vmatpush.msra.mxu0 0.0
    %3186 = vmatpush.msra.mxu0 0.0
    %3187 = vmatpush.msra.mxu0 0.0
    %3188 = vmatpush.msra.mxu0 %v354
    %3189 = vmatpush.msra.mxu0 %v353
    %3190 = vmatpush.msra.mxu0 %v352
    %3191 = vmatpush.msra.mxu0 %v351
    %3192 = vmatmul.f32.gmra.mxu0 %v3174
    %v3193 = vpop.f32.mrf.mxu0
    %v3194 = vadd.f32 0.0, %v3193
    %3195 = vdwg.mxu0
    %v3196 = vadd.f32 %v3110, %v3194
    %v3197 = vxor.u32 %v3196, 2147483648
    %v3198 = vmul.f32 %v3197, 1.442695
    %v3199 = vpow.pop %v3198
    %v3200 = vadd.f32 %v3199, 1.0
    %v3201 = vrcp.pop %v3200
    %v3202 = vmul.f32 %v3200, %v3201
    %v3203 = vsub.f32 1.0, %v3202
    %v3204 = vmul.f32 %v3201, %v3203
    %v3205 = vadd.f32 %v3201, %v3204
    %vm3206 = vweird.f32 %v3200
    %vm3207 = vweird.f32 %v3201
    %vm3208 = vmor %vm3206, %vm3207
    %v3209 = vsel %vm3208, %v3201, %v3205
    %v3210 = vand.u32 2147483647, %v3200
    %vm3211 = vcmp.eq.f32.partialorder %v3210, 8.507059e+37
    %v3212 = vand.u32 %v3200, 2147483648
    %v3213 = vor.u32 1.1754944e-38, %v3212
    %v3214 = vsel %vm3211, %v3213, %v3209
    %v3215 = vmul.f32 1.0, %v3214
    %v3216 = vmul.f32 %v3215, 2.0
    %v3217 = vsub.f32 %v3216, 1.0
    %v3218 = vmul.f32 %v3215, %v3080
    %3220 = vrot.lane.b32.xlu0 %v3217, 64
    %v3221 = vpop.permute.xlu0 %3220
    %v3223 = vmul.f32 %v3215, %v3221
    %3225 = vrot.lane.b32.xlu0 %v3223, 32
    %v3226 = vpop.permute.xlu0 %3225
    %v3228 = vadd.f32 %v3218, %v3226
    %v3229 = vtanh.pop %v3228
    %3231 = vrot.lane.b32.xlu0 %v3229, 64
    %v3232 = vpop.permute.xlu0 %3231
    %v3234 = vmul.f32 %v3215, %v3232
    %3236 = vrot.lane.b32.xlu0 %v3234, 32
    %v3237 = vpop.permute.xlu0 %3236
    %v3238 = vsel %vm367, %v3237, 0
    %3240 = vmatpush.msra.mxu0 0.0
    %3241 = vmatpush.msra.mxu0 0.0
    %3242 = vmatpush.msra.mxu0 0.0
    %3243 = vmatpush.msra.mxu0 0.0
    %3244 = vmatpush.msra.mxu0 0.0
    %3245 = vmatpush.msra.mxu0 0.0
    %3246 = vmatpush.msra.mxu0 0.0
    %3247 = vmatpush.msra.mxu0 0.0
    %3248 = vmatpush.msra.mxu0 0.0
    %3249 = vmatpush.msra.mxu0 0.0
    %3250 = vmatpush.msra.mxu0 0.0
    %3251 = vmatpush.msra.mxu0 0.0
    %3252 = vmatpush.msra.mxu0 %v358
    %3253 = vmatpush.msra.mxu0 %v357
    %3254 = vmatpush.msra.mxu0 %v356
    %3255 = vmatpush.msra.mxu0 %v355
    %3256 = vmatmul.f32.gmra.mxu0 %v3238
    %v3257 = vpop.f32.mrf.mxu0
    %v3258 = vadd.f32 %v359, %v3257
    %3259 = vdwg.mxu0
    %3260 = vmatpush.msra.mxu0 0.0
    %3261 = vmatpush.msra.mxu0 0.0
    %3262 = vmatpush.msra.mxu0 0.0
    %3263 = vmatpush.msra.mxu0 0.0
    %3264 = vmatpush.msra.mxu0 0.0
    %3265 = vmatpush.msra.mxu0 0.0
    %3266 = vmatpush.msra.mxu0 0.0
    %3267 = vmatpush.msra.mxu0 0.0
    %3268 = vmatpush.msra.mxu0 0.0
    %3269 = vmatpush.msra.mxu0 0.0
    %3270 = vmatpush.msra.mxu0 0.0
    %3271 = vmatpush.msra.mxu0 0.0
    %3272 = vmatpush.msra.mxu0 %v350
    %3273 = vmatpush.msra.mxu0 %v349
    %3274 = vmatpush.msra.mxu0 %v348
    %3275 = vmatpush.msra.mxu0 %v347
    %3276 = vmatmul.f32.gmra.mxu0 %v3174
    %v3277 = vpop.f32.mrf.mxu0
    %v3278 = vadd.f32 0.0, %v3277
    %3279 = vdwg.mxu0
    %v3280 = vadd.f32 %v955, %v3278
    %v3281 = vxor.u32 %v3280, 2147483648
    %v3282 = vmul.f32 %v3281, 1.442695
    %v3283 = vpow.pop %v3282
    %v3284 = vadd.f32 %v3283, 1.0
    %v3285 = vrcp.pop %v3284
    %v3286 = vmul.f32 %v3284, %v3285
    %v3287 = vsub.f32 1.0, %v3286
    %v3288 = vmul.f32 %v3285, %v3287
    %v3289 = vadd.f32 %v3285, %v3288
    %vm3290 = vweird.f32 %v3284
    %vm3291 = vweird.f32 %v3285
    %vm3292 = vmor %vm3290, %vm3291
    %v3293 = vsel %vm3292, %v3285, %v3289
    %v3294 = vand.u32 2147483647, %v3284
    %vm3295 = vcmp.eq.f32.partialorder %v3294, 8.507059e+37
    %v3296 = vand.u32 %v3284, 2147483648
    %v3297 = vor.u32 1.1754944e-38, %v3296
    %v3298 = vsel %vm3295, %v3297, %v3293
    %v3299 = vmul.f32 1.0, %v3298
    %v3300 = vmul.f32 %v3299, 2.0
    %v3301 = vsub.f32 %v3300, 1.0
    %v3302 = vmul.f32 %v3299, %v3164
    %3304 = vrot.lane.b32.xlu0 %v3301, 64
    %v3305 = vpop.permute.xlu0 %3304
    %v3307 = vmul.f32 %v3299, %v3305
    %3309 = vrot.lane.b32.xlu0 %v3307, 32
    %v3310 = vpop.permute.xlu0 %3309
    %v3312 = vadd.f32 %v3302, %v3310
    %v3313 = vtanh.pop %v3312
    %3315 = vrot.lane.b32.xlu0 %v3313, 64
    %v3316 = vpop.permute.xlu0 %3315
    %v3318 = vmul.f32 %v3299, %v3316
    %3320 = vrot.lane.b32.xlu0 %v3318, 32
    %v3321 = vpop.permute.xlu0 %3320
    %v3322 = vsel %vm367, %v3321, 0
    %3324 = vmatpush.msra.mxu0 0.0
    %3325 = vmatpush.msra.mxu0 0.0
    %3326 = vmatpush.msra.mxu0 0.0
    %3327 = vmatpush.msra.mxu0 0.0
    %3328 = vmatpush.msra.mxu0 0.0
    %3329 = vmatpush.msra.mxu0 0.0
    %3330 = vmatpush.msra.mxu0 0.0
    %3331 = vmatpush.msra.mxu0 0.0
    %3332 = vmatpush.msra.mxu0 0.0
    %3333 = vmatpush.msra.mxu0 0.0
    %3334 = vmatpush.msra.mxu0 0.0
    %3335 = vmatpush.msra.mxu0 0.0
    %3336 = vmatpush.msra.mxu0 %v354
    %3337 = vmatpush.msra.mxu0 %v353
    %3338 = vmatpush.msra.mxu0 %v352
    %3339 = vmatpush.msra.mxu0 %v351
    %3340 = vmatmul.f32.gmra.mxu0 %v3322
    %v3341 = vpop.f32.mrf.mxu0
    %v3342 = vadd.f32 0.0, %v3341
    %3343 = vdwg.mxu0
    %v3344 = vadd.f32 %v3258, %v3342
    %v3345 = vxor.u32 %v3344, 2147483648
    %v3346 = vmul.f32 %v3345, 1.442695
    %v3347 = vpow.pop %v3346
    %v3348 = vadd.f32 %v3347, 1.0
    %v3349 = vrcp.pop %v3348
    %v3350 = vmul.f32 %v3348, %v3349
    %v3351 = vsub.f32 1.0, %v3350
    %v3352 = vmul.f32 %v3349, %v3351
    %v3353 = vadd.f32 %v3349, %v3352
    %vm3354 = vweird.f32 %v3348
    %vm3355 = vweird.f32 %v3349
    %vm3356 = vmor %vm3354, %vm3355
    %v3357 = vsel %vm3356, %v3349, %v3353
    %v3358 = vand.u32 2147483647, %v3348
    %vm3359 = vcmp.eq.f32.partialorder %v3358, 8.507059e+37
    %v3360 = vand.u32 %v3348, 2147483648
    %v3361 = vor.u32 1.1754944e-38, %v3360
    %v3362 = vsel %vm3359, %v3361, %v3357
    %v3363 = vmul.f32 1.0, %v3362
    %v3364 = vmul.f32 %v3363, 2.0
    %v3365 = vsub.f32 %v3364, 1.0
    %v3366 = vmul.f32 %v3363, %v3228
    %3368 = vrot.lane.b32.xlu0 %v3365, 64
    %v3369 = vpop.permute.xlu0 %3368
    %v3371 = vmul.f32 %v3363, %v3369
    %3373 = vrot.lane.b32.xlu0 %v3371, 32
    %v3374 = vpop.permute.xlu0 %3373
    %v3376 = vadd.f32 %v3366, %v3374
    %v3377 = vtanh.pop %v3376
    %3379 = vrot.lane.b32.xlu0 %v3377, 64
    %v3380 = vpop.permute.xlu0 %3379
    %v3382 = vmul.f32 %v3363, %v3380
    %3384 = vrot.lane.b32.xlu0 %v3382, 32
    %v3385 = vpop.permute.xlu0 %3384
    %v3386 = vsel %vm367, %v3385, 0
    %3388 = vmatpush.msra.mxu0 0.0
    %3389 = vmatpush.msra.mxu0 0.0
    %3390 = vmatpush.msra.mxu0 0.0
    %3391 = vmatpush.msra.mxu0 0.0
    %3392 = vmatpush.msra.mxu0 0.0
    %3393 = vmatpush.msra.mxu0 0.0
    %3394 = vmatpush.msra.mxu0 0.0
    %3395 = vmatpush.msra.mxu0 0.0
    %3396 = vmatpush.msra.mxu0 0.0
    %3397 = vmatpush.msra.mxu0 0.0
    %3398 = vmatpush.msra.mxu0 0.0
    %3399 = vmatpush.msra.mxu0 0.0
    %3400 = vmatpush.msra.mxu0 %v358
    %3401 = vmatpush.msra.mxu0 %v357
    %3402 = vmatpush.msra.mxu0 %v356
    %3403 = vmatpush.msra.mxu0 %v355
    %3404 = vmatmul.f32.gmra.mxu0 %v3386
    %v3405 = vpop.f32.mrf.mxu0
    %v3406 = vadd.f32 %v359, %v3405
    %3407 = vdwg.mxu0
    %3408 = vmatpush.msra.mxu0 0.0
    %3409 = vmatpush.msra.mxu0 0.0
    %3410 = vmatpush.msra.mxu0 0.0
    %3411 = vmatpush.msra.mxu0 0.0
    %3412 = vmatpush.msra.mxu0 0.0
    %3413 = vmatpush.msra.mxu0 0.0
    %3414 = vmatpush.msra.mxu0 0.0
    %3415 = vmatpush.msra.mxu0 0.0
    %3416 = vmatpush.msra.mxu0 0.0
    %3417 = vmatpush.msra.mxu0 0.0
    %3418 = vmatpush.msra.mxu0 0.0
    %3419 = vmatpush.msra.mxu0 0.0
    %3420 = vmatpush.msra.mxu0 %v350
    %3421 = vmatpush.msra.mxu0 %v349
    %3422 = vmatpush.msra.mxu0 %v348
    %3423 = vmatpush.msra.mxu0 %v347
    %3424 = vmatmul.f32.gmra.mxu0 %v3322
    %v3425 = vpop.f32.mrf.mxu0
    %v3426 = vadd.f32 0.0, %v3425
    %3427 = vdwg.mxu0
    %v3428 = vadd.f32 %v1474, %v3426
    %v3429 = vxor.u32 %v3428, 2147483648
    %v3430 = vmul.f32 %v3429, 1.442695
    %v3431 = vpow.pop %v3430
    %v3432 = vadd.f32 %v3431, 1.0
    %v3433 = vrcp.pop %v3432
    %v3434 = vmul.f32 %v3432, %v3433
    %v3435 = vsub.f32 1.0, %v3434
    %v3436 = vmul.f32 %v3433, %v3435
    %v3437 = vadd.f32 %v3433, %v3436
    %vm3438 = vweird.f32 %v3432
    %vm3439 = vweird.f32 %v3433
    %vm3440 = vmor %vm3438, %vm3439
    %v3441 = vsel %vm3440, %v3433, %v3437
    %v3442 = vand.u32 2147483647, %v3432
    %vm3443 = vcmp.eq.f32.partialorder %v3442, 8.507059e+37
    %v3444 = vand.u32 %v3432, 2147483648
    %v3445 = vor.u32 1.1754944e-38, %v3444
    %v3446 = vsel %vm3443, %v3445, %v3441
    %v3447 = vmul.f32 1.0, %v3446
    %v3448 = vmul.f32 %v3447, 2.0
    %v3449 = vsub.f32 %v3448, 1.0
    %v3450 = vmul.f32 %v3447, %v3312
    %3452 = vrot.lane.b32.xlu0 %v3449, 64
    %v3453 = vpop.permute.xlu0 %3452
    %v3455 = vmul.f32 %v3447, %v3453
    %3457 = vrot.lane.b32.xlu0 %v3455, 32
    %v3458 = vpop.permute.xlu0 %3457
    %v3460 = vadd.f32 %v3450, %v3458
    %v3461 = vtanh.pop %v3460
    %3463 = vrot.lane.b32.xlu0 %v3461, 64
    %v3464 = vpop.permute.xlu0 %3463
    %v3466 = vmul.f32 %v3447, %v3464
    %3468 = vrot.lane.b32.xlu0 %v3466, 32
    %v3469 = vpop.permute.xlu0 %3468
    %v3470 = vsel %vm367, %v3469, 0
    %3472 = vmatpush.msra.mxu0 0.0
    %3473 = vmatpush.msra.mxu0 0.0
    %3474 = vmatpush.msra.mxu0 0.0
    %3475 = vmatpush.msra.mxu0 0.0
    %3476 = vmatpush.msra.mxu0 0.0
    %3477 = vmatpush.msra.mxu0 0.0
    %3478 = vmatpush.msra.mxu0 0.0
    %3479 = vmatpush.msra.mxu0 0.0
    %3480 = vmatpush.msra.mxu0 0.0
    %3481 = vmatpush.msra.mxu0 0.0
    %3482 = vmatpush.msra.mxu0 0.0
    %3483 = vmatpush.msra.mxu0 0.0
    %3484 = vmatpush.msra.mxu0 %v354
    %3485 = vmatpush.msra.mxu0 %v353
    %3486 = vmatpush.msra.mxu0 %v352
    %3487 = vmatpush.msra.mxu0 %v351
    %3488 = vmatmul.f32.gmra.mxu0 %v3470
    %v3489 = vpop.f32.mrf.mxu0
    %v3490 = vadd.f32 0.0, %v3489
    %3491 = vdwg.mxu0
    %v3492 = vadd.f32 %v3406, %v3490
    %v3493 = vxor.u32 %v3492, 2147483648
    %v3494 = vmul.f32 %v3493, 1.442695
    %v3495 = vpow.pop %v3494
    %v3496 = vadd.f32 %v3495, 1.0
    %v3497 = vrcp.pop %v3496
    %v3498 = vmul.f32 %v3496, %v3497
    %v3499 = vsub.f32 1.0, %v3498
    %v3500 = vmul.f32 %v3497, %v3499
    %v3501 = vadd.f32 %v3497, %v3500
    %vm3502 = vweird.f32 %v3496
    %vm3503 = vweird.f32 %v3497
    %vm3504 = vmor %vm3502, %vm3503
    %v3505 = vsel %vm3504, %v3497, %v3501
    %v3506 = vand.u32 2147483647, %v3496
    %vm3507 = vcmp.eq.f32.partialorder %v3506, 8.507059e+37
    %v3508 = vand.u32 %v3496, 2147483648
    %v3509 = vor.u32 1.1754944e-38, %v3508
    %v3510 = vsel %vm3507, %v3509, %v3505
    %v3511 = vmul.f32 1.0, %v3510
    %v3512 = vmul.f32 %v3511, 2.0
    %v3513 = vsub.f32 %v3512, 1.0
    %v3514 = vmul.f32 %v3511, %v3376
    %3516 = vrot.lane.b32.xlu0 %v3513, 64
    %v3517 = vpop.permute.xlu0 %3516
    %v3519 = vmul.f32 %v3511, %v3517
    %3521 = vrot.lane.b32.xlu0 %v3519, 32
    %v3522 = vpop.permute.xlu0 %3521
    %v3524 = vadd.f32 %v3514, %v3522
    %v3525 = vtanh.pop %v3524
    %3527 = vrot.lane.b32.xlu0 %v3525, 64
    %v3528 = vpop.permute.xlu0 %3527
    %v3530 = vmul.f32 %v3511, %v3528
    %3532 = vrot.lane.b32.xlu0 %v3530, 32
    %v3533 = vpop.permute.xlu0 %3532
    %v3534 = vsel %vm367, %v3533, 0
    %3536 = vmatpush.msra.mxu0 0.0
    %3537 = vmatpush.msra.mxu0 0.0
    %3538 = vmatpush.msra.mxu0 0.0
    %3539 = vmatpush.msra.mxu0 0.0
    %3540 = vmatpush.msra.mxu0 0.0
    %3541 = vmatpush.msra.mxu0 0.0
    %3542 = vmatpush.msra.mxu0 0.0
    %3543 = vmatpush.msra.mxu0 0.0
    %3544 = vmatpush.msra.mxu0 0.0
    %3545 = vmatpush.msra.mxu0 0.0
    %3546 = vmatpush.msra.mxu0 0.0
    %3547 = vmatpush.msra.mxu0 0.0
    %3548 = vmatpush.msra.mxu0 %v358
    %3549 = vmatpush.msra.mxu0 %v357
    %3550 = vmatpush.msra.mxu0 %v356
    %3551 = vmatpush.msra.mxu0 %v355
    %3552 = vmatmul.f32.gmra.mxu0 %v3534
    %v3553 = vpop.f32.mrf.mxu0
    %v3554 = vadd.f32 %v359, %v3553
    %3555 = vdwg.mxu0
    %3556 = vmatpush.msra.mxu0 0.0
    %3557 = vmatpush.msra.mxu0 0.0
    %3558 = vmatpush.msra.mxu0 0.0
    %3559 = vmatpush.msra.mxu0 0.0
    %3560 = vmatpush.msra.mxu0 0.0
    %3561 = vmatpush.msra.mxu0 0.0
    %3562 = vmatpush.msra.mxu0 0.0
    %3563 = vmatpush.msra.mxu0 0.0
    %3564 = vmatpush.msra.mxu0 0.0
    %3565 = vmatpush.msra.mxu0 0.0
    %3566 = vmatpush.msra.mxu0 0.0
    %3567 = vmatpush.msra.mxu0 0.0
    %3568 = vmatpush.msra.mxu0 %v350
    %3569 = vmatpush.msra.mxu0 %v349
    %3570 = vmatpush.msra.mxu0 %v348
    %3571 = vmatpush.msra.mxu0 %v347
    %3572 = vmatmul.f32.gmra.mxu0 %v3470
    %v3573 = vpop.f32.mrf.mxu0
    %v3574 = vadd.f32 0.0, %v3573
    %3575 = vdwg.mxu0
    %v3576 = vadd.f32 %v2141, %v3574
    %v3577 = vxor.u32 %v3576, 2147483648
    %v3578 = vmul.f32 %v3577, 1.442695
    %v3579 = vpow.pop %v3578
    %v3580 = vadd.f32 %v3579, 1.0
    %v3581 = vrcp.pop %v3580
    %v3582 = vmul.f32 %v3580, %v3581
    %v3583 = vsub.f32 1.0, %v3582
    %v3584 = vmul.f32 %v3581, %v3583
    %v3585 = vadd.f32 %v3581, %v3584
    %vm3586 = vweird.f32 %v3580
    %vm3587 = vweird.f32 %v3581
    %vm3588 = vmor %vm3586, %vm3587
    %v3589 = vsel %vm3588, %v3581, %v3585
    %v3590 = vand.u32 2147483647, %v3580
    %vm3591 = vcmp.eq.f32.partialorder %v3590, 8.507059e+37
    %v3592 = vand.u32 %v3580, 2147483648
    %v3593 = vor.u32 1.1754944e-38, %v3592
    %v3594 = vsel %vm3591, %v3593, %v3589
    %v3595 = vmul.f32 1.0, %v3594
    %v3596 = vmul.f32 %v3595, 2.0
    %v3597 = vsub.f32 %v3596, 1.0
    %v3598 = vmul.f32 %v3595, %v3460
    %3600 = vrot.lane.b32.xlu0 %v3597, 64
    %v3601 = vpop.permute.xlu0 %3600
    %v3603 = vmul.f32 %v3595, %v3601
    %3605 = vrot.lane.b32.xlu0 %v3603, 32
    %v3606 = vpop.permute.xlu0 %3605
    %v3608 = vadd.f32 %v3598, %v3606
    %v3609 = vtanh.pop %v3608
    %3611 = vrot.lane.b32.xlu0 %v3609, 64
    %v3612 = vpop.permute.xlu0 %3611
    %v3614 = vmul.f32 %v3595, %v3612
    %3616 = vrot.lane.b32.xlu0 %v3614, 32
    %v3617 = vpop.permute.xlu0 %3616
    %v3618 = vsel %vm367, %v3617, 0
    %3620 = vmatpush.msra.mxu0 0.0
    %3621 = vmatpush.msra.mxu0 0.0
    %3622 = vmatpush.msra.mxu0 0.0
    %3623 = vmatpush.msra.mxu0 0.0
    %3624 = vmatpush.msra.mxu0 0.0
    %3625 = vmatpush.msra.mxu0 0.0
    %3626 = vmatpush.msra.mxu0 0.0
    %3627 = vmatpush.msra.mxu0 0.0
    %3628 = vmatpush.msra.mxu0 0.0
    %3629 = vmatpush.msra.mxu0 0.0
    %3630 = vmatpush.msra.mxu0 0.0
    %3631 = vmatpush.msra.mxu0 0.0
    %3632 = vmatpush.msra.mxu0 %v354
    %3633 = vmatpush.msra.mxu0 %v353
    %3634 = vmatpush.msra.mxu0 %v352
    %3635 = vmatpush.msra.mxu0 %v351
    %3636 = vmatmul.f32.gmra.mxu0 %v3618
    %v3637 = vpop.f32.mrf.mxu0
    %v3638 = vadd.f32 0.0, %v3637
    %3639 = vdwg.mxu0
    %v3640 = vadd.f32 %v3554, %v3638
    %v3641 = vxor.u32 %v3640, 2147483648
    %v3642 = vmul.f32 %v3641, 1.442695
    %v3643 = vpow.pop %v3642
    %v3644 = vadd.f32 %v3643, 1.0
    %v3645 = vrcp.pop %v3644
    %v3646 = vmul.f32 %v3644, %v3645
    %v3647 = vsub.f32 1.0, %v3646
    %v3648 = vmul.f32 %v3645, %v3647
    %v3649 = vadd.f32 %v3645, %v3648
    %vm3650 = vweird.f32 %v3644
    %vm3651 = vweird.f32 %v3645
    %vm3652 = vmor %vm3650, %vm3651
    %v3653 = vsel %vm3652, %v3645, %v3649
    %v3654 = vand.u32 2147483647, %v3644
    %vm3655 = vcmp.eq.f32.partialorder %v3654, 8.507059e+37
    %v3656 = vand.u32 %v3644, 2147483648
    %v3657 = vor.u32 1.1754944e-38, %v3656
    %v3658 = vsel %vm3655, %v3657, %v3653
    %v3659 = vmul.f32 1.0, %v3658
    %v3660 = vmul.f32 %v3659, 2.0
    %v3661 = vsub.f32 %v3660, 1.0
    %v3662 = vmul.f32 %v3659, %v3524
    %3664 = vrot.lane.b32.xlu0 %v3661, 64
    %v3665 = vpop.permute.xlu0 %3664
    %v3667 = vmul.f32 %v3659, %v3665
    %3669 = vrot.lane.b32.xlu0 %v3667, 32
    %v3670 = vpop.permute.xlu0 %3669
    %v3672 = vadd.f32 %v3662, %v3670
    %v3673 = vtanh.pop %v3672
    %3675 = vrot.lane.b32.xlu0 %v3673, 64
    %v3676 = vpop.permute.xlu0 %3675
    %v3678 = vmul.f32 %v3659, %v3676
    %3680 = vrot.lane.b32.xlu0 %v3678, 32
    %v3681 = vpop.permute.xlu0 %3680
    %v3682 = vsel %vm367, %v3681, 0
    %3684 = vmatpush.msra.mxu0 0.0
    %3685 = vmatpush.msra.mxu0 0.0
    %3686 = vmatpush.msra.mxu0 0.0
    %3687 = vmatpush.msra.mxu0 0.0
    %3688 = vmatpush.msra.mxu0 0.0
    %3689 = vmatpush.msra.mxu0 0.0
    %3690 = vmatpush.msra.mxu0 0.0
    %3691 = vmatpush.msra.mxu0 0.0
    %3692 = vmatpush.msra.mxu0 0.0
    %3693 = vmatpush.msra.mxu0 0.0
    %3694 = vmatpush.msra.mxu0 0.0
    %3695 = vmatpush.msra.mxu0 0.0
    %3696 = vmatpush.msra.mxu0 %v358
    %3697 = vmatpush.msra.mxu0 %v357
    %3698 = vmatpush.msra.mxu0 %v356
    %3699 = vmatpush.msra.mxu0 %v355
    %3700 = vmatmul.f32.gmra.mxu0 %v3682
    %v3701 = vpop.f32.mrf.mxu0
    %v3702 = vadd.f32 %v359, %v3701
    %3703 = vdwg.mxu0
    %3704 = vmatpush.msra.mxu0 0.0
    %3705 = vmatpush.msra.mxu0 0.0
    %3706 = vmatpush.msra.mxu0 0.0
    %3707 = vmatpush.msra.mxu0 0.0
    %3708 = vmatpush.msra.mxu0 0.0
    %3709 = vmatpush.msra.mxu0 0.0
    %3710 = vmatpush.msra.mxu0 0.0
    %3711 = vmatpush.msra.mxu0 0.0
    %3712 = vmatpush.msra.mxu0 0.0
    %3713 = vmatpush.msra.mxu0 0.0
    %3714 = vmatpush.msra.mxu0 0.0
    %3715 = vmatpush.msra.mxu0 0.0
    %3716 = vmatpush.msra.mxu0 %v350
    %3717 = vmatpush.msra.mxu0 %v349
    %3718 = vmatpush.msra.mxu0 %v348
    %3719 = vmatpush.msra.mxu0 %v347
    %3720 = vmatmul.f32.gmra.mxu0 %v3618
    %v3721 = vpop.f32.mrf.mxu0
    %v3722 = vadd.f32 0.0, %v3721
    %3723 = vdwg.mxu0
    %v3725 = vsel %vm539, %v2934, 0
    %3727 = vmatpush.msra.mxu0 0.0
    %3728 = vmatpush.msra.mxu0 0.0
    %3729 = vmatpush.msra.mxu0 0.0
    %3730 = vmatpush.msra.mxu0 0.0
    %3731 = vmatpush.msra.mxu0 0.0
    %3732 = vmatpush.msra.mxu0 0.0
    %3733 = vmatpush.msra.mxu0 0.0
    %3734 = vmatpush.msra.mxu0 0.0
    %3735 = vmatpush.msra.mxu0 %v346
    %3736 = vmatpush.msra.mxu0 %v345
    %3737 = vmatpush.msra.mxu0 %v344
    %3738 = vmatpush.msra.mxu0 %v343
    %3739 = vmatpush.msra.mxu0 %v342
    %3740 = vmatpush.msra.mxu0 %v341
    %3741 = vmatpush.msra.mxu0 %v340
    %3742 = vmatpush.msra.mxu0 %v339
    %3743 = vmatmul.f32.gmra.mxu0 %v3725
    %v3744 = vpop.f32.mrf.mxu0
    %v3745 = vadd.f32 %v3722, %v3744
    %3746 = vdwg.mxu0
    %v3747 = vxor.u32 %v3745, 2147483648
    %v3748 = vmul.f32 %v3747, 1.442695
    %v3749 = vpow.pop %v3748
    %v3750 = vadd.f32 %v3749, 1.0
    %v3751 = vrcp.pop %v3750
    %v3752 = vmul.f32 %v3750, %v3751
    %v3753 = vsub.f32 1.0, %v3752
    %v3754 = vmul.f32 %v3751, %v3753
    %v3755 = vadd.f32 %v3751, %v3754
    %vm3756 = vweird.f32 %v3750
    %vm3757 = vweird.f32 %v3751
    %vm3758 = vmor %vm3756, %vm3757
    %v3759 = vsel %vm3758, %v3751, %v3755
    %v3760 = vand.u32 2147483647, %v3750
    %vm3761 = vcmp.eq.f32.partialorder %v3760, 8.507059e+37
    %v3762 = vand.u32 %v3750, 2147483648
    %v3763 = vor.u32 1.1754944e-38, %v3762
    %v3764 = vsel %vm3761, %v3763, %v3759
    %v3765 = vmul.f32 1.0, %v3764
    %v3766 = vmul.f32 %v3765, 2.0
    %v3767 = vsub.f32 %v3766, 1.0
    %v3768 = vmul.f32 %v3765, %v3608
    %3770 = vrot.lane.b32.xlu0 %v3767, 64
    %v3771 = vpop.permute.xlu0 %3770
    %v3773 = vmul.f32 %v3765, %v3771
    %3775 = vrot.lane.b32.xlu0 %v3773, 32
    %v3776 = vpop.permute.xlu0 %3775
    %v3778 = vadd.f32 %v3768, %v3776
    %v3779 = vtanh.pop %v3778
    %3781 = vrot.lane.b32.xlu0 %v3779, 64
    %v3782 = vpop.permute.xlu0 %3781
    %v3784 = vmul.f32 %v3765, %v3782
    %3786 = vrot.lane.b32.xlu0 %v3784, 32
    %v3787 = vpop.permute.xlu0 %3786
    %v3788 = vsel %vm367, %v3787, 0
    %3790 = vmatpush.msra.mxu0 0.0
    %3791 = vmatpush.msra.mxu0 0.0
    %3792 = vmatpush.msra.mxu0 0.0
    %3793 = vmatpush.msra.mxu0 0.0
    %3794 = vmatpush.msra.mxu0 0.0
    %3795 = vmatpush.msra.mxu0 0.0
    %3796 = vmatpush.msra.mxu0 0.0
    %3797 = vmatpush.msra.mxu0 0.0
    %3798 = vmatpush.msra.mxu0 0.0
    %3799 = vmatpush.msra.mxu0 0.0
    %3800 = vmatpush.msra.mxu0 0.0
    %3801 = vmatpush.msra.mxu0 0.0
    %3802 = vmatpush.msra.mxu0 %v354
    %3803 = vmatpush.msra.mxu0 %v353
    %3804 = vmatpush.msra.mxu0 %v352
    %3805 = vmatpush.msra.mxu0 %v351
    %3806 = vmatmul.f32.gmra.mxu0 %v3788
    %v3807 = vpop.f32.mrf.mxu0
    %v3808 = vadd.f32 0.0, %v3807
    %3809 = vdwg.mxu0
    %v3810 = vadd.f32 %v3702, %v3808
    %v3811 = vxor.u32 %v3810, 2147483648
    %v3812 = vmul.f32 %v3811, 1.442695
    %v3813 = vpow.pop %v3812
    %v3814 = vadd.f32 %v3813, 1.0
    %v3815 = vrcp.pop %v3814
    %v3816 = vmul.f32 %v3814, %v3815
    %v3817 = vsub.f32 1.0, %v3816
    %v3818 = vmul.f32 %v3815, %v3817
    %v3819 = vadd.f32 %v3815, %v3818
    %vm3820 = vweird.f32 %v3814
    %vm3821 = vweird.f32 %v3815
    %vm3822 = vmor %vm3820, %vm3821
    %v3823 = vsel %vm3822, %v3815, %v3819
    %v3824 = vand.u32 2147483647, %v3814
    %vm3825 = vcmp.eq.f32.partialorder %v3824, 8.507059e+37
    %v3826 = vand.u32 %v3814, 2147483648
    %v3827 = vor.u32 1.1754944e-38, %v3826
    %v3828 = vsel %vm3825, %v3827, %v3823
    %v3829 = vmul.f32 1.0, %v3828
    %v3830 = vmul.f32 %v3829, 2.0
    %v3831 = vsub.f32 %v3830, 1.0
    %v3832 = vmul.f32 %v3829, %v3672
    %3834 = vrot.lane.b32.xlu0 %v3831, 64
    %v3835 = vpop.permute.xlu0 %3834
    %v3837 = vmul.f32 %v3829, %v3835
    %3839 = vrot.lane.b32.xlu0 %v3837, 32
    %v3840 = vpop.permute.xlu0 %3839
    %v3842 = vadd.f32 %v3832, %v3840
    %v3843 = vtanh.pop %v3842
    %3845 = vrot.lane.b32.xlu0 %v3843, 64
    %v3846 = vpop.permute.xlu0 %3845
    %v3848 = vmul.f32 %v3829, %v3846
    %3850 = vrot.lane.b32.xlu0 %v3848, 32
    %v3851 = vpop.permute.xlu0 %3850
    %v3852 = vsel %vm367, %v3851, 0
    %3854 = vmatpush.msra.mxu0 0.0
    %3855 = vmatpush.msra.mxu0 0.0
    %3856 = vmatpush.msra.mxu0 0.0
    %3857 = vmatpush.msra.mxu0 0.0
    %3858 = vmatpush.msra.mxu0 0.0
    %3859 = vmatpush.msra.mxu0 0.0
    %3860 = vmatpush.msra.mxu0 0.0
    %3861 = vmatpush.msra.mxu0 0.0
    %3862 = vmatpush.msra.mxu0 0.0
    %3863 = vmatpush.msra.mxu0 0.0
    %3864 = vmatpush.msra.mxu0 0.0
    %3865 = vmatpush.msra.mxu0 0.0
    %3866 = vmatpush.msra.mxu0 %v363
    %3867 = vmatpush.msra.mxu0 %v362
    %3868 = vmatpush.msra.mxu0 %v361
    %3869 = vmatpush.msra.mxu0 %v360
    %3870 = vmatmul.f32.gmra.mxu0 %v3852
    %v3871 = vpop.f32.mrf.mxu0
    %v3872 = vadd.f32 0.0, %v3871
    %3873 = vdwg.mxu0
    %v3874 = vsel %vm539, %v3872, -inf
    %3875 = vmax.xlane.f32.xlu0 %v3874
    %v3876 = vpop.xlane.xlu0 %3875
    %vm3877 = vcmp.eq.f32.partialorder %v3872, %v3876
    %v3878 = vsel %vm3877, %v365, 64
    %v3879 = vsel %vm539, %v3878, 2147483647
    %v3880 = vand.u32 %v3879, 65535
    %v3881 = vshra.s32 %v3879, 16
    %v3882 = vcvt.s32.f32 %v3880
    %v3883 = vcvt.s32.f32 %v3881
    %3884 = vmin.xlane.f32.xlu0 %v3883
    %v3885 = vpop.xlane.xlu0 %3884
    %vm3886 = vcmp.eq.f32.partialorder %v3883, %v3885
    %v3887 = vsel %vm3886, %v3882, inf
    %3888 = vmin.xlane.f32.xlu0 %v3887
    %v3889 = vpop.xlane.xlu0 %3888
    %v3890 = vcvt.f32.s32 %v3889
    %v3891 = vcvt.f32.s32 %v3885
    %v3892 = vshll.u32 %v3891, 16
    %v3893 = vadd.s32 %v3892, %v3890
    %v3894 = vsub.f32 %v3872, %v3876
    %v3895 = vmul.f32 %v3894, 1.442695
    %v3896 = vpow.pop %v3895
    %v3897 = vsel %vm539, %v3896, 0.0
    %3898 = vadd.xlane.f32.xlu0 %v3897
    %v3899 = vpop.xlane.xlu0 %3898
    %v3900 = vlog2.pop %v3899
    %v3901 = vmul.f32 %v3900, 0.6931472
    %v3902 = vsub.f32 %v3894, %v3901
    %3904 = vrot.lane.b32.xlu0 %v965, 64
    %v3905 = vpop.permute.xlu0 %3904
    %3908 = vrot.lane.b32.xlu0 %v2151, 64
    %v3909 = vpop.permute.xlu0 %3908
    %3912 = vrot.lane.b32.xlu0 %v3902, 64
    %v3913 = vpop.permute.xlu0 %3912
    %v3915 = vsel %vm539, %v594, %v3905
    %v3916 = vsel %vm539, %v1484, %v3909
    %v3917 = vsel %vm539, %v2943, %v3913
    %3918 = vst [vmem:[%s10] sm:$0xff] %v3915
    %3919 = vst [vmem:[%s10 + $0x8] sm:$0xff] %v3916
    %3920 = vst [vmem:[%s10 + $0x10] sm:$0xff] %v3917
    %vm3921 = vcmask 7168
    %v3922 = vsel %vm3921, 2, %v559
    %vm3923 = vcmask 15360
    %v3924 = vsel %vm3923, %v3922, %v930
    %vm3925 = vcmask 23552
    %v3926 = vsel %vm3925, %v3924, %v1449
    %vm3927 = vcmask 31744
    %v3928 = vsel %vm3927, %v3926, %v2116
    %vm3929 = vcmask 39936
    %v3930 = vsel %vm3929, %v3928, %v2931
    %vm3931 = vcmask 48128
    %v3932 = vsel %vm3931, %v3930, %v3893
    %vm3933 = vcmask 56320
    %3934 = vst.msk [vmem:[#allocation2] sm:$0xff] %vm3933, %v3932
    // Predicated region
    $region42: #{actor_forward.1} parent=1 // pred_check
      _
    $region43: #{actor_forward.1} parent=1 // pred_check_branch
      %3936 = sbr.rel (0) target = $region45
    $region44: #{actor_forward.1} parent=1 // pred_region
      _
    $region45: #{actor_forward.1} parent=1 // pred_fallthru
      _
    // Predicated region
    $region46: #{actor_forward.1} parent=1 // pred_check
      _
    $region47: #{actor_forward.1} parent=1 // pred_check_branch
      %3938 = sbr.rel (0) target = $region49
    $region48: #{actor_forward.1} parent=1 // pred_region
      %3940 = vsyncadd [#allocation3], 0
      %s3942 = sshll.u32 [#allocation2], 4
      %s3943 = int_to_ptr.vmem [resolvable:$true] %s3942
      %s3944 = sshll.u32 %s11, 4
      %s3945 = int_to_ptr.hbm [resolvable:$true] %s3944
      %3947 = dma.vmem_to_hbm [thread:$0]  %s3943, 128, %s3945, [#allocation3]
    $region49: #{actor_forward.1} parent=1 // pred_fallthru
      _
    // Predicated region
    $region50: #{actor_forward.1} parent=1 // pred_check
      _
    $region51: #{actor_forward.1} parent=1 // pred_check_branch
      %3949 = sbr.rel (0) target = $region53
    $region52: #{actor_forward.1} parent=1 // pred_region
      _
    $region53: #{actor_forward.1} parent=1 // pred_fallthru
      _
    // Predicated region
    $region54: #{actor_forward.1} parent=1 // pred_check
      _
    $region55: #{actor_forward.1} parent=1 // pred_check_branch
      %3951 = sbr.rel (0) target = $region57
    $region56: #{actor_forward.1} parent=1 // pred_region
      %3953 = dma.done [#allocation3], 128
    $region57: #{actor_forward.1} parent=1 // pred_fallthru
      _
    %3954 = vsyncpa [#allocation3], 1

</llo_original>
